<compile_context>
chip_gen: v6e
topology: v6e:2x2x1
jax: 0.10.0
libtpu: 0.0.40
codegen_flags: <defaults>
</compile_context>

<pallas_src>
import functools
import math

import jax
import jax.numpy as jnp
from jax.experimental import pallas as pl
from jax.experimental.pallas import tpu as pltpu

_SQRT_HALF = 1.0 / math.sqrt(2.0)


def _gelu(x):
    # exact erf-based GELU (torch.nn.GELU default)
    return 0.5 * x * (1.0 + jax.lax.erf(x * _SQRT_HALF))


# ---------------------------------------------------------------------------
# Single fused kernel: conv stack + BN + GELU + MaxPool + MHA + residual + LN
# ---------------------------------------------------------------------------
def _fused_kernel(x_ref, w1_ref, s1_ref, b1_ref,
                  w2_ref, s2_ref, b2_ref,
                  w3_ref, s3_ref, b3_ref,
                  wq_ref, bq_ref, wk_ref, bk_ref, wv_ref, bv_ref,
                  wo_ref, bo_ref, g_ref, beta_ref, out_ref,
                  *, batch, seq, num_heads, cin_pad, lanes_out):
    B, T = batch, seq
    Tout = T // 2
    rows = B * T
    C1 = w1_ref.shape[1]
    H = w2_ref.shape[1]
    nh = num_heads
    hd = H // nh

    # time index (t = row mod T); single iota reused for every conv-tap mask.
    t_idx = jax.lax.broadcasted_iota(jnp.int32, (rows, 1), 0) % T

    def shift_rows(v, s):
        """result[r] = v[r + s] within each batch row-block, zero outside."""
        if s == 0:
            return v
        rolled = pltpu.roll(v, (-s) % rows, axis=0)        # XLU sublane rotate
        valid = (t_idx + s >= 0) & (t_idx + s < T)
        return jnp.where(valid, rolled, 0.0)

    # ---- Conv1 (k=5, pad=2): 5 tap matmuls; channels padded 3->cin_pad -----
    x = x_ref[...]                                          # (rows, cin_pad)
    acc1 = jnp.zeros((rows, C1), jnp.float32)
    for k in range(5):
        s = k - 2
        acc1 = acc1 + jnp.dot(shift_rows(x, s),
                              w1_ref[k * cin_pad:(k + 1) * cin_pad, :],
                              preferred_element_type=jnp.float32)
    h1 = _gelu(acc1 * s1_ref[...] + b1_ref[...])            # (rows, C1)

    # ---- Conv2 (k=7, pad=3): 7 tap matmuls, lane-aligned operands ----------
    acc2 = jnp.zeros((rows, H), jnp.float32)
    for k in range(7):
        s = k - 3
        acc2 = acc2 + jnp.dot(shift_rows(h1, s),
                              w2_ref[k * C1:(k + 1) * C1, :],
                              preferred_element_type=jnp.float32)
    h2 = _gelu(acc2 * s2_ref[...] + b2_ref[...])            # (rows, H)

    # ---- Conv3 (depthwise, k=9, pad=4): 9 shifted elementwise taps ----------
    w3 = w3_ref[...]                                        # (9, H)
    acc3 = jnp.zeros((rows, H), jnp.float32)
    for k in range(9):
        s = k - 4
        acc3 = acc3 + shift_rows(h2, s) * w3[k:k + 1, :]
    h3 = _gelu(acc3 * s3_ref[...] + b3_ref[...])            # (rows, H)

    # ---- MaxPool1d(2): reshape + max over pooling axis (no sel-matmuls) ----
    feat = jnp.max(h3.reshape(B * Tout, 2, H), axis=1)      # (B*Tout, H)

    # ---- MultiheadAttention: heads stay in the lane dim, per-head lane mask
    q = jnp.dot(feat, wq_ref[...], preferred_element_type=jnp.float32) + bq_ref[...]
    kk = jnp.dot(feat, wk_ref[...], preferred_element_type=jnp.float32) + bk_ref[...]
    v = jnp.dot(feat, wv_ref[...], preferred_element_type=jnp.float32) + bv_ref[...]

    q3 = q.reshape(B, Tout, H)
    k3 = kk.reshape(B, Tout, H)
    v3 = v.reshape(B, Tout, H)

    lane = jax.lax.broadcasted_iota(jnp.int32, (1, 1, H), 2)
    scale = 1.0 / math.sqrt(hd)
    o3 = jnp.zeros((B, Tout, H), jnp.float32)
    for h in range(nh):
        head_mask = ((lane >= h * hd) & (lane < (h + 1) * hd)).astype(jnp.float32)
        # masking q zeroes other heads' lanes, so the full-H contraction
        # equals the per-head (hd-wide) dot product with lane-aligned operands
        s_h = jax.lax.dot_general(q3 * head_mask, k3,
                                  (((2,), (2,)), ((0,), (0,))),
                                  preferred_element_type=jnp.float32) * scale
        m = jnp.max(s_h, axis=-1, keepdims=True)
        e = jnp.exp(s_h - m)
        p = e / jnp.sum(e, axis=-1, keepdims=True)          # exact softmax
        # masking v confines this head's contribution to its own output lanes
        o3 = o3 + jax.lax.dot_general(p, v3 * head_mask,
                                      (((2,), (1,)), ((0,), (0,))),
                                      preferred_element_type=jnp.float32)

    attended = jnp.dot(o3.reshape(B * Tout, H), wo_ref[...],
                       preferred_element_type=jnp.float32) + bo_ref[...]

    # ---- residual + LayerNorm ------------------------------------------------
    y = feat + attended
    mu = jnp.mean(y, axis=-1, keepdims=True)
    d = y - mu
    var = jnp.mean(d * d, axis=-1, keepdims=True)
    y = d * jax.lax.rsqrt(var + 1e-5) * g_ref[...] + beta_ref[...]

    # lane-dense output slab: pad H -> lanes_out lanes so the store is a full
    # unmasked vst; wrapper slices columns 0:H back out.
    if lanes_out > H:
        y = jnp.concatenate(
            [y, jnp.zeros((B * Tout, lanes_out - H), jnp.float32)], axis=-1)
    out_ref[...] = y


# ---------------------------------------------------------------------------
# Wrapper: accepts/returns PyTorch 'b c t' layout.
# ---------------------------------------------------------------------------
def enhanced_xyz_processor(x, params, *, num_heads=4):
    """x: (B, 3, T) float32 in PyTorch 'b c t' layout; returns (B, H, T//2)."""
    B, cin, T = x.shape
    cin_pad = params["w1"].shape[0] // 5
    H = params["w2"].shape[1]
    Tout = T // 2
    lanes_out = ((H + 127) // 128) * 128                    # lane-dense output

    # layout plumbing only: 'b c t' -> (B*T, cin_pad), channels zero-padded
    x_tc = jnp.transpose(x, (0, 2, 1))                      # (B, T, cin)
    x_tc = jnp.pad(x_tc, ((0, 0), (0, 0), (0, cin_pad - cin)))
    x_rows = x_tc.reshape(B * T, cin_pad)

    vmem = functools.partial(pl.BlockSpec, memory_space=pltpu.MemorySpace.VMEM)
    kernel = functools.partial(_fused_kernel, batch=B, seq=T,
                               num_heads=num_heads, cin_pad=cin_pad,
                               lanes_out=lanes_out)

    out = pl.pallas_call(
        kernel,
        out_shape=jax.ShapeDtypeStruct((B * Tout, lanes_out), jnp.float32),
        in_specs=[vmem() for _ in range(20)],
        out_specs=vmem(),
    )(x_rows,
      params["w1"], params["s1"], params["b1"],
      params["w2"], params["s2"], params["b2"],
      params["w3"], params["s3"], params["b3"],
      params["wq"], params["bq"], params["wk"], params["bk"],
      params["wv"], params["bv"], params["wo"], params["bo"],
      params["ln_g"], params["ln_b"])

    out = out[:, :H].reshape(B, Tout, H)
    return jnp.transpose(out, (0, 2, 1))                    # back to 'b c t'


# ---------------------------------------------------------------------------
# Deterministic parameter construction (synthetic; shapes from __init__)
# ---------------------------------------------------------------------------
def init_params(key, hidden_dim=32, cin=3, cin_pad=8):
    H = hidden_dim
    C1 = H // 2
    eps = 1e-5
    keys = iter(jax.random.split(key, 32))

    def nrm(shape, scale=0.1):
        return scale * jax.random.normal(next(keys), shape, jnp.float32)

    # conv weights (PyTorch layout (Cout, Cin, K)) + conv biases
    w1 = nrm((C1, cin, 5)); cb1 = nrm((C1,))
    w2 = nrm((H, C1, 7));   cb2 = nrm((H,))
    w3 = nrm((H, 1, 9));    cb3 = nrm((H,))

    def bn(c):
        g = 1.0 + nrm((c,)); bt = nrm((c,))
        mean = nrm((c,))
        var = 1.0 + 0.1 * jax.random.uniform(next(keys), (c,), jnp.float32)
        return g, bt, mean, var

    g1, bt1, m1, v1 = bn(C1)
    g2, bt2, m2, v2 = bn(H)
    g3, bt3, m3, v3 = bn(H)

    def fold(g, bt, mean, var, cbias):
        scale = g / jnp.sqrt(var + eps)
        bias = bt + (cbias - mean) * scale
        return scale.reshape(1, -1), bias.reshape(1, -1)

    s1, b1 = fold(g1, bt1, m1, v1, cb1)
    s2, b2 = fold(g2, bt2, m2, v2, cb2)
    s3, b3 = fold(g3, bt3, m3, v3, cb3)

    # MultiheadAttention params (PyTorch: in_proj (3H,H), out_proj (H,H))
    in_proj_w = nrm((3 * H, H)); in_proj_b = nrm((3 * H,))
    out_proj_w = nrm((H, H));    out_proj_b = nrm((H,))
    ln_g = 1.0 + nrm((H,));      ln_b = nrm((H,))

    # conv1 tap-matmul weight: tap blocks padded to cin_pad rows so every
    # in-kernel weight slice is 8-sublane aligned. row = k*cin_pad + ci.
    w1_im = jnp.zeros((5, cin_pad, C1), jnp.float32)
    w1_im = w1_im.at[:, :cin, :].set(jnp.transpose(w1, (2, 1, 0)))
    w1_im = w1_im.reshape(5 * cin_pad, C1)

    wq, wk, wv = in_proj_w[:H], in_proj_w[H:2 * H], in_proj_w[2 * H:]
    bq, bk, bv = in_proj_b[:H], in_proj_b[H:2 * H], in_proj_b[2 * H:]

    return dict(
        w1=w1_im,                                             # (5*cin_pad, C1)
        w2=jnp.transpose(w2, (2, 1, 0)).reshape(7 * C1, H),   # (7*C1, H)
        w3=jnp.transpose(w3[:, 0, :], (1, 0)),                # (9, H) depthwise taps
        s1=s1, b1=b1, s2=s2, b2=b2, s3=s3, b3=b3,
        wq=wq.T, bq=bq.reshape(1, -1),
        wk=wk.T, bk=bk.reshape(1, -1),
        wv=wv.T, bv=bv.reshape(1, -1),
        wo=out_proj_w.T, bo=out_proj_b.reshape(1, -1),
        ln_g=ln_g.reshape(1, -1),
        ln_b=ln_b.reshape(1, -1),
    )


if __name__ == "__main__":
    key = jax.random.PRNGKey(0)
    pkey, xkey = jax.random.split(key)

    hidden_dim, B, T = 32, 2, 16
    params = init_params(pkey, hidden_dim)
    x = jax.random.normal(xkey, (B, 3, T), jnp.float32)   # 'b c t' like PyTorch

    out = enhanced_xyz_processor(x, params)
    out = jax.block_until_ready(out)

    assert out.shape == (B, hidden_dim, T // 2), out.shape
    assert bool(jnp.all(jnp.isfinite(out)))
    print("KERNEL_OK")
</pallas_src>

<mosaic_0001>
module attributes {stable_mosaic.version = 11 : i64} {
  func.func @_fused_kernel(%arg0: memref<32x8xf32, #tpu.memory_space<vmem>>, %arg1: memref<40x16xf32, #tpu.memory_space<vmem>>, %arg2: memref<1x16xf32, #tpu.memory_space<vmem>>, %arg3: memref<1x16xf32, #tpu.memory_space<vmem>>, %arg4: memref<112x32xf32, #tpu.memory_space<vmem>>, %arg5: memref<1x32xf32, #tpu.memory_space<vmem>>, %arg6: memref<1x32xf32, #tpu.memory_space<vmem>>, %arg7: memref<9x32xf32, #tpu.memory_space<vmem>>, %arg8: memref<1x32xf32, #tpu.memory_space<vmem>>, %arg9: memref<1x32xf32, #tpu.memory_space<vmem>>, %arg10: memref<32x32xf32, #tpu.memory_space<vmem>>, %arg11: memref<1x32xf32, #tpu.memory_space<vmem>>, %arg12: memref<32x32xf32, #tpu.memory_space<vmem>>, %arg13: memref<1x32xf32, #tpu.memory_space<vmem>>, %arg14: memref<32x32xf32, #tpu.memory_space<vmem>>, %arg15: memref<1x32xf32, #tpu.memory_space<vmem>>, %arg16: memref<32x32xf32, #tpu.memory_space<vmem>>, %arg17: memref<1x32xf32, #tpu.memory_space<vmem>>, %arg18: memref<1x32xf32, #tpu.memory_space<vmem>>, %arg19: memref<1x32xf32, #tpu.memory_space<vmem>>, %arg20: memref<16x128xf32, #tpu.memory_space<vmem>>) attributes {dimension_semantics = [], scalar_prefetch = 0 : i64, scratch_operands = 0 : i64, tpu.core_type = #tpu.core_type<tc>} {
    %0 = tpu.iota {dimensions = array<i32: 0>} : vector<32x1xi32>
    %c16_i32 = arith.constant 16 : i32
    %c0_i32 = arith.constant 0 : i32
    %1 = arith.cmpi eq, %c16_i32, %c0_i32 : i32
    %c1_i32 = arith.constant 1 : i32
    %2 = arith.select %1, %c1_i32, %c16_i32 : i32
    %3 = vector.broadcast %2 : i32 to vector<32x1xi32>
    %4 = arith.remsi %0, %3 : vector<32x1xi32>
    %c0_i32_0 = arith.constant 0 : i32
    %5 = vector.broadcast %c0_i32_0 : i32 to vector<32x1xi32>
    %6 = arith.cmpi ne, %4, %5 : vector<32x1xi32>
    %c0_i32_1 = arith.constant 0 : i32
    %7 = vector.broadcast %c0_i32_1 : i32 to vector<32x1xi32>
    %8 = arith.cmpi slt, %4, %7 : vector<32x1xi32>
    %c0_i32_2 = arith.constant 0 : i32
    %9 = arith.cmpi slt, %2, %c0_i32_2 : i32
    %10 = vector.broadcast %9 : i1 to vector<32x1xi1>
    %11 = vector.broadcast %10 : vector<32x1xi1> to vector<32x1xi1>
    %12 = arith.xori %8, %11 : vector<32x1xi1>
    %13 = arith.andi %12, %6 : vector<32x1xi1>
    %14 = vector.broadcast %2 : i32 to vector<32x1xi32>
    %15 = arith.addi %4, %14 : vector<32x1xi32>
    %16 = arith.select %13, %15, %4 : vector<32x1xi1>, vector<32x1xi32>
    %c0 = arith.constant 0 : index
    %c0_3 = arith.constant 0 : index
    %17 = vector.load %arg0[%c0, %c0_3] : memref<32x8xf32, #tpu.memory_space<vmem>>, vector<32x8xf32>
    %cst = arith.constant 0.000000e+00 : f32
    %18 = vector.broadcast %cst : f32 to vector<32x16xf32>
    %c2_i32 = arith.constant 2 : i32
    %19 = tpu.dynamic_rotate %17 by %c2_i32 dim 0 : vector<32x8xf32>, i32 -> vector<32x8xf32>
    %c-2_i32 = arith.constant -2 : i32
    %20 = vector.broadcast %c-2_i32 : i32 to vector<32x1xi32>
    %21 = arith.addi %16, %20 : vector<32x1xi32>
    %c0_i32_4 = arith.constant 0 : i32
    %22 = vector.broadcast %c0_i32_4 : i32 to vector<32x1xi32>
    %23 = arith.cmpi sge, %21, %22 : vector<32x1xi32>
    %c-2_i32_5 = arith.constant -2 : i32
    %24 = vector.broadcast %c-2_i32_5 : i32 to vector<32x1xi32>
    %25 = arith.addi %16, %24 : vector<32x1xi32>
    %c16_i32_6 = arith.constant 16 : i32
    %26 = vector.broadcast %c16_i32_6 : i32 to vector<32x1xi32>
    %27 = arith.cmpi slt, %25, %26 : vector<32x1xi32>
    %28 = arith.andi %23, %27 : vector<32x1xi1>
    %cst_7 = arith.constant 0.000000e+00 : f32
    %29 = vector.shape_cast %28 : vector<32x1xi1> to vector<32x1xi1>
    %30 = vector.broadcast %29 : vector<32x1xi1> to vector<32x8xi1>
    %31 = vector.broadcast %cst_7 : f32 to vector<32x8xf32>
    %32 = arith.select %30, %19, %31 : vector<32x8xi1>, vector<32x8xf32>
    %c0_8 = arith.constant 0 : index
    %c0_9 = arith.constant 0 : index
    %33 = vector.load %arg1[%c0_8, %c0_9] : memref<40x16xf32, #tpu.memory_space<vmem>>, vector<8x16xf32>
    %cst_10 = arith.constant dense<0.000000e+00> : vector<32x16xf32>
    %34 = tpu.matmul %32, %33, %cst_10 {dimension_numbers = #tpu.dot_dimension_numbers<[1], [0], [0], [1], [0, 0, 1, 1], [], []>} : vector<32x8xf32>, vector<8x16xf32>, vector<32x16xf32> -> vector<32x16xf32>
    %35 = arith.addf %18, %34 : vector<32x16xf32>
    %c1_i32_11 = arith.constant 1 : i32
    %36 = tpu.dynamic_rotate %17 by %c1_i32_11 dim 0 : vector<32x8xf32>, i32 -> vector<32x8xf32>
    %c-1_i32 = arith.constant -1 : i32
    %37 = vector.broadcast %c-1_i32 : i32 to vector<32x1xi32>
    %38 = arith.addi %16, %37 : vector<32x1xi32>
    %c0_i32_12 = arith.constant 0 : i32
    %39 = vector.broadcast %c0_i32_12 : i32 to vector<32x1xi32>
    %40 = arith.cmpi sge, %38, %39 : vector<32x1xi32>
    %c-1_i32_13 = arith.constant -1 : i32
    %41 = vector.broadcast %c-1_i32_13 : i32 to vector<32x1xi32>
    %42 = arith.addi %16, %41 : vector<32x1xi32>
    %c16_i32_14 = arith.constant 16 : i32
    %43 = vector.broadcast %c16_i32_14 : i32 to vector<32x1xi32>
    %44 = arith.cmpi slt, %42, %43 : vector<32x1xi32>
    %45 = arith.andi %40, %44 : vector<32x1xi1>
    %cst_15 = arith.constant 0.000000e+00 : f32
    %46 = vector.shape_cast %45 : vector<32x1xi1> to vector<32x1xi1>
    %47 = vector.broadcast %46 : vector<32x1xi1> to vector<32x8xi1>
    %48 = vector.broadcast %cst_15 : f32 to vector<32x8xf32>
    %49 = arith.select %47, %36, %48 : vector<32x8xi1>, vector<32x8xf32>
    %c8 = arith.constant 8 : index
    %c0_16 = arith.constant 0 : index
    %50 = vector.load %arg1[%c8, %c0_16] : memref<40x16xf32, #tpu.memory_space<vmem>>, vector<8x16xf32>
    %cst_17 = arith.constant dense<0.000000e+00> : vector<32x16xf32>
    %51 = tpu.matmul %49, %50, %cst_17 {dimension_numbers = #tpu.dot_dimension_numbers<[1], [0], [0], [1], [0, 0, 1, 1], [], []>} : vector<32x8xf32>, vector<8x16xf32>, vector<32x16xf32> -> vector<32x16xf32>
    %52 = arith.addf %35, %51 : vector<32x16xf32>
    %c16 = arith.constant 16 : index
    %c0_18 = arith.constant 0 : index
    %53 = vector.load %arg1[%c16, %c0_18] : memref<40x16xf32, #tpu.memory_space<vmem>>, vector<8x16xf32>
    %cst_19 = arith.constant dense<0.000000e+00> : vector<32x16xf32>
    %54 = tpu.matmul %17, %53, %cst_19 {dimension_numbers = #tpu.dot_dimension_numbers<[1], [0], [0], [1], [0, 0, 1, 1], [], []>} : vector<32x8xf32>, vector<8x16xf32>, vector<32x16xf32> -> vector<32x16xf32>
    %55 = arith.addf %52, %54 : vector<32x16xf32>
    %c31_i32 = arith.constant 31 : i32
    %56 = tpu.dynamic_rotate %17 by %c31_i32 dim 0 : vector<32x8xf32>, i32 -> vector<32x8xf32>
    %c1_i32_20 = arith.constant 1 : i32
    %57 = vector.broadcast %c1_i32_20 : i32 to vector<32x1xi32>
    %58 = arith.addi %16, %57 : vector<32x1xi32>
    %c0_i32_21 = arith.constant 0 : i32
    %59 = vector.broadcast %c0_i32_21 : i32 to vector<32x1xi32>
    %60 = arith.cmpi sge, %58, %59 : vector<32x1xi32>
    %c1_i32_22 = arith.constant 1 : i32
    %61 = vector.broadcast %c1_i32_22 : i32 to vector<32x1xi32>
    %62 = arith.addi %16, %61 : vector<32x1xi32>
    %c16_i32_23 = arith.constant 16 : i32
    %63 = vector.broadcast %c16_i32_23 : i32 to vector<32x1xi32>
    %64 = arith.cmpi slt, %62, %63 : vector<32x1xi32>
    %65 = arith.andi %60, %64 : vector<32x1xi1>
    %cst_24 = arith.constant 0.000000e+00 : f32
    %66 = vector.shape_cast %65 : vector<32x1xi1> to vector<32x1xi1>
    %67 = vector.broadcast %66 : vector<32x1xi1> to vector<32x8xi1>
    %68 = vector.broadcast %cst_24 : f32 to vector<32x8xf32>
    %69 = arith.select %67, %56, %68 : vector<32x8xi1>, vector<32x8xf32>
    %c24 = arith.constant 24 : index
    %c0_25 = arith.constant 0 : index
    %70 = vector.load %arg1[%c24, %c0_25] : memref<40x16xf32, #tpu.memory_space<vmem>>, vector<8x16xf32>
    %cst_26 = arith.constant dense<0.000000e+00> : vector<32x16xf32>
    %71 = tpu.matmul %69, %70, %cst_26 {dimension_numbers = #tpu.dot_dimension_numbers<[1], [0], [0], [1], [0, 0, 1, 1], [], []>} : vector<32x8xf32>, vector<8x16xf32>, vector<32x16xf32> -> vector<32x16xf32>
    %72 = arith.addf %55, %71 : vector<32x16xf32>
    %c30_i32 = arith.constant 30 : i32
    %73 = tpu.dynamic_rotate %17 by %c30_i32 dim 0 : vector<32x8xf32>, i32 -> vector<32x8xf32>
    %c2_i32_27 = arith.constant 2 : i32
    %74 = vector.broadcast %c2_i32_27 : i32 to vector<32x1xi32>
    %75 = arith.addi %16, %74 : vector<32x1xi32>
    %c0_i32_28 = arith.constant 0 : i32
    %76 = vector.broadcast %c0_i32_28 : i32 to vector<32x1xi32>
    %77 = arith.cmpi sge, %75, %76 : vector<32x1xi32>
    %c2_i32_29 = arith.constant 2 : i32
    %78 = vector.broadcast %c2_i32_29 : i32 to vector<32x1xi32>
    %79 = arith.addi %16, %78 : vector<32x1xi32>
    %c16_i32_30 = arith.constant 16 : i32
    %80 = vector.broadcast %c16_i32_30 : i32 to vector<32x1xi32>
    %81 = arith.cmpi slt, %79, %80 : vector<32x1xi32>
    %82 = arith.andi %77, %81 : vector<32x1xi1>
    %cst_31 = arith.constant 0.000000e+00 : f32
    %83 = vector.shape_cast %82 : vector<32x1xi1> to vector<32x1xi1>
    %84 = vector.broadcast %83 : vector<32x1xi1> to vector<32x8xi1>
    %85 = vector.broadcast %cst_31 : f32 to vector<32x8xf32>
    %86 = arith.select %84, %73, %85 : vector<32x8xi1>, vector<32x8xf32>
    %c32 = arith.constant 32 : index
    %c0_32 = arith.constant 0 : index
    %87 = vector.load %arg1[%c32, %c0_32] : memref<40x16xf32, #tpu.memory_space<vmem>>, vector<8x16xf32>
    %cst_33 = arith.constant dense<0.000000e+00> : vector<32x16xf32>
    %88 = tpu.matmul %86, %87, %cst_33 {dimension_numbers = #tpu.dot_dimension_numbers<[1], [0], [0], [1], [0, 0, 1, 1], [], []>} : vector<32x8xf32>, vector<8x16xf32>, vector<32x16xf32> -> vector<32x16xf32>
    %89 = arith.addf %72, %88 : vector<32x16xf32>
    %c0_34 = arith.constant 0 : index
    %c0_35 = arith.constant 0 : index
    %90 = vector.load %arg2[%c0_34, %c0_35] : memref<1x16xf32, #tpu.memory_space<vmem>>, vector<1x16xf32>
    %91 = vector.broadcast %90 : vector<1x16xf32> to vector<32x16xf32>
    %92 = arith.mulf %89, %91 : vector<32x16xf32>
    %c0_36 = arith.constant 0 : index
    %c0_37 = arith.constant 0 : index
    %93 = vector.load %arg3[%c0_36, %c0_37] : memref<1x16xf32, #tpu.memory_space<vmem>>, vector<1x16xf32>
    %94 = vector.broadcast %93 : vector<1x16xf32> to vector<32x16xf32>
    %95 = arith.addf %92, %94 : vector<32x16xf32>
    %cst_38 = arith.constant 5.000000e-01 : f32
    %96 = vector.broadcast %cst_38 : f32 to vector<32x16xf32>
    %97 = arith.mulf %96, %95 : vector<32x16xf32>
    %cst_39 = arith.constant 0.707106769 : f32
    %98 = vector.broadcast %cst_39 : f32 to vector<32x16xf32>
    %99 = arith.mulf %95, %98 : vector<32x16xf32>
    %100 = math.erf %99 : vector<32x16xf32>
    %cst_40 = arith.constant 1.000000e+00 : f32
    %101 = vector.broadcast %cst_40 : f32 to vector<32x16xf32>
    %102 = arith.addf %101, %100 : vector<32x16xf32>
    %103 = arith.mulf %97, %102 : vector<32x16xf32>
    %cst_41 = arith.constant 0.000000e+00 : f32
    %104 = vector.broadcast %cst_41 : f32 to vector<32x32xf32>
    %c3_i32 = arith.constant 3 : i32
    %105 = tpu.dynamic_rotate %103 by %c3_i32 dim 0 : vector<32x16xf32>, i32 -> vector<32x16xf32>
    %c-3_i32 = arith.constant -3 : i32
    %106 = vector.broadcast %c-3_i32 : i32 to vector<32x1xi32>
    %107 = arith.addi %16, %106 : vector<32x1xi32>
    %c0_i32_42 = arith.constant 0 : i32
    %108 = vector.broadcast %c0_i32_42 : i32 to vector<32x1xi32>
    %109 = arith.cmpi sge, %107, %108 : vector<32x1xi32>
    %c-3_i32_43 = arith.constant -3 : i32
    %110 = vector.broadcast %c-3_i32_43 : i32 to vector<32x1xi32>
    %111 = arith.addi %16, %110 : vector<32x1xi32>
    %c16_i32_44 = arith.constant 16 : i32
    %112 = vector.broadcast %c16_i32_44 : i32 to vector<32x1xi32>
    %113 = arith.cmpi slt, %111, %112 : vector<32x1xi32>
    %114 = arith.andi %109, %113 : vector<32x1xi1>
    %cst_45 = arith.constant 0.000000e+00 : f32
    %115 = vector.shape_cast %114 : vector<32x1xi1> to vector<32x1xi1>
    %116 = vector.broadcast %115 : vector<32x1xi1> to vector<32x16xi1>
    %117 = vector.broadcast %cst_45 : f32 to vector<32x16xf32>
    %118 = arith.select %116, %105, %117 : vector<32x16xi1>, vector<32x16xf32>
    %c0_46 = arith.constant 0 : index
    %c0_47 = arith.constant 0 : index
    %119 = vector.load %arg4[%c0_46, %c0_47] : memref<112x32xf32, #tpu.memory_space<vmem>>, vector<16x32xf32>
    %cst_48 = arith.constant dense<0.000000e+00> : vector<32x32xf32>
    %120 = tpu.matmul %118, %119, %cst_48 {dimension_numbers = #tpu.dot_dimension_numbers<[1], [0], [0], [1], [0, 0, 1, 1], [], []>} : vector<32x16xf32>, vector<16x32xf32>, vector<32x32xf32> -> vector<32x32xf32>
    %121 = arith.addf %104, %120 : vector<32x32xf32>
    %c2_i32_49 = arith.constant 2 : i32
    %122 = tpu.dynamic_rotate %103 by %c2_i32_49 dim 0 : vector<32x16xf32>, i32 -> vector<32x16xf32>
    %c-2_i32_50 = arith.constant -2 : i32
    %123 = vector.broadcast %c-2_i32_50 : i32 to vector<32x1xi32>
    %124 = arith.addi %16, %123 : vector<32x1xi32>
    %c0_i32_51 = arith.constant 0 : i32
    %125 = vector.broadcast %c0_i32_51 : i32 to vector<32x1xi32>
    %126 = arith.cmpi sge, %124, %125 : vector<32x1xi32>
    %c-2_i32_52 = arith.constant -2 : i32
    %127 = vector.broadcast %c-2_i32_52 : i32 to vector<32x1xi32>
    %128 = arith.addi %16, %127 : vector<32x1xi32>
    %c16_i32_53 = arith.constant 16 : i32
    %129 = vector.broadcast %c16_i32_53 : i32 to vector<32x1xi32>
    %130 = arith.cmpi slt, %128, %129 : vector<32x1xi32>
    %131 = arith.andi %126, %130 : vector<32x1xi1>
    %cst_54 = arith.constant 0.000000e+00 : f32
    %132 = vector.shape_cast %131 : vector<32x1xi1> to vector<32x1xi1>
    %133 = vector.broadcast %132 : vector<32x1xi1> to vector<32x16xi1>
    %134 = vector.broadcast %cst_54 : f32 to vector<32x16xf32>
    %135 = arith.select %133, %122, %134 : vector<32x16xi1>, vector<32x16xf32>
    %c16_55 = arith.constant 16 : index
    %c0_56 = arith.constant 0 : index
    %136 = vector.load %arg4[%c16_55, %c0_56] : memref<112x32xf32, #tpu.memory_space<vmem>>, vector<16x32xf32>
    %cst_57 = arith.constant dense<0.000000e+00> : vector<32x32xf32>
    %137 = tpu.matmul %135, %136, %cst_57 {dimension_numbers = #tpu.dot_dimension_numbers<[1], [0], [0], [1], [0, 0, 1, 1], [], []>} : vector<32x16xf32>, vector<16x32xf32>, vector<32x32xf32> -> vector<32x32xf32>
    %138 = arith.addf %121, %137 : vector<32x32xf32>
    %c1_i32_58 = arith.constant 1 : i32
    %139 = tpu.dynamic_rotate %103 by %c1_i32_58 dim 0 : vector<32x16xf32>, i32 -> vector<32x16xf32>
    %c-1_i32_59 = arith.constant -1 : i32
    %140 = vector.broadcast %c-1_i32_59 : i32 to vector<32x1xi32>
    %141 = arith.addi %16, %140 : vector<32x1xi32>
    %c0_i32_60 = arith.constant 0 : i32
    %142 = vector.broadcast %c0_i32_60 : i32 to vector<32x1xi32>
    %143 = arith.cmpi sge, %141, %142 : vector<32x1xi32>
    %c-1_i32_61 = arith.constant -1 : i32
    %144 = vector.broadcast %c-1_i32_61 : i32 to vector<32x1xi32>
    %145 = arith.addi %16, %144 : vector<32x1xi32>
    %c16_i32_62 = arith.constant 16 : i32
    %146 = vector.broadcast %c16_i32_62 : i32 to vector<32x1xi32>
    %147 = arith.cmpi slt, %145, %146 : vector<32x1xi32>
    %148 = arith.andi %143, %147 : vector<32x1xi1>
    %cst_63 = arith.constant 0.000000e+00 : f32
    %149 = vector.shape_cast %148 : vector<32x1xi1> to vector<32x1xi1>
    %150 = vector.broadcast %149 : vector<32x1xi1> to vector<32x16xi1>
    %151 = vector.broadcast %cst_63 : f32 to vector<32x16xf32>
    %152 = arith.select %150, %139, %151 : vector<32x16xi1>, vector<32x16xf32>
    %c32_64 = arith.constant 32 : index
    %c0_65 = arith.constant 0 : index
    %153 = vector.load %arg4[%c32_64, %c0_65] : memref<112x32xf32, #tpu.memory_space<vmem>>, vector<16x32xf32>
    %cst_66 = arith.constant dense<0.000000e+00> : vector<32x32xf32>
    %154 = tpu.matmul %152, %153, %cst_66 {dimension_numbers = #tpu.dot_dimension_numbers<[1], [0], [0], [1], [0, 0, 1, 1], [], []>} : vector<32x16xf32>, vector<16x32xf32>, vector<32x32xf32> -> vector<32x32xf32>
    %155 = arith.addf %138, %154 : vector<32x32xf32>
    %c48 = arith.constant 48 : index
    %c0_67 = arith.constant 0 : index
    %156 = vector.load %arg4[%c48, %c0_67] : memref<112x32xf32, #tpu.memory_space<vmem>>, vector<16x32xf32>
    %cst_68 = arith.constant dense<0.000000e+00> : vector<32x32xf32>
    %157 = tpu.matmul %103, %156, %cst_68 {dimension_numbers = #tpu.dot_dimension_numbers<[1], [0], [0], [1], [0, 0, 1, 1], [], []>} : vector<32x16xf32>, vector<16x32xf32>, vector<32x32xf32> -> vector<32x32xf32>
    %158 = arith.addf %155, %157 : vector<32x32xf32>
    %c31_i32_69 = arith.constant 31 : i32
    %159 = tpu.dynamic_rotate %103 by %c31_i32_69 dim 0 : vector<32x16xf32>, i32 -> vector<32x16xf32>
    %c1_i32_70 = arith.constant 1 : i32
    %160 = vector.broadcast %c1_i32_70 : i32 to vector<32x1xi32>
    %161 = arith.addi %16, %160 : vector<32x1xi32>
    %c0_i32_71 = arith.constant 0 : i32
    %162 = vector.broadcast %c0_i32_71 : i32 to vector<32x1xi32>
    %163 = arith.cmpi sge, %161, %162 : vector<32x1xi32>
    %c1_i32_72 = arith.constant 1 : i32
    %164 = vector.broadcast %c1_i32_72 : i32 to vector<32x1xi32>
    %165 = arith.addi %16, %164 : vector<32x1xi32>
    %c16_i32_73 = arith.constant 16 : i32
    %166 = vector.broadcast %c16_i32_73 : i32 to vector<32x1xi32>
    %167 = arith.cmpi slt, %165, %166 : vector<32x1xi32>
    %168 = arith.andi %163, %167 : vector<32x1xi1>
    %cst_74 = arith.constant 0.000000e+00 : f32
    %169 = vector.shape_cast %168 : vector<32x1xi1> to vector<32x1xi1>
    %170 = vector.broadcast %169 : vector<32x1xi1> to vector<32x16xi1>
    %171 = vector.broadcast %cst_74 : f32 to vector<32x16xf32>
    %172 = arith.select %170, %159, %171 : vector<32x16xi1>, vector<32x16xf32>
    %c64 = arith.constant 64 : index
    %c0_75 = arith.constant 0 : index
    %173 = vector.load %arg4[%c64, %c0_75] : memref<112x32xf32, #tpu.memory_space<vmem>>, vector<16x32xf32>
    %cst_76 = arith.constant dense<0.000000e+00> : vector<32x32xf32>
    %174 = tpu.matmul %172, %173, %cst_76 {dimension_numbers = #tpu.dot_dimension_numbers<[1], [0], [0], [1], [0, 0, 1, 1], [], []>} : vector<32x16xf32>, vector<16x32xf32>, vector<32x32xf32> -> vector<32x32xf32>
    %175 = arith.addf %158, %174 : vector<32x32xf32>
    %c30_i32_77 = arith.constant 30 : i32
    %176 = tpu.dynamic_rotate %103 by %c30_i32_77 dim 0 : vector<32x16xf32>, i32 -> vector<32x16xf32>
    %c2_i32_78 = arith.constant 2 : i32
    %177 = vector.broadcast %c2_i32_78 : i32 to vector<32x1xi32>
    %178 = arith.addi %16, %177 : vector<32x1xi32>
    %c0_i32_79 = arith.constant 0 : i32
    %179 = vector.broadcast %c0_i32_79 : i32 to vector<32x1xi32>
    %180 = arith.cmpi sge, %178, %179 : vector<32x1xi32>
    %c2_i32_80 = arith.constant 2 : i32
    %181 = vector.broadcast %c2_i32_80 : i32 to vector<32x1xi32>
    %182 = arith.addi %16, %181 : vector<32x1xi32>
    %c16_i32_81 = arith.constant 16 : i32
    %183 = vector.broadcast %c16_i32_81 : i32 to vector<32x1xi32>
    %184 = arith.cmpi slt, %182, %183 : vector<32x1xi32>
    %185 = arith.andi %180, %184 : vector<32x1xi1>
    %cst_82 = arith.constant 0.000000e+00 : f32
    %186 = vector.shape_cast %185 : vector<32x1xi1> to vector<32x1xi1>
    %187 = vector.broadcast %186 : vector<32x1xi1> to vector<32x16xi1>
    %188 = vector.broadcast %cst_82 : f32 to vector<32x16xf32>
    %189 = arith.select %187, %176, %188 : vector<32x16xi1>, vector<32x16xf32>
    %c80 = arith.constant 80 : index
    %c0_83 = arith.constant 0 : index
    %190 = vector.load %arg4[%c80, %c0_83] : memref<112x32xf32, #tpu.memory_space<vmem>>, vector<16x32xf32>
    %cst_84 = arith.constant dense<0.000000e+00> : vector<32x32xf32>
    %191 = tpu.matmul %189, %190, %cst_84 {dimension_numbers = #tpu.dot_dimension_numbers<[1], [0], [0], [1], [0, 0, 1, 1], [], []>} : vector<32x16xf32>, vector<16x32xf32>, vector<32x32xf32> -> vector<32x32xf32>
    %192 = arith.addf %175, %191 : vector<32x32xf32>
    %c29_i32 = arith.constant 29 : i32
    %193 = tpu.dynamic_rotate %103 by %c29_i32 dim 0 : vector<32x16xf32>, i32 -> vector<32x16xf32>
    %c3_i32_85 = arith.constant 3 : i32
    %194 = vector.broadcast %c3_i32_85 : i32 to vector<32x1xi32>
    %195 = arith.addi %16, %194 : vector<32x1xi32>
    %c0_i32_86 = arith.constant 0 : i32
    %196 = vector.broadcast %c0_i32_86 : i32 to vector<32x1xi32>
    %197 = arith.cmpi sge, %195, %196 : vector<32x1xi32>
    %c3_i32_87 = arith.constant 3 : i32
    %198 = vector.broadcast %c3_i32_87 : i32 to vector<32x1xi32>
    %199 = arith.addi %16, %198 : vector<32x1xi32>
    %c16_i32_88 = arith.constant 16 : i32
    %200 = vector.broadcast %c16_i32_88 : i32 to vector<32x1xi32>
    %201 = arith.cmpi slt, %199, %200 : vector<32x1xi32>
    %202 = arith.andi %197, %201 : vector<32x1xi1>
    %cst_89 = arith.constant 0.000000e+00 : f32
    %203 = vector.shape_cast %202 : vector<32x1xi1> to vector<32x1xi1>
    %204 = vector.broadcast %203 : vector<32x1xi1> to vector<32x16xi1>
    %205 = vector.broadcast %cst_89 : f32 to vector<32x16xf32>
    %206 = arith.select %204, %193, %205 : vector<32x16xi1>, vector<32x16xf32>
    %c96 = arith.constant 96 : index
    %c0_90 = arith.constant 0 : index
    %207 = vector.load %arg4[%c96, %c0_90] : memref<112x32xf32, #tpu.memory_space<vmem>>, vector<16x32xf32>
    %cst_91 = arith.constant dense<0.000000e+00> : vector<32x32xf32>
    %208 = tpu.matmul %206, %207, %cst_91 {dimension_numbers = #tpu.dot_dimension_numbers<[1], [0], [0], [1], [0, 0, 1, 1], [], []>} : vector<32x16xf32>, vector<16x32xf32>, vector<32x32xf32> -> vector<32x32xf32>
    %209 = arith.addf %192, %208 : vector<32x32xf32>
    %c0_92 = arith.constant 0 : index
    %c0_93 = arith.constant 0 : index
    %210 = vector.load %arg5[%c0_92, %c0_93] : memref<1x32xf32, #tpu.memory_space<vmem>>, vector<1x32xf32>
    %211 = vector.broadcast %210 : vector<1x32xf32> to vector<32x32xf32>
    %212 = arith.mulf %209, %211 : vector<32x32xf32>
    %c0_94 = arith.constant 0 : index
    %c0_95 = arith.constant 0 : index
    %213 = vector.load %arg6[%c0_94, %c0_95] : memref<1x32xf32, #tpu.memory_space<vmem>>, vector<1x32xf32>
    %214 = vector.broadcast %213 : vector<1x32xf32> to vector<32x32xf32>
    %215 = arith.addf %212, %214 : vector<32x32xf32>
    %cst_96 = arith.constant 5.000000e-01 : f32
    %216 = vector.broadcast %cst_96 : f32 to vector<32x32xf32>
    %217 = arith.mulf %216, %215 : vector<32x32xf32>
    %cst_97 = arith.constant 0.707106769 : f32
    %218 = vector.broadcast %cst_97 : f32 to vector<32x32xf32>
    %219 = arith.mulf %215, %218 : vector<32x32xf32>
    %220 = math.erf %219 : vector<32x32xf32>
    %cst_98 = arith.constant 1.000000e+00 : f32
    %221 = vector.broadcast %cst_98 : f32 to vector<32x32xf32>
    %222 = arith.addf %221, %220 : vector<32x32xf32>
    %223 = arith.mulf %217, %222 : vector<32x32xf32>
    %c0_99 = arith.constant 0 : index
    %c0_100 = arith.constant 0 : index
    %224 = vector.load %arg7[%c0_99, %c0_100] : memref<9x32xf32, #tpu.memory_space<vmem>>, vector<9x32xf32>
    %cst_101 = arith.constant 0.000000e+00 : f32
    %225 = vector.broadcast %cst_101 : f32 to vector<32x32xf32>
    %c4_i32 = arith.constant 4 : i32
    %226 = tpu.dynamic_rotate %223 by %c4_i32 dim 0 : vector<32x32xf32>, i32 -> vector<32x32xf32>
    %c-4_i32 = arith.constant -4 : i32
    %227 = vector.broadcast %c-4_i32 : i32 to vector<32x1xi32>
    %228 = arith.addi %16, %227 : vector<32x1xi32>
    %c0_i32_102 = arith.constant 0 : i32
    %229 = vector.broadcast %c0_i32_102 : i32 to vector<32x1xi32>
    %230 = arith.cmpi sge, %228, %229 : vector<32x1xi32>
    %c-4_i32_103 = arith.constant -4 : i32
    %231 = vector.broadcast %c-4_i32_103 : i32 to vector<32x1xi32>
    %232 = arith.addi %16, %231 : vector<32x1xi32>
    %c16_i32_104 = arith.constant 16 : i32
    %233 = vector.broadcast %c16_i32_104 : i32 to vector<32x1xi32>
    %234 = arith.cmpi slt, %232, %233 : vector<32x1xi32>
    %235 = arith.andi %230, %234 : vector<32x1xi1>
    %cst_105 = arith.constant 0.000000e+00 : f32
    %236 = vector.shape_cast %235 : vector<32x1xi1> to vector<32x1xi1>
    %237 = vector.broadcast %236 : vector<32x1xi1> to vector<32x32xi1>
    %238 = vector.broadcast %cst_105 : f32 to vector<32x32xf32>
    %239 = arith.select %237, %226, %238 : vector<32x32xi1>, vector<32x32xf32>
    %240 = vector.extract_strided_slice %224 {offsets = [0, 0], sizes = [1, 32], strides = [1, 1]} : vector<9x32xf32> to vector<1x32xf32>
    %241 = vector.broadcast %240 : vector<1x32xf32> to vector<32x32xf32>
    %242 = arith.mulf %239, %241 : vector<32x32xf32>
    %243 = arith.addf %225, %242 : vector<32x32xf32>
    %c3_i32_106 = arith.constant 3 : i32
    %244 = tpu.dynamic_rotate %223 by %c3_i32_106 dim 0 : vector<32x32xf32>, i32 -> vector<32x32xf32>
    %c-3_i32_107 = arith.constant -3 : i32
    %245 = vector.broadcast %c-3_i32_107 : i32 to vector<32x1xi32>
    %246 = arith.addi %16, %245 : vector<32x1xi32>
    %c0_i32_108 = arith.constant 0 : i32
    %247 = vector.broadcast %c0_i32_108 : i32 to vector<32x1xi32>
    %248 = arith.cmpi sge, %246, %247 : vector<32x1xi32>
    %c-3_i32_109 = arith.constant -3 : i32
    %249 = vector.broadcast %c-3_i32_109 : i32 to vector<32x1xi32>
    %250 = arith.addi %16, %249 : vector<32x1xi32>
    %c16_i32_110 = arith.constant 16 : i32
    %251 = vector.broadcast %c16_i32_110 : i32 to vector<32x1xi32>
    %252 = arith.cmpi slt, %250, %251 : vector<32x1xi32>
    %253 = arith.andi %248, %252 : vector<32x1xi1>
    %cst_111 = arith.constant 0.000000e+00 : f32
    %254 = vector.shape_cast %253 : vector<32x1xi1> to vector<32x1xi1>
    %255 = vector.broadcast %254 : vector<32x1xi1> to vector<32x32xi1>
    %256 = vector.broadcast %cst_111 : f32 to vector<32x32xf32>
    %257 = arith.select %255, %244, %256 : vector<32x32xi1>, vector<32x32xf32>
    %258 = vector.extract_strided_slice %224 {offsets = [1, 0], sizes = [1, 32], strides = [1, 1]} : vector<9x32xf32> to vector<1x32xf32>
    %259 = vector.broadcast %258 : vector<1x32xf32> to vector<32x32xf32>
    %260 = arith.mulf %257, %259 : vector<32x32xf32>
    %261 = arith.addf %243, %260 : vector<32x32xf32>
    %c2_i32_112 = arith.constant 2 : i32
    %262 = tpu.dynamic_rotate %223 by %c2_i32_112 dim 0 : vector<32x32xf32>, i32 -> vector<32x32xf32>
    %c-2_i32_113 = arith.constant -2 : i32
    %263 = vector.broadcast %c-2_i32_113 : i32 to vector<32x1xi32>
    %264 = arith.addi %16, %263 : vector<32x1xi32>
    %c0_i32_114 = arith.constant 0 : i32
    %265 = vector.broadcast %c0_i32_114 : i32 to vector<32x1xi32>
    %266 = arith.cmpi sge, %264, %265 : vector<32x1xi32>
    %c-2_i32_115 = arith.constant -2 : i32
    %267 = vector.broadcast %c-2_i32_115 : i32 to vector<32x1xi32>
    %268 = arith.addi %16, %267 : vector<32x1xi32>
    %c16_i32_116 = arith.constant 16 : i32
    %269 = vector.broadcast %c16_i32_116 : i32 to vector<32x1xi32>
    %270 = arith.cmpi slt, %268, %269 : vector<32x1xi32>
    %271 = arith.andi %266, %270 : vector<32x1xi1>
    %cst_117 = arith.constant 0.000000e+00 : f32
    %272 = vector.shape_cast %271 : vector<32x1xi1> to vector<32x1xi1>
    %273 = vector.broadcast %272 : vector<32x1xi1> to vector<32x32xi1>
    %274 = vector.broadcast %cst_117 : f32 to vector<32x32xf32>
    %275 = arith.select %273, %262, %274 : vector<32x32xi1>, vector<32x32xf32>
    %276 = vector.extract_strided_slice %224 {offsets = [2, 0], sizes = [1, 32], strides = [1, 1]} : vector<9x32xf32> to vector<1x32xf32>
    %277 = vector.broadcast %276 : vector<1x32xf32> to vector<32x32xf32>
    %278 = arith.mulf %275, %277 : vector<32x32xf32>
    %279 = arith.addf %261, %278 : vector<32x32xf32>
    %c1_i32_118 = arith.constant 1 : i32
    %280 = tpu.dynamic_rotate %223 by %c1_i32_118 dim 0 : vector<32x32xf32>, i32 -> vector<32x32xf32>
    %c-1_i32_119 = arith.constant -1 : i32
    %281 = vector.broadcast %c-1_i32_119 : i32 to vector<32x1xi32>
    %282 = arith.addi %16, %281 : vector<32x1xi32>
    %c0_i32_120 = arith.constant 0 : i32
    %283 = vector.broadcast %c0_i32_120 : i32 to vector<32x1xi32>
    %284 = arith.cmpi sge, %282, %283 : vector<32x1xi32>
    %c-1_i32_121 = arith.constant -1 : i32
    %285 = vector.broadcast %c-1_i32_121 : i32 to vector<32x1xi32>
    %286 = arith.addi %16, %285 : vector<32x1xi32>
    %c16_i32_122 = arith.constant 16 : i32
    %287 = vector.broadcast %c16_i32_122 : i32 to vector<32x1xi32>
    %288 = arith.cmpi slt, %286, %287 : vector<32x1xi32>
    %289 = arith.andi %284, %288 : vector<32x1xi1>
    %cst_123 = arith.constant 0.000000e+00 : f32
    %290 = vector.shape_cast %289 : vector<32x1xi1> to vector<32x1xi1>
    %291 = vector.broadcast %290 : vector<32x1xi1> to vector<32x32xi1>
    %292 = vector.broadcast %cst_123 : f32 to vector<32x32xf32>
    %293 = arith.select %291, %280, %292 : vector<32x32xi1>, vector<32x32xf32>
    %294 = vector.extract_strided_slice %224 {offsets = [3, 0], sizes = [1, 32], strides = [1, 1]} : vector<9x32xf32> to vector<1x32xf32>
    %295 = vector.broadcast %294 : vector<1x32xf32> to vector<32x32xf32>
    %296 = arith.mulf %293, %295 : vector<32x32xf32>
    %297 = arith.addf %279, %296 : vector<32x32xf32>
    %298 = vector.extract_strided_slice %224 {offsets = [4, 0], sizes = [1, 32], strides = [1, 1]} : vector<9x32xf32> to vector<1x32xf32>
    %299 = vector.broadcast %298 : vector<1x32xf32> to vector<32x32xf32>
    %300 = arith.mulf %223, %299 : vector<32x32xf32>
    %301 = arith.addf %297, %300 : vector<32x32xf32>
    %c31_i32_124 = arith.constant 31 : i32
    %302 = tpu.dynamic_rotate %223 by %c31_i32_124 dim 0 : vector<32x32xf32>, i32 -> vector<32x32xf32>
    %c1_i32_125 = arith.constant 1 : i32
    %303 = vector.broadcast %c1_i32_125 : i32 to vector<32x1xi32>
    %304 = arith.addi %16, %303 : vector<32x1xi32>
    %c0_i32_126 = arith.constant 0 : i32
    %305 = vector.broadcast %c0_i32_126 : i32 to vector<32x1xi32>
    %306 = arith.cmpi sge, %304, %305 : vector<32x1xi32>
    %c1_i32_127 = arith.constant 1 : i32
    %307 = vector.broadcast %c1_i32_127 : i32 to vector<32x1xi32>
    %308 = arith.addi %16, %307 : vector<32x1xi32>
    %c16_i32_128 = arith.constant 16 : i32
    %309 = vector.broadcast %c16_i32_128 : i32 to vector<32x1xi32>
    %310 = arith.cmpi slt, %308, %309 : vector<32x1xi32>
    %311 = arith.andi %306, %310 : vector<32x1xi1>
    %cst_129 = arith.constant 0.000000e+00 : f32
    %312 = vector.shape_cast %311 : vector<32x1xi1> to vector<32x1xi1>
    %313 = vector.broadcast %312 : vector<32x1xi1> to vector<32x32xi1>
    %314 = vector.broadcast %cst_129 : f32 to vector<32x32xf32>
    %315 = arith.select %313, %302, %314 : vector<32x32xi1>, vector<32x32xf32>
    %316 = vector.extract_strided_slice %224 {offsets = [5, 0], sizes = [1, 32], strides = [1, 1]} : vector<9x32xf32> to vector<1x32xf32>
    %317 = vector.broadcast %316 : vector<1x32xf32> to vector<32x32xf32>
    %318 = arith.mulf %315, %317 : vector<32x32xf32>
    %319 = arith.addf %301, %318 : vector<32x32xf32>
    %c30_i32_130 = arith.constant 30 : i32
    %320 = tpu.dynamic_rotate %223 by %c30_i32_130 dim 0 : vector<32x32xf32>, i32 -> vector<32x32xf32>
    %c2_i32_131 = arith.constant 2 : i32
    %321 = vector.broadcast %c2_i32_131 : i32 to vector<32x1xi32>
    %322 = arith.addi %16, %321 : vector<32x1xi32>
    %c0_i32_132 = arith.constant 0 : i32
    %323 = vector.broadcast %c0_i32_132 : i32 to vector<32x1xi32>
    %324 = arith.cmpi sge, %322, %323 : vector<32x1xi32>
    %c2_i32_133 = arith.constant 2 : i32
    %325 = vector.broadcast %c2_i32_133 : i32 to vector<32x1xi32>
    %326 = arith.addi %16, %325 : vector<32x1xi32>
    %c16_i32_134 = arith.constant 16 : i32
    %327 = vector.broadcast %c16_i32_134 : i32 to vector<32x1xi32>
    %328 = arith.cmpi slt, %326, %327 : vector<32x1xi32>
    %329 = arith.andi %324, %328 : vector<32x1xi1>
    %cst_135 = arith.constant 0.000000e+00 : f32
    %330 = vector.shape_cast %329 : vector<32x1xi1> to vector<32x1xi1>
    %331 = vector.broadcast %330 : vector<32x1xi1> to vector<32x32xi1>
    %332 = vector.broadcast %cst_135 : f32 to vector<32x32xf32>
    %333 = arith.select %331, %320, %332 : vector<32x32xi1>, vector<32x32xf32>
    %334 = vector.extract_strided_slice %224 {offsets = [6, 0], sizes = [1, 32], strides = [1, 1]} : vector<9x32xf32> to vector<1x32xf32>
    %335 = vector.broadcast %334 : vector<1x32xf32> to vector<32x32xf32>
    %336 = arith.mulf %333, %335 : vector<32x32xf32>
    %337 = arith.addf %319, %336 : vector<32x32xf32>
    %c29_i32_136 = arith.constant 29 : i32
    %338 = tpu.dynamic_rotate %223 by %c29_i32_136 dim 0 : vector<32x32xf32>, i32 -> vector<32x32xf32>
    %c3_i32_137 = arith.constant 3 : i32
    %339 = vector.broadcast %c3_i32_137 : i32 to vector<32x1xi32>
    %340 = arith.addi %16, %339 : vector<32x1xi32>
    %c0_i32_138 = arith.constant 0 : i32
    %341 = vector.broadcast %c0_i32_138 : i32 to vector<32x1xi32>
    %342 = arith.cmpi sge, %340, %341 : vector<32x1xi32>
    %c3_i32_139 = arith.constant 3 : i32
    %343 = vector.broadcast %c3_i32_139 : i32 to vector<32x1xi32>
    %344 = arith.addi %16, %343 : vector<32x1xi32>
    %c16_i32_140 = arith.constant 16 : i32
    %345 = vector.broadcast %c16_i32_140 : i32 to vector<32x1xi32>
    %346 = arith.cmpi slt, %344, %345 : vector<32x1xi32>
    %347 = arith.andi %342, %346 : vector<32x1xi1>
    %cst_141 = arith.constant 0.000000e+00 : f32
    %348 = vector.shape_cast %347 : vector<32x1xi1> to vector<32x1xi1>
    %349 = vector.broadcast %348 : vector<32x1xi1> to vector<32x32xi1>
    %350 = vector.broadcast %cst_141 : f32 to vector<32x32xf32>
    %351 = arith.select %349, %338, %350 : vector<32x32xi1>, vector<32x32xf32>
    %352 = vector.extract_strided_slice %224 {offsets = [7, 0], sizes = [1, 32], strides = [1, 1]} : vector<9x32xf32> to vector<1x32xf32>
    %353 = vector.broadcast %352 : vector<1x32xf32> to vector<32x32xf32>
    %354 = arith.mulf %351, %353 : vector<32x32xf32>
    %355 = arith.addf %337, %354 : vector<32x32xf32>
    %c28_i32 = arith.constant 28 : i32
    %356 = tpu.dynamic_rotate %223 by %c28_i32 dim 0 : vector<32x32xf32>, i32 -> vector<32x32xf32>
    %c4_i32_142 = arith.constant 4 : i32
    %357 = vector.broadcast %c4_i32_142 : i32 to vector<32x1xi32>
    %358 = arith.addi %16, %357 : vector<32x1xi32>
    %c0_i32_143 = arith.constant 0 : i32
    %359 = vector.broadcast %c0_i32_143 : i32 to vector<32x1xi32>
    %360 = arith.cmpi sge, %358, %359 : vector<32x1xi32>
    %c4_i32_144 = arith.constant 4 : i32
    %361 = vector.broadcast %c4_i32_144 : i32 to vector<32x1xi32>
    %362 = arith.addi %16, %361 : vector<32x1xi32>
    %c16_i32_145 = arith.constant 16 : i32
    %363 = vector.broadcast %c16_i32_145 : i32 to vector<32x1xi32>
    %364 = arith.cmpi slt, %362, %363 : vector<32x1xi32>
    %365 = arith.andi %360, %364 : vector<32x1xi1>
    %cst_146 = arith.constant 0.000000e+00 : f32
    %366 = vector.shape_cast %365 : vector<32x1xi1> to vector<32x1xi1>
    %367 = vector.broadcast %366 : vector<32x1xi1> to vector<32x32xi1>
    %368 = vector.broadcast %cst_146 : f32 to vector<32x32xf32>
    %369 = arith.select %367, %356, %368 : vector<32x32xi1>, vector<32x32xf32>
    %370 = vector.extract_strided_slice %224 {offsets = [8, 0], sizes = [1, 32], strides = [1, 1]} : vector<9x32xf32> to vector<1x32xf32>
    %371 = vector.broadcast %370 : vector<1x32xf32> to vector<32x32xf32>
    %372 = arith.mulf %369, %371 : vector<32x32xf32>
    %373 = arith.addf %355, %372 : vector<32x32xf32>
    %c0_147 = arith.constant 0 : index
    %c0_148 = arith.constant 0 : index
    %374 = vector.load %arg8[%c0_147, %c0_148] : memref<1x32xf32, #tpu.memory_space<vmem>>, vector<1x32xf32>
    %375 = vector.broadcast %374 : vector<1x32xf32> to vector<32x32xf32>
    %376 = arith.mulf %373, %375 : vector<32x32xf32>
    %c0_149 = arith.constant 0 : index
    %c0_150 = arith.constant 0 : index
    %377 = vector.load %arg9[%c0_149, %c0_150] : memref<1x32xf32, #tpu.memory_space<vmem>>, vector<1x32xf32>
    %378 = vector.broadcast %377 : vector<1x32xf32> to vector<32x32xf32>
    %379 = arith.addf %376, %378 : vector<32x32xf32>
    %cst_151 = arith.constant 5.000000e-01 : f32
    %380 = vector.broadcast %cst_151 : f32 to vector<32x32xf32>
    %381 = arith.mulf %380, %379 : vector<32x32xf32>
    %cst_152 = arith.constant 0.707106769 : f32
    %382 = vector.broadcast %cst_152 : f32 to vector<32x32xf32>
    %383 = arith.mulf %379, %382 : vector<32x32xf32>
    %384 = math.erf %383 : vector<32x32xf32>
    %cst_153 = arith.constant 1.000000e+00 : f32
    %385 = vector.broadcast %cst_153 : f32 to vector<32x32xf32>
    %386 = arith.addf %385, %384 : vector<32x32xf32>
    %387 = arith.mulf %381, %386 : vector<32x32xf32>
    %388 = vector.shape_cast %387 : vector<32x32xf32> to vector<16x2x32xf32>
    %cst_154 = arith.constant dense<0xFF800000> : vector<16x32xf32>
    %389 = vector.multi_reduction <maximumf>, %388, %cst_154 [1] : vector<16x2x32xf32> to vector<16x32xf32>
    %c0_155 = arith.constant 0 : index
    %c0_156 = arith.constant 0 : index
    %390 = vector.load %arg10[%c0_155, %c0_156] : memref<32x32xf32, #tpu.memory_space<vmem>>, vector<32x32xf32>
    %cst_157 = arith.constant dense<0.000000e+00> : vector<16x32xf32>
    %391 = tpu.matmul %389, %390, %cst_157 {dimension_numbers = #tpu.dot_dimension_numbers<[1], [0], [0], [1], [0, 0, 1, 1], [], []>} : vector<16x32xf32>, vector<32x32xf32>, vector<16x32xf32> -> vector<16x32xf32>
    %c0_158 = arith.constant 0 : index
    %c0_159 = arith.constant 0 : index
    %392 = vector.load %arg11[%c0_158, %c0_159] : memref<1x32xf32, #tpu.memory_space<vmem>>, vector<1x32xf32>
    %393 = vector.broadcast %392 : vector<1x32xf32> to vector<16x32xf32>
    %394 = arith.addf %391, %393 : vector<16x32xf32>
    %c0_160 = arith.constant 0 : index
    %c0_161 = arith.constant 0 : index
    %395 = vector.load %arg12[%c0_160, %c0_161] : memref<32x32xf32, #tpu.memory_space<vmem>>, vector<32x32xf32>
    %cst_162 = arith.constant dense<0.000000e+00> : vector<16x32xf32>
    %396 = tpu.matmul %389, %395, %cst_162 {dimension_numbers = #tpu.dot_dimension_numbers<[1], [0], [0], [1], [0, 0, 1, 1], [], []>} : vector<16x32xf32>, vector<32x32xf32>, vector<16x32xf32> -> vector<16x32xf32>
    %c0_163 = arith.constant 0 : index
    %c0_164 = arith.constant 0 : index
    %397 = vector.load %arg13[%c0_163, %c0_164] : memref<1x32xf32, #tpu.memory_space<vmem>>, vector<1x32xf32>
    %398 = vector.broadcast %397 : vector<1x32xf32> to vector<16x32xf32>
    %399 = arith.addf %396, %398 : vector<16x32xf32>
    %c0_165 = arith.constant 0 : index
    %c0_166 = arith.constant 0 : index
    %400 = vector.load %arg14[%c0_165, %c0_166] : memref<32x32xf32, #tpu.memory_space<vmem>>, vector<32x32xf32>
    %cst_167 = arith.constant dense<0.000000e+00> : vector<16x32xf32>
    %401 = tpu.matmul %389, %400, %cst_167 {dimension_numbers = #tpu.dot_dimension_numbers<[1], [0], [0], [1], [0, 0, 1, 1], [], []>} : vector<16x32xf32>, vector<32x32xf32>, vector<16x32xf32> -> vector<16x32xf32>
    %c0_168 = arith.constant 0 : index
    %c0_169 = arith.constant 0 : index
    %402 = vector.load %arg15[%c0_168, %c0_169] : memref<1x32xf32, #tpu.memory_space<vmem>>, vector<1x32xf32>
    %403 = vector.broadcast %402 : vector<1x32xf32> to vector<16x32xf32>
    %404 = arith.addf %401, %403 : vector<16x32xf32>
    %405 = vector.shape_cast %394 : vector<16x32xf32> to vector<2x8x32xf32>
    %406 = vector.shape_cast %399 : vector<16x32xf32> to vector<2x8x32xf32>
    %407 = vector.shape_cast %404 : vector<16x32xf32> to vector<2x8x32xf32>
    %408 = tpu.iota {dimensions = array<i32: 2>} : vector<1x1x32xi32>
    %cst_170 = arith.constant 0.000000e+00 : f32
    %409 = vector.broadcast %cst_170 : f32 to vector<2x8x32xf32>
    %c0_i32_171 = arith.constant 0 : i32
    %410 = vector.broadcast %c0_i32_171 : i32 to vector<1x1x32xi32>
    %411 = arith.cmpi sge, %408, %410 : vector<1x1x32xi32>
    %c8_i32 = arith.constant 8 : i32
    %412 = vector.broadcast %c8_i32 : i32 to vector<1x1x32xi32>
    %413 = arith.cmpi slt, %408, %412 : vector<1x1x32xi32>
    %414 = arith.andi %411, %413 : vector<1x1x32xi1>
    %415 = arith.extui %414 : vector<1x1x32xi1> to vector<1x1x32xi32>
    %416 = arith.sitofp %415 : vector<1x1x32xi32> to vector<1x1x32xf32>
    %417 = vector.broadcast %416 : vector<1x1x32xf32> to vector<2x8x32xf32>
    %418 = arith.mulf %405, %417 : vector<2x8x32xf32>
    %cst_172 = arith.constant dense<0.000000e+00> : vector<2x8x8xf32>
    %419 = tpu.matmul %418, %406, %cst_172 {dimension_numbers = #tpu.dot_dimension_numbers<[2], [2], [1], [1], [0, 0, 0, 1, 1, 1], [0], [0]>} : vector<2x8x32xf32>, vector<2x8x32xf32>, vector<2x8x8xf32> -> vector<2x8x8xf32>
    %cst_173 = arith.constant 0.353553385 : f32
    %420 = vector.broadcast %cst_173 : f32 to vector<2x8x8xf32>
    %421 = arith.mulf %419, %420 : vector<2x8x8xf32>
    %cst_174 = arith.constant dense<0xFF800000> : vector<2x8xf32>
    %422 = vector.multi_reduction <maximumf>, %421, %cst_174 [2] : vector<2x8x8xf32> to vector<2x8xf32>
    %423 = vector.shape_cast %422 : vector<2x8xf32> to vector<2x8x1xf32>
    %424 = vector.broadcast %423 : vector<2x8x1xf32> to vector<2x8x8xf32>
    %425 = arith.subf %421, %424 : vector<2x8x8xf32>
    %426 = math.exp %425 : vector<2x8x8xf32>
    %cst_175 = arith.constant dense<0.000000e+00> : vector<2x8xf32>
    %427 = vector.multi_reduction <add>, %426, %cst_175 [2] : vector<2x8x8xf32> to vector<2x8xf32>
    %428 = vector.shape_cast %427 : vector<2x8xf32> to vector<2x8x1xf32>
    %429 = vector.broadcast %428 : vector<2x8x1xf32> to vector<2x8x8xf32>
    %430 = arith.divf %426, %429 : vector<2x8x8xf32>
    %431 = vector.broadcast %416 : vector<1x1x32xf32> to vector<2x8x32xf32>
    %432 = arith.mulf %407, %431 : vector<2x8x32xf32>
    %cst_176 = arith.constant dense<0.000000e+00> : vector<2x8x32xf32>
    %433 = tpu.matmul %430, %432, %cst_176 {dimension_numbers = #tpu.dot_dimension_numbers<[2], [1], [1], [2], [0, 0, 0, 1, 1, 2], [0], [0]>} : vector<2x8x8xf32>, vector<2x8x32xf32>, vector<2x8x32xf32> -> vector<2x8x32xf32>
    %434 = arith.addf %409, %433 : vector<2x8x32xf32>
    %c8_i32_177 = arith.constant 8 : i32
    %435 = vector.broadcast %c8_i32_177 : i32 to vector<1x1x32xi32>
    %436 = arith.cmpi sge, %408, %435 : vector<1x1x32xi32>
    %c16_i32_178 = arith.constant 16 : i32
    %437 = vector.broadcast %c16_i32_178 : i32 to vector<1x1x32xi32>
    %438 = arith.cmpi slt, %408, %437 : vector<1x1x32xi32>
    %439 = arith.andi %436, %438 : vector<1x1x32xi1>
    %440 = arith.extui %439 : vector<1x1x32xi1> to vector<1x1x32xi32>
    %441 = arith.sitofp %440 : vector<1x1x32xi32> to vector<1x1x32xf32>
    %442 = vector.broadcast %441 : vector<1x1x32xf32> to vector<2x8x32xf32>
    %443 = arith.mulf %405, %442 : vector<2x8x32xf32>
    %cst_179 = arith.constant dense<0.000000e+00> : vector<2x8x8xf32>
    %444 = tpu.matmul %443, %406, %cst_179 {dimension_numbers = #tpu.dot_dimension_numbers<[2], [2], [1], [1], [0, 0, 0, 1, 1, 1], [0], [0]>} : vector<2x8x32xf32>, vector<2x8x32xf32>, vector<2x8x8xf32> -> vector<2x8x8xf32>
    %cst_180 = arith.constant 0.353553385 : f32
    %445 = vector.broadcast %cst_180 : f32 to vector<2x8x8xf32>
    %446 = arith.mulf %444, %445 : vector<2x8x8xf32>
    %cst_181 = arith.constant dense<0xFF800000> : vector<2x8xf32>
    %447 = vector.multi_reduction <maximumf>, %446, %cst_181 [2] : vector<2x8x8xf32> to vector<2x8xf32>
    %448 = vector.shape_cast %447 : vector<2x8xf32> to vector<2x8x1xf32>
    %449 = vector.broadcast %448 : vector<2x8x1xf32> to vector<2x8x8xf32>
    %450 = arith.subf %446, %449 : vector<2x8x8xf32>
    %451 = math.exp %450 : vector<2x8x8xf32>
    %cst_182 = arith.constant dense<0.000000e+00> : vector<2x8xf32>
    %452 = vector.multi_reduction <add>, %451, %cst_182 [2] : vector<2x8x8xf32> to vector<2x8xf32>
    %453 = vector.shape_cast %452 : vector<2x8xf32> to vector<2x8x1xf32>
    %454 = vector.broadcast %453 : vector<2x8x1xf32> to vector<2x8x8xf32>
    %455 = arith.divf %451, %454 : vector<2x8x8xf32>
    %456 = vector.broadcast %441 : vector<1x1x32xf32> to vector<2x8x32xf32>
    %457 = arith.mulf %407, %456 : vector<2x8x32xf32>
    %cst_183 = arith.constant dense<0.000000e+00> : vector<2x8x32xf32>
    %458 = tpu.matmul %455, %457, %cst_183 {dimension_numbers = #tpu.dot_dimension_numbers<[2], [1], [1], [2], [0, 0, 0, 1, 1, 2], [0], [0]>} : vector<2x8x8xf32>, vector<2x8x32xf32>, vector<2x8x32xf32> -> vector<2x8x32xf32>
    %459 = arith.addf %434, %458 : vector<2x8x32xf32>
    %c16_i32_184 = arith.constant 16 : i32
    %460 = vector.broadcast %c16_i32_184 : i32 to vector<1x1x32xi32>
    %461 = arith.cmpi sge, %408, %460 : vector<1x1x32xi32>
    %c24_i32 = arith.constant 24 : i32
    %462 = vector.broadcast %c24_i32 : i32 to vector<1x1x32xi32>
    %463 = arith.cmpi slt, %408, %462 : vector<1x1x32xi32>
    %464 = arith.andi %461, %463 : vector<1x1x32xi1>
    %465 = arith.extui %464 : vector<1x1x32xi1> to vector<1x1x32xi32>
    %466 = arith.sitofp %465 : vector<1x1x32xi32> to vector<1x1x32xf32>
    %467 = vector.broadcast %466 : vector<1x1x32xf32> to vector<2x8x32xf32>
    %468 = arith.mulf %405, %467 : vector<2x8x32xf32>
    %cst_185 = arith.constant dense<0.000000e+00> : vector<2x8x8xf32>
    %469 = tpu.matmul %468, %406, %cst_185 {dimension_numbers = #tpu.dot_dimension_numbers<[2], [2], [1], [1], [0, 0, 0, 1, 1, 1], [0], [0]>} : vector<2x8x32xf32>, vector<2x8x32xf32>, vector<2x8x8xf32> -> vector<2x8x8xf32>
    %cst_186 = arith.constant 0.353553385 : f32
    %470 = vector.broadcast %cst_186 : f32 to vector<2x8x8xf32>
    %471 = arith.mulf %469, %470 : vector<2x8x8xf32>
    %cst_187 = arith.constant dense<0xFF800000> : vector<2x8xf32>
    %472 = vector.multi_reduction <maximumf>, %471, %cst_187 [2] : vector<2x8x8xf32> to vector<2x8xf32>
    %473 = vector.shape_cast %472 : vector<2x8xf32> to vector<2x8x1xf32>
    %474 = vector.broadcast %473 : vector<2x8x1xf32> to vector<2x8x8xf32>
    %475 = arith.subf %471, %474 : vector<2x8x8xf32>
    %476 = math.exp %475 : vector<2x8x8xf32>
    %cst_188 = arith.constant dense<0.000000e+00> : vector<2x8xf32>
    %477 = vector.multi_reduction <add>, %476, %cst_188 [2] : vector<2x8x8xf32> to vector<2x8xf32>
    %478 = vector.shape_cast %477 : vector<2x8xf32> to vector<2x8x1xf32>
    %479 = vector.broadcast %478 : vector<2x8x1xf32> to vector<2x8x8xf32>
    %480 = arith.divf %476, %479 : vector<2x8x8xf32>
    %481 = vector.broadcast %466 : vector<1x1x32xf32> to vector<2x8x32xf32>
    %482 = arith.mulf %407, %481 : vector<2x8x32xf32>
    %cst_189 = arith.constant dense<0.000000e+00> : vector<2x8x32xf32>
    %483 = tpu.matmul %480, %482, %cst_189 {dimension_numbers = #tpu.dot_dimension_numbers<[2], [1], [1], [2], [0, 0, 0, 1, 1, 2], [0], [0]>} : vector<2x8x8xf32>, vector<2x8x32xf32>, vector<2x8x32xf32> -> vector<2x8x32xf32>
    %484 = arith.addf %459, %483 : vector<2x8x32xf32>
    %c24_i32_190 = arith.constant 24 : i32
    %485 = vector.broadcast %c24_i32_190 : i32 to vector<1x1x32xi32>
    %486 = arith.cmpi sge, %408, %485 : vector<1x1x32xi32>
    %c32_i32 = arith.constant 32 : i32
    %487 = vector.broadcast %c32_i32 : i32 to vector<1x1x32xi32>
    %488 = arith.cmpi slt, %408, %487 : vector<1x1x32xi32>
    %489 = arith.andi %486, %488 : vector<1x1x32xi1>
    %490 = arith.extui %489 : vector<1x1x32xi1> to vector<1x1x32xi32>
    %491 = arith.sitofp %490 : vector<1x1x32xi32> to vector<1x1x32xf32>
    %492 = vector.broadcast %491 : vector<1x1x32xf32> to vector<2x8x32xf32>
    %493 = arith.mulf %405, %492 : vector<2x8x32xf32>
    %cst_191 = arith.constant dense<0.000000e+00> : vector<2x8x8xf32>
    %494 = tpu.matmul %493, %406, %cst_191 {dimension_numbers = #tpu.dot_dimension_numbers<[2], [2], [1], [1], [0, 0, 0, 1, 1, 1], [0], [0]>} : vector<2x8x32xf32>, vector<2x8x32xf32>, vector<2x8x8xf32> -> vector<2x8x8xf32>
    %cst_192 = arith.constant 0.353553385 : f32
    %495 = vector.broadcast %cst_192 : f32 to vector<2x8x8xf32>
    %496 = arith.mulf %494, %495 : vector<2x8x8xf32>
    %cst_193 = arith.constant dense<0xFF800000> : vector<2x8xf32>
    %497 = vector.multi_reduction <maximumf>, %496, %cst_193 [2] : vector<2x8x8xf32> to vector<2x8xf32>
    %498 = vector.shape_cast %497 : vector<2x8xf32> to vector<2x8x1xf32>
    %499 = vector.broadcast %498 : vector<2x8x1xf32> to vector<2x8x8xf32>
    %500 = arith.subf %496, %499 : vector<2x8x8xf32>
    %501 = math.exp %500 : vector<2x8x8xf32>
    %cst_194 = arith.constant dense<0.000000e+00> : vector<2x8xf32>
    %502 = vector.multi_reduction <add>, %501, %cst_194 [2] : vector<2x8x8xf32> to vector<2x8xf32>
    %503 = vector.shape_cast %502 : vector<2x8xf32> to vector<2x8x1xf32>
    %504 = vector.broadcast %503 : vector<2x8x1xf32> to vector<2x8x8xf32>
    %505 = arith.divf %501, %504 : vector<2x8x8xf32>
    %506 = vector.broadcast %491 : vector<1x1x32xf32> to vector<2x8x32xf32>
    %507 = arith.mulf %407, %506 : vector<2x8x32xf32>
    %cst_195 = arith.constant dense<0.000000e+00> : vector<2x8x32xf32>
    %508 = tpu.matmul %505, %507, %cst_195 {dimension_numbers = #tpu.dot_dimension_numbers<[2], [1], [1], [2], [0, 0, 0, 1, 1, 2], [0], [0]>} : vector<2x8x8xf32>, vector<2x8x32xf32>, vector<2x8x32xf32> -> vector<2x8x32xf32>
    %509 = arith.addf %484, %508 : vector<2x8x32xf32>
    %510 = vector.shape_cast %509 : vector<2x8x32xf32> to vector<16x32xf32>
    %c0_196 = arith.constant 0 : index
    %c0_197 = arith.constant 0 : index
    %511 = vector.load %arg16[%c0_196, %c0_197] : memref<32x32xf32, #tpu.memory_space<vmem>>, vector<32x32xf32>
    %cst_198 = arith.constant dense<0.000000e+00> : vector<16x32xf32>
    %512 = tpu.matmul %510, %511, %cst_198 {dimension_numbers = #tpu.dot_dimension_numbers<[1], [0], [0], [1], [0, 0, 1, 1], [], []>} : vector<16x32xf32>, vector<32x32xf32>, vector<16x32xf32> -> vector<16x32xf32>
    %c0_199 = arith.constant 0 : index
    %c0_200 = arith.constant 0 : index
    %513 = vector.load %arg17[%c0_199, %c0_200] : memref<1x32xf32, #tpu.memory_space<vmem>>, vector<1x32xf32>
    %514 = vector.broadcast %513 : vector<1x32xf32> to vector<16x32xf32>
    %515 = arith.addf %512, %514 : vector<16x32xf32>
    %516 = arith.addf %389, %515 : vector<16x32xf32>
    %cst_201 = arith.constant dense<0.000000e+00> : vector<16xf32>
    %517 = vector.multi_reduction <add>, %516, %cst_201 [1] : vector<16x32xf32> to vector<16xf32>
    %518 = vector.shape_cast %517 : vector<16xf32> to vector<16x1xf32>
    %cst_202 = arith.constant 3.200000e+01 : f32
    %519 = vector.broadcast %cst_202 : f32 to vector<16x1xf32>
    %520 = arith.divf %518, %519 : vector<16x1xf32>
    %521 = vector.broadcast %520 : vector<16x1xf32> to vector<16x32xf32>
    %522 = arith.subf %516, %521 : vector<16x32xf32>
    %523 = arith.mulf %522, %522 : vector<16x32xf32>
    %cst_203 = arith.constant dense<0.000000e+00> : vector<16xf32>
    %524 = vector.multi_reduction <add>, %523, %cst_203 [1] : vector<16x32xf32> to vector<16xf32>
    %525 = vector.shape_cast %524 : vector<16xf32> to vector<16x1xf32>
    %cst_204 = arith.constant 3.200000e+01 : f32
    %526 = vector.broadcast %cst_204 : f32 to vector<16x1xf32>
    %527 = arith.divf %525, %526 : vector<16x1xf32>
    %cst_205 = arith.constant 9.99999974E-6 : f32
    %528 = vector.broadcast %cst_205 : f32 to vector<16x1xf32>
    %529 = arith.addf %527, %528 : vector<16x1xf32>
    %530 = math.rsqrt %529 : vector<16x1xf32>
    %531 = vector.broadcast %530 : vector<16x1xf32> to vector<16x32xf32>
    %532 = arith.mulf %522, %531 : vector<16x32xf32>
    %c0_206 = arith.constant 0 : index
    %c0_207 = arith.constant 0 : index
    %533 = vector.load %arg18[%c0_206, %c0_207] : memref<1x32xf32, #tpu.memory_space<vmem>>, vector<1x32xf32>
    %534 = vector.broadcast %533 : vector<1x32xf32> to vector<16x32xf32>
    %535 = arith.mulf %532, %534 : vector<16x32xf32>
    %c0_208 = arith.constant 0 : index
    %c0_209 = arith.constant 0 : index
    %536 = vector.load %arg19[%c0_208, %c0_209] : memref<1x32xf32, #tpu.memory_space<vmem>>, vector<1x32xf32>
    %537 = vector.broadcast %536 : vector<1x32xf32> to vector<16x32xf32>
    %538 = arith.addf %535, %537 : vector<16x32xf32>
    %cst_210 = arith.constant 0.000000e+00 : f32
    %539 = vector.broadcast %cst_210 : f32 to vector<16x96xf32>
    %540 = tpu.concatenate %538, %539 in 1 : vector<16x32xf32>, vector<16x96xf32> -> vector<16x128xf32>
    %c0_211 = arith.constant 0 : index
    %c0_212 = arith.constant 0 : index
    %541 = vector.load %arg20[%c0_211, %c0_212] : memref<16x128xf32, #tpu.memory_space<vmem>>, vector<16x128xf32>
    tpu.vector_store %arg20[%c0_211, %c0_212], %540 {strides = array<i32>} : memref<16x128xf32, #tpu.memory_space<vmem>>, vector<16x128xf32>,
    return
  }
}

</mosaic_0001>

<llo_original>
// kernel: tpu_custom_call.1
$region0: #{tpu_custom_call.1}
  #allocation0 [shape = 'u32[]', space=smem, size = 0x4, offset = 0x4, fixed_abs, tag = 'smem constant byte address 0x4 - core index']
  #allocation1 [shape = 'u32[144,128]{1,0:T(1,128)}', space=vmem, size = 0x12000, scoped, tag = 'internal scratch']
  %s0 = inlined_call_operand.vmem [shape: f32[32,8], index: 0, kind: input, shape index: {}]
  %s1 = inlined_call_operand.vmem [shape: f32[40,16], index: 1, kind: input, shape index: {}]
  %s2 = inlined_call_operand.vmem [shape: f32[1,16], index: 2, kind: input, shape index: {}]
  %s3 = inlined_call_operand.vmem [shape: f32[1,16], index: 3, kind: input, shape index: {}]
  %s4 = inlined_call_operand.vmem [shape: f32[112,32], index: 4, kind: input, shape index: {}]
  %s5 = inlined_call_operand.vmem [shape: f32[1,32], index: 5, kind: input, shape index: {}]
  %s6 = inlined_call_operand.vmem [shape: f32[1,32], index: 6, kind: input, shape index: {}]
  %s7 = inlined_call_operand.vmem [shape: f32[9,32], index: 7, kind: input, shape index: {}]
  %s8 = inlined_call_operand.vmem [shape: f32[1,32], index: 8, kind: input, shape index: {}]
  %s9 = inlined_call_operand.vmem [shape: f32[1,32], index: 9, kind: input, shape index: {}]
  %s10 = inlined_call_operand.vmem [shape: f32[32,32], index: 10, kind: input, shape index: {}]
  %s11 = inlined_call_operand.vmem [shape: f32[1,32], index: 11, kind: input, shape index: {}]
  %s12 = inlined_call_operand.vmem [shape: f32[32,32], index: 12, kind: input, shape index: {}]
  %s13 = inlined_call_operand.vmem [shape: f32[1,32], index: 13, kind: input, shape index: {}]
  %s14 = inlined_call_operand.vmem [shape: f32[32,32], index: 14, kind: input, shape index: {}]
  %s15 = inlined_call_operand.vmem [shape: f32[1,32], index: 15, kind: input, shape index: {}]
  %s16 = inlined_call_operand.vmem [shape: f32[32,32], index: 16, kind: input, shape index: {}]
  %s17 = inlined_call_operand.vmem [shape: f32[1,32], index: 17, kind: input, shape index: {}]
  %s18 = inlined_call_operand.vmem [shape: f32[1,32], index: 18, kind: input, shape index: {}]
  %s19 = inlined_call_operand.vmem [shape: f32[1,32], index: 19, kind: input, shape index: {}]
  %s20 = inlined_call_operand.hbm [shape: f32[16,128], index: 20, kind: output, shape index: {}]
  %s21 = sld [smem:[#allocation0]]
  $region90: #{tpu_custom_call.1} parent=0
    _
  %s23 = ssub.s32 1, %s21
  %s24 = scalar_select 0, %s23, %s21
  $region1: #{tpu_custom_call.1} parent=0
    #allocation2 [shape = 'u8[8192]{0}', space=vmem, size = 0x2000, scoped, tag = 'output window, operand 0, single buffered']
    #allocation3 [shape = 's32[1]{0}', space=sflag, size = 0x4, scoped, tag = 'scoped memory for tpu_custom_call.1']
    %25 = vsyncpa [#allocation3], 0
    // Predicated region
    $region2: #{tpu_custom_call.1} parent=1 // pred_check
      _
    $region3: #{tpu_custom_call.1} parent=1 // pred_check_branch
      %27 = sbr.rel (0) target = $region5
    $region4: #{tpu_custom_call.1} parent=1 // pred_region
      _
    $region5: #{tpu_custom_call.1} parent=1 // pred_fallthru
      _
    // Predicated region
    $region6: #{tpu_custom_call.1} parent=1 // pred_check
      _
    $region7: #{tpu_custom_call.1} parent=1 // pred_check_branch
      %29 = sbr.rel (0) target = $region9
    $region8: #{tpu_custom_call.1} parent=1 // pred_region
      _
    $region9: #{tpu_custom_call.1} parent=1 // pred_fallthru
      _
    // Predicated region
    $region10: #{tpu_custom_call.1} parent=1 // pred_check
      _
    $region11: #{tpu_custom_call.1} parent=1 // pred_check_branch
      %31 = sbr.rel (0) target = $region13
    $region12: #{tpu_custom_call.1} parent=1 // pred_region
      _
    $region13: #{tpu_custom_call.1} parent=1 // pred_fallthru
      _
    // Predicated region
    $region14: #{tpu_custom_call.1} parent=1 // pred_check
      _
    $region15: #{tpu_custom_call.1} parent=1 // pred_check_branch
      %33 = sbr.rel (0) target = $region17
    $region16: #{tpu_custom_call.1} parent=1 // pred_region
      _
    $region17: #{tpu_custom_call.1} parent=1 // pred_fallthru
      _
    // Predicated region
    $region18: #{tpu_custom_call.1} parent=1 // pred_check
      _
    $region19: #{tpu_custom_call.1} parent=1 // pred_check_branch
      %35 = sbr.rel (0) target = $region21
    $region20: #{tpu_custom_call.1} parent=1 // pred_region
      _
    $region21: #{tpu_custom_call.1} parent=1 // pred_fallthru
      _
    // Predicated region
    $region22: #{tpu_custom_call.1} parent=1 // pred_check
      _
    $region23: #{tpu_custom_call.1} parent=1 // pred_check_branch
      %37 = sbr.rel (0) target = $region25
    $region24: #{tpu_custom_call.1} parent=1 // pred_region
      _
    $region25: #{tpu_custom_call.1} parent=1 // pred_fallthru
      _
    // Predicated region
    $region26: #{tpu_custom_call.1} parent=1 // pred_check
      _
    $region27: #{tpu_custom_call.1} parent=1 // pred_check_branch
      %39 = sbr.rel (0) target = $region29
    $region28: #{tpu_custom_call.1} parent=1 // pred_region
      _
    $region29: #{tpu_custom_call.1} parent=1 // pred_fallthru
      _
    // Predicated region
    $region30: #{tpu_custom_call.1} parent=1 // pred_check
      _
    $region31: #{tpu_custom_call.1} parent=1 // pred_check_branch
      %41 = sbr.rel (0) target = $region33
    $region32: #{tpu_custom_call.1} parent=1 // pred_region
      _
    $region33: #{tpu_custom_call.1} parent=1 // pred_fallthru
      _
    // Predicated region
    $region34: #{tpu_custom_call.1} parent=1 // pred_check
      _
    $region35: #{tpu_custom_call.1} parent=1 // pred_check_branch
      %43 = sbr.rel (0) target = $region37
    $region36: #{tpu_custom_call.1} parent=1 // pred_region
      _
    $region37: #{tpu_custom_call.1} parent=1 // pred_fallthru
      _
    // Predicated region
    $region38: #{tpu_custom_call.1} parent=1 // pred_check
      _
    $region39: #{tpu_custom_call.1} parent=1 // pred_check_branch
      %45 = sbr.rel (0) target = $region41
    $region40: #{tpu_custom_call.1} parent=1 // pred_region
      _
    $region41: #{tpu_custom_call.1} parent=1 // pred_fallthru
      _
    // Predicated region
    $region42: #{tpu_custom_call.1} parent=1 // pred_check
      _
    $region43: #{tpu_custom_call.1} parent=1 // pred_check_branch
      %47 = sbr.rel (0) target = $region45
    $region44: #{tpu_custom_call.1} parent=1 // pred_region
      _
    $region45: #{tpu_custom_call.1} parent=1 // pred_fallthru
      _
    // Predicated region
    $region46: #{tpu_custom_call.1} parent=1 // pred_check
      _
    $region47: #{tpu_custom_call.1} parent=1 // pred_check_branch
      %49 = sbr.rel (0) target = $region49
    $region48: #{tpu_custom_call.1} parent=1 // pred_region
      _
    $region49: #{tpu_custom_call.1} parent=1 // pred_fallthru
      _
    // Predicated region
    $region50: #{tpu_custom_call.1} parent=1 // pred_check
      _
    $region51: #{tpu_custom_call.1} parent=1 // pred_check_branch
      %51 = sbr.rel (0) target = $region53
    $region52: #{tpu_custom_call.1} parent=1 // pred_region
      _
    $region53: #{tpu_custom_call.1} parent=1 // pred_fallthru
      _
    // Predicated region
    $region54: #{tpu_custom_call.1} parent=1 // pred_check
      _
    $region55: #{tpu_custom_call.1} parent=1 // pred_check_branch
      %53 = sbr.rel (0) target = $region57
    $region56: #{tpu_custom_call.1} parent=1 // pred_region
      _
    $region57: #{tpu_custom_call.1} parent=1 // pred_fallthru
      _
    // Predicated region
    $region58: #{tpu_custom_call.1} parent=1 // pred_check
      _
    $region59: #{tpu_custom_call.1} parent=1 // pred_check_branch
      %55 = sbr.rel (0) target = $region61
    $region60: #{tpu_custom_call.1} parent=1 // pred_region
      _
    $region61: #{tpu_custom_call.1} parent=1 // pred_fallthru
      _
    // Predicated region
    $region62: #{tpu_custom_call.1} parent=1 // pred_check
      _
    $region63: #{tpu_custom_call.1} parent=1 // pred_check_branch
      %57 = sbr.rel (0) target = $region65
    $region64: #{tpu_custom_call.1} parent=1 // pred_region
      _
    $region65: #{tpu_custom_call.1} parent=1 // pred_fallthru
      _
    // Predicated region
    $region66: #{tpu_custom_call.1} parent=1 // pred_check
      _
    $region67: #{tpu_custom_call.1} parent=1 // pred_check_branch
      %59 = sbr.rel (0) target = $region69
    $region68: #{tpu_custom_call.1} parent=1 // pred_region
      _
    $region69: #{tpu_custom_call.1} parent=1 // pred_fallthru
      _
    // Predicated region
    $region70: #{tpu_custom_call.1} parent=1 // pred_check
      _
    $region71: #{tpu_custom_call.1} parent=1 // pred_check_branch
      %61 = sbr.rel (0) target = $region73
    $region72: #{tpu_custom_call.1} parent=1 // pred_region
      _
    $region73: #{tpu_custom_call.1} parent=1 // pred_fallthru
      _
    // Predicated region
    $region74: #{tpu_custom_call.1} parent=1 // pred_check
      _
    $region75: #{tpu_custom_call.1} parent=1 // pred_check_branch
      %63 = sbr.rel (0) target = $region77
    $region76: #{tpu_custom_call.1} parent=1 // pred_region
      _
    $region77: #{tpu_custom_call.1} parent=1 // pred_fallthru
      _
    // Predicated region
    $region78: #{tpu_custom_call.1} parent=1 // pred_check
      _
    $region79: #{tpu_custom_call.1} parent=1 // pred_check_branch
      %65 = sbr.rel (0) target = $region81
    $region80: #{tpu_custom_call.1} parent=1 // pred_region
      _
    $region81: #{tpu_custom_call.1} parent=1 // pred_fallthru
      _
    %v66 = vlaneseq
    %v67 = vshrl.u32 %v66, 7
    %v68 = vadd.s32 %v67, 8
    %v69 = vadd.s32 %v67, 16
    %v70 = vadd.s32 %v67, 24
    %vm71 = vcmp.lt.s32.totalorder %v67, 0
    %v72 = vsub.s32 0, %v67
    %v73 = vsel %vm71, %v72, %v67
    %v74 = vshrl.u32 %v73, 4
    %v75 = vand.u32 %v73, 15
    %v76 = vsub.s32 0, %v75
    %v77 = vsel %vm71, %v76, %v75
    %vm78 = vcmp.lt.s32.totalorder %v68, 0
    %v79 = vsub.s32 0, %v68
    %v80 = vsel %vm78, %v79, %v68
    %v81 = vshrl.u32 %v80, 4
    %v82 = vand.u32 %v80, 15
    %v83 = vsub.s32 0, %v82
    %v84 = vsel %vm78, %v83, %v82
    %vm85 = vcmp.lt.s32.totalorder %v69, 0
    %v86 = vsub.s32 0, %v69
    %v87 = vsel %vm85, %v86, %v69
    %v88 = vshrl.u32 %v87, 4
    %v89 = vand.u32 %v87, 15
    %v90 = vsub.s32 0, %v89
    %v91 = vsel %vm85, %v90, %v89
    %vm92 = vcmp.lt.s32.totalorder %v70, 0
    %v93 = vsub.s32 0, %v70
    %v94 = vsel %vm92, %v93, %v70
    %v95 = vshrl.u32 %v94, 4
    %v96 = vand.u32 %v94, 15
    %v97 = vsub.s32 0, %v96
    %v98 = vsel %vm92, %v97, %v96
    %vm99 = vcmp.ne.s32.totalorder %v77, 0
    %vm100 = vcmp.ne.s32.totalorder %v84, 0
    %vm101 = vcmp.ne.s32.totalorder %v91, 0
    %vm102 = vcmp.ne.s32.totalorder %v98, 0
    %vm103 = vcmp.lt.s32.totalorder %v77, 0
    %vm104 = vcmp.lt.s32.totalorder %v84, 0
    %vm105 = vcmp.lt.s32.totalorder %v91, 0
    %vm106 = vcmp.lt.s32.totalorder %v98, 0
    %vm107 = vmand %vm103, %vm99
    %vm108 = vmand %vm104, %vm100
    %vm109 = vmand %vm105, %vm101
    %vm110 = vmand %vm106, %vm102
    %v111 = vadd.s32 %v77, 16
    %v112 = vadd.s32 %v84, 16
    %v113 = vadd.s32 %v91, 16
    %v114 = vadd.s32 %v98, 16
    %v115 = vsel %vm107, %v111, %v77
    %v116 = vsel %vm108, %v112, %v84
    %v117 = vsel %vm109, %v113, %v91
    %v118 = vsel %vm110, %v114, %v98
    %v119 = vld [vmem:[%s0] sm:$0xff]
    %v120 = vld [vmem:[%s0 + $0x8] sm:$0xff]
    %v121 = vld [vmem:[%s0 + $0x10] sm:$0xff]
    %v122 = vld [vmem:[%s0 + $0x18] sm:$0xff]
    %v123 = vrot.slane %v119, 6
    %v124 = vrot.slane %v120, 6
    %v125 = vrot.slane %v121, 6
    %v126 = vrot.slane %v122, 6
    %vm127 = vcmp.lt.s32.totalorder %v67, 2
    %v128 = vsel %vm127, %v125, %v126
    %v129 = vsel %vm127, %v124, %v125
    %v130 = vsel %vm127, %v123, %v124
    %v131 = vsel %vm127, %v126, %v123
    %v132 = vadd.s32 %v115, 4294967294
    %v133 = vadd.s32 %v116, 4294967294
    %v134 = vadd.s32 %v117, 4294967294
    %v135 = vadd.s32 %v118, 4294967294
    %vm136 = vcmp.ge.s32.totalorder %v132, 0
    %vm137 = vcmp.ge.s32.totalorder %v133, 0
    %vm138 = vcmp.ge.s32.totalorder %v134, 0
    %vm139 = vcmp.ge.s32.totalorder %v135, 0
    %vm140 = vcmp.lt.s32.totalorder %v132, 16
    %vm141 = vcmp.lt.s32.totalorder %v133, 16
    %vm142 = vcmp.lt.s32.totalorder %v134, 16
    %vm143 = vcmp.lt.s32.totalorder %v135, 16
    %vm144 = vmand %vm136, %vm140
    %vm145 = vmand %vm137, %vm141
    %vm146 = vmand %vm138, %vm142
    %vm147 = vmand %vm139, %vm143
    %v148 = vsel %vm144, 1, 0
    %v149 = vsel %vm145, 1, 0
    %v150 = vsel %vm146, 1, 0
    %v151 = vsel %vm147, 1, 0
    %vm152 = vcmp.eq.s32.totalorder %v148, 1
    %vm153 = vcmp.eq.s32.totalorder %v149, 1
    %vm154 = vcmp.eq.s32.totalorder %v150, 1
    %vm155 = vcmp.eq.s32.totalorder %v151, 1
    %v156 = vsel %vm152, %v131, 0.0
    %v157 = vsel %vm153, %v130, 0.0
    %v158 = vsel %vm154, %v129, 0.0
    %v159 = vsel %vm155, %v128, 0.0
    %v160 = vld [vmem:[%s1] sm:$0xff]
    %v161 = vrot.slane %v119, 7
    %v162 = vrot.slane %v120, 7
    %v163 = vrot.slane %v121, 7
    %v164 = vrot.slane %v122, 7
    %vm165 = vcmp.lt.s32.totalorder %v67, 1
    %v166 = vsel %vm165, %v163, %v164
    %v167 = vsel %vm165, %v162, %v163
    %v168 = vsel %vm165, %v161, %v162
    %v169 = vsel %vm165, %v164, %v161
    %v170 = vadd.s32 %v115, 4294967295
    %v171 = vadd.s32 %v116, 4294967295
    %v172 = vadd.s32 %v117, 4294967295
    %v173 = vadd.s32 %v118, 4294967295
    %vm174 = vcmp.ge.s32.totalorder %v170, 0
    %vm175 = vcmp.ge.s32.totalorder %v171, 0
    %vm176 = vcmp.ge.s32.totalorder %v172, 0
    %vm177 = vcmp.ge.s32.totalorder %v173, 0
    %vm178 = vcmp.lt.s32.totalorder %v170, 16
    %vm179 = vcmp.lt.s32.totalorder %v171, 16
    %vm180 = vcmp.lt.s32.totalorder %v172, 16
    %vm181 = vcmp.lt.s32.totalorder %v173, 16
    %vm182 = vmand %vm174, %vm178
    %vm183 = vmand %vm175, %vm179
    %vm184 = vmand %vm176, %vm180
    %vm185 = vmand %vm177, %vm181
    %v186 = vsel %vm182, 1, 0
    %v187 = vsel %vm183, 1, 0
    %v188 = vsel %vm184, 1, 0
    %v189 = vsel %vm185, 1, 0
    %vm190 = vcmp.eq.s32.totalorder %v186, 1
    %vm191 = vcmp.eq.s32.totalorder %v187, 1
    %vm192 = vcmp.eq.s32.totalorder %v188, 1
    %vm193 = vcmp.eq.s32.totalorder %v189, 1
    %v194 = vsel %vm190, %v169, 0.0
    %v195 = vsel %vm191, %v168, 0.0
    %v196 = vsel %vm192, %v167, 0.0
    %v197 = vsel %vm193, %v166, 0.0
    %v198 = vld [vmem:[%s1 + $0x8] sm:$0xff]
    %vm199 = vcmask 64512
    %v201 = vsel %vm199, %v194, 0
    %v204 = vsel %vm199, %v195, 0
    %v207 = vsel %vm199, %v196, 0
    %v210 = vsel %vm199, %v197, 0
    %212 = vmatprep.subr.mxu0 0.0
    %213 = vmatpush1.msra.mxu0 0.0
    %214 = vmatprep.subr.mxu0 0.0
    %215 = vmatpush1.msra.mxu0 0.0
    %216 = vmatprep.subr.mxu0 0.0
    %217 = vmatpush1.msra.mxu0 0.0
    %218 = vmatprep.subr.mxu0 0.0
    %219 = vmatpush1.msra.mxu0 0.0
    %220 = vmatprep.subr.mxu0 0.0
    %221 = vmatpush1.msra.mxu0 0.0
    %222 = vmatprep.subr.mxu0 0.0
    %223 = vmatpush1.msra.mxu0 0.0
    %224 = vmatprep.subr.mxu0 0.0
    %225 = vmatpush1.msra.mxu0 0.0
    %226 = vmatprep.subr.mxu0 0.0
    %227 = vmatpush1.msra.mxu0 0.0
    %228 = vmatprep.subr.mxu0 0.0
    %229 = vmatpush1.msra.mxu0 0.0
    %230 = vmatprep.subr.mxu0 0.0
    %231 = vmatpush1.msra.mxu0 0.0
    %232 = vmatprep.subr.mxu0 0.0
    %233 = vmatpush1.msra.mxu0 0.0
    %234 = vmatprep.subr.mxu0 0.0
    %235 = vmatpush1.msra.mxu0 0.0
    %236 = vmatprep.subr.mxu0 0.0
    %237 = vmatpush1.msra.mxu0 0.0
    %238 = vmatprep.subr.mxu0 0.0
    %239 = vmatpush1.msra.mxu0 0.0
    %240 = vmatprep.subr.mxu0 0.0
    %241 = vmatpush1.msra.mxu0 0.0
    %242 = vmatprep.subr.mxu0 0.0
    %243 = vmatpush1.msra.mxu0 %v198
    %244 = vmatprep.subr.mxu0 0.0
    %245 = vmatpush2.msra.mxu0 0.0
    %246 = vmatprep.subr.mxu0 0.0
    %247 = vmatpush2.msra.mxu0 0.0
    %248 = vmatprep.subr.mxu0 0.0
    %249 = vmatpush2.msra.mxu0 0.0
    %250 = vmatprep.subr.mxu0 0.0
    %251 = vmatpush2.msra.mxu0 0.0
    %252 = vmatprep.subr.mxu0 0.0
    %253 = vmatpush2.msra.mxu0 0.0
    %254 = vmatprep.subr.mxu0 0.0
    %255 = vmatpush2.msra.mxu0 0.0
    %256 = vmatprep.subr.mxu0 0.0
    %257 = vmatpush2.msra.mxu0 0.0
    %258 = vmatprep.subr.mxu0 0.0
    %259 = vmatpush2.msra.mxu0 0.0
    %260 = vmatprep.subr.mxu0 0.0
    %261 = vmatpush2.msra.mxu0 0.0
    %262 = vmatprep.subr.mxu0 0.0
    %263 = vmatpush2.msra.mxu0 0.0
    %264 = vmatprep.subr.mxu0 0.0
    %265 = vmatpush2.msra.mxu0 0.0
    %266 = vmatprep.subr.mxu0 0.0
    %267 = vmatpush2.msra.mxu0 0.0
    %268 = vmatprep.subr.mxu0 0.0
    %269 = vmatpush2.msra.mxu0 0.0
    %270 = vmatprep.subr.mxu0 0.0
    %271 = vmatpush2.msra.mxu0 0.0
    %272 = vmatprep.subr.mxu0 0.0
    %273 = vmatpush2.msra.mxu0 0.0
    %274 = vmatprep.subr.mxu0 0.0
    %275 = vmatpush2.msra.mxu0 0.0
    %276 = vmatprep.mubr.f32.mxu0 0.0
    %277 = vmatmul.mubr.f32.gmra.mxu0 %v201
    %v278 = vpop.f32.mrf.mxu0
    %v279 = vadd.f32 0.0, %v278
    %v280 = vpop.f32.mrf.mxu0
    %281 = vmatprep.mubr.f32.mxu0 0.0
    %282 = vmatmul.mubr.f32.gmra.mxu0 %v204
    %v283 = vpop.f32.mrf.mxu0
    %v284 = vadd.f32 0.0, %v283
    %v285 = vpop.f32.mrf.mxu0
    %286 = vmatprep.mubr.f32.mxu0 0.0
    %287 = vmatmul.mubr.f32.gmra.mxu0 %v207
    %v288 = vpop.f32.mrf.mxu0
    %v289 = vadd.f32 0.0, %v288
    %v290 = vpop.f32.mrf.mxu0
    %291 = vmatprep.mubr.f32.mxu0 0.0
    %292 = vmatmul.mubr.f32.gmra.mxu0 %v210
    %v293 = vpop.f32.mrf.mxu0
    %v294 = vadd.f32 0.0, %v293
    %v295 = vpop.f32.mrf.mxu0
    %296 = vdwg.mxu0
    %v298 = vsel %vm199, %v156, 0
    %v301 = vsel %vm199, %v157, 0
    %v304 = vsel %vm199, %v158, 0
    %v307 = vsel %vm199, %v159, 0
    %309 = vmatprep.subr.mxu0 0.0
    %310 = vmatpush1.msra.mxu0 0.0
    %311 = vmatprep.subr.mxu0 0.0
    %312 = vmatpush1.msra.mxu0 0.0
    %313 = vmatprep.subr.mxu0 0.0
    %314 = vmatpush1.msra.mxu0 0.0
    %315 = vmatprep.subr.mxu0 0.0
    %316 = vmatpush1.msra.mxu0 0.0
    %317 = vmatprep.subr.mxu0 0.0
    %318 = vmatpush1.msra.mxu0 0.0
    %319 = vmatprep.subr.mxu0 0.0
    %320 = vmatpush1.msra.mxu0 0.0
    %321 = vmatprep.subr.mxu0 0.0
    %322 = vmatpush1.msra.mxu0 0.0
    %323 = vmatprep.subr.mxu0 0.0
    %324 = vmatpush1.msra.mxu0 0.0
    %325 = vmatprep.subr.mxu0 0.0
    %326 = vmatpush1.msra.mxu0 0.0
    %327 = vmatprep.subr.mxu0 0.0
    %328 = vmatpush1.msra.mxu0 0.0
    %329 = vmatprep.subr.mxu0 0.0
    %330 = vmatpush1.msra.mxu0 0.0
    %331 = vmatprep.subr.mxu0 0.0
    %332 = vmatpush1.msra.mxu0 0.0
    %333 = vmatprep.subr.mxu0 0.0
    %334 = vmatpush1.msra.mxu0 0.0
    %335 = vmatprep.subr.mxu0 0.0
    %336 = vmatpush1.msra.mxu0 0.0
    %337 = vmatprep.subr.mxu0 0.0
    %338 = vmatpush1.msra.mxu0 0.0
    %339 = vmatprep.subr.mxu0 0.0
    %340 = vmatpush1.msra.mxu0 %v160
    %341 = vmatprep.subr.mxu0 0.0
    %342 = vmatpush2.msra.mxu0 0.0
    %343 = vmatprep.subr.mxu0 0.0
    %344 = vmatpush2.msra.mxu0 0.0
    %345 = vmatprep.subr.mxu0 0.0
    %346 = vmatpush2.msra.mxu0 0.0
    %347 = vmatprep.subr.mxu0 0.0
    %348 = vmatpush2.msra.mxu0 0.0
    %349 = vmatprep.subr.mxu0 0.0
    %350 = vmatpush2.msra.mxu0 0.0
    %351 = vmatprep.subr.mxu0 0.0
    %352 = vmatpush2.msra.mxu0 0.0
    %353 = vmatprep.subr.mxu0 0.0
    %354 = vmatpush2.msra.mxu0 0.0
    %355 = vmatprep.subr.mxu0 0.0
    %356 = vmatpush2.msra.mxu0 0.0
    %357 = vmatprep.subr.mxu0 0.0
    %358 = vmatpush2.msra.mxu0 0.0
    %359 = vmatprep.subr.mxu0 0.0
    %360 = vmatpush2.msra.mxu0 0.0
    %361 = vmatprep.subr.mxu0 0.0
    %362 = vmatpush2.msra.mxu0 0.0
    %363 = vmatprep.subr.mxu0 0.0
    %364 = vmatpush2.msra.mxu0 0.0
    %365 = vmatprep.subr.mxu0 0.0
    %366 = vmatpush2.msra.mxu0 0.0
    %367 = vmatprep.subr.mxu0 0.0
    %368 = vmatpush2.msra.mxu0 0.0
    %369 = vmatprep.subr.mxu0 0.0
    %370 = vmatpush2.msra.mxu0 0.0
    %371 = vmatprep.subr.mxu0 0.0
    %372 = vmatpush2.msra.mxu0 0.0
    %373 = vmatprep.mubr.f32.mxu0 0.0
    %374 = vmatmul.mubr.f32.gmra.mxu0 %v298
    %v375 = vpop.f32.mrf.mxu0
    %v376 = vadd.f32 %v279, %v375
    %v377 = vpop.f32.mrf.mxu0
    %378 = vmatprep.mubr.f32.mxu0 0.0
    %379 = vmatmul.mubr.f32.gmra.mxu0 %v301
    %v380 = vpop.f32.mrf.mxu0
    %v381 = vadd.f32 %v284, %v380
    %v382 = vpop.f32.mrf.mxu0
    %383 = vmatprep.mubr.f32.mxu0 0.0
    %384 = vmatmul.mubr.f32.gmra.mxu0 %v304
    %v385 = vpop.f32.mrf.mxu0
    %v386 = vadd.f32 %v289, %v385
    %v387 = vpop.f32.mrf.mxu0
    %388 = vmatprep.mubr.f32.mxu0 0.0
    %389 = vmatmul.mubr.f32.gmra.mxu0 %v307
    %v390 = vpop.f32.mrf.mxu0
    %v391 = vadd.f32 %v294, %v390
    %v392 = vpop.f32.mrf.mxu0
    %393 = vdwg.mxu0
    %v394 = vld [vmem:[%s1 + $0x10] sm:$0xff]
    %v396 = vsel %vm199, %v119, 0
    %v399 = vsel %vm199, %v120, 0
    %v402 = vsel %vm199, %v121, 0
    %v405 = vsel %vm199, %v122, 0
    %407 = vmatprep.subr.mxu0 0.0
    %408 = vmatpush1.msra.mxu0 0.0
    %409 = vmatprep.subr.mxu0 0.0
    %410 = vmatpush1.msra.mxu0 0.0
    %411 = vmatprep.subr.mxu0 0.0
    %412 = vmatpush1.msra.mxu0 0.0
    %413 = vmatprep.subr.mxu0 0.0
    %414 = vmatpush1.msra.mxu0 0.0
    %415 = vmatprep.subr.mxu0 0.0
    %416 = vmatpush1.msra.mxu0 0.0
    %417 = vmatprep.subr.mxu0 0.0
    %418 = vmatpush1.msra.mxu0 0.0
    %419 = vmatprep.subr.mxu0 0.0
    %420 = vmatpush1.msra.mxu0 0.0
    %421 = vmatprep.subr.mxu0 0.0
    %422 = vmatpush1.msra.mxu0 0.0
    %423 = vmatprep.subr.mxu0 0.0
    %424 = vmatpush1.msra.mxu0 0.0
    %425 = vmatprep.subr.mxu0 0.0
    %426 = vmatpush1.msra.mxu0 0.0
    %427 = vmatprep.subr.mxu0 0.0
    %428 = vmatpush1.msra.mxu0 0.0
    %429 = vmatprep.subr.mxu0 0.0
    %430 = vmatpush1.msra.mxu0 0.0
    %431 = vmatprep.subr.mxu0 0.0
    %432 = vmatpush1.msra.mxu0 0.0
    %433 = vmatprep.subr.mxu0 0.0
    %434 = vmatpush1.msra.mxu0 0.0
    %435 = vmatprep.subr.mxu0 0.0
    %436 = vmatpush1.msra.mxu0 0.0
    %437 = vmatprep.subr.mxu0 0.0
    %438 = vmatpush1.msra.mxu0 %v394
    %439 = vmatprep.subr.mxu0 0.0
    %440 = vmatpush2.msra.mxu0 0.0
    %441 = vmatprep.subr.mxu0 0.0
    %442 = vmatpush2.msra.mxu0 0.0
    %443 = vmatprep.subr.mxu0 0.0
    %444 = vmatpush2.msra.mxu0 0.0
    %445 = vmatprep.subr.mxu0 0.0
    %446 = vmatpush2.msra.mxu0 0.0
    %447 = vmatprep.subr.mxu0 0.0
    %448 = vmatpush2.msra.mxu0 0.0
    %449 = vmatprep.subr.mxu0 0.0
    %450 = vmatpush2.msra.mxu0 0.0
    %451 = vmatprep.subr.mxu0 0.0
    %452 = vmatpush2.msra.mxu0 0.0
    %453 = vmatprep.subr.mxu0 0.0
    %454 = vmatpush2.msra.mxu0 0.0
    %455 = vmatprep.subr.mxu0 0.0
    %456 = vmatpush2.msra.mxu0 0.0
    %457 = vmatprep.subr.mxu0 0.0
    %458 = vmatpush2.msra.mxu0 0.0
    %459 = vmatprep.subr.mxu0 0.0
    %460 = vmatpush2.msra.mxu0 0.0
    %461 = vmatprep.subr.mxu0 0.0
    %462 = vmatpush2.msra.mxu0 0.0
    %463 = vmatprep.subr.mxu0 0.0
    %464 = vmatpush2.msra.mxu0 0.0
    %465 = vmatprep.subr.mxu0 0.0
    %466 = vmatpush2.msra.mxu0 0.0
    %467 = vmatprep.subr.mxu0 0.0
    %468 = vmatpush2.msra.mxu0 0.0
    %469 = vmatprep.subr.mxu0 0.0
    %470 = vmatpush2.msra.mxu0 0.0
    %471 = vmatprep.mubr.f32.mxu0 0.0
    %472 = vmatmul.mubr.f32.gmra.mxu0 %v396
    %v473 = vpop.f32.mrf.mxu0
    %v474 = vadd.f32 0.0, %v473
    %v475 = vpop.f32.mrf.mxu0
    %476 = vmatprep.mubr.f32.mxu0 0.0
    %477 = vmatmul.mubr.f32.gmra.mxu0 %v399
    %v478 = vpop.f32.mrf.mxu0
    %v479 = vadd.f32 0.0, %v478
    %v480 = vpop.f32.mrf.mxu0
    %481 = vmatprep.mubr.f32.mxu0 0.0
    %482 = vmatmul.mubr.f32.gmra.mxu0 %v402
    %v483 = vpop.f32.mrf.mxu0
    %v484 = vadd.f32 0.0, %v483
    %v485 = vpop.f32.mrf.mxu0
    %486 = vmatprep.mubr.f32.mxu0 0.0
    %487 = vmatmul.mubr.f32.gmra.mxu0 %v405
    %v488 = vpop.f32.mrf.mxu0
    %v489 = vadd.f32 0.0, %v488
    %v490 = vpop.f32.mrf.mxu0
    %491 = vdwg.mxu0
    %v492 = vadd.f32 %v376, %v474
    %v493 = vadd.f32 %v381, %v479
    %v494 = vadd.f32 %v386, %v484
    %v495 = vadd.f32 %v391, %v489
    %v496 = vrot.slane %v119, 1
    %v497 = vrot.slane %v120, 1
    %v498 = vrot.slane %v121, 1
    %v499 = vrot.slane %v122, 1
    %vm500 = vcmp.lt.s32.totalorder %v67, 7
    %v501 = vsel %vm500, %v498, %v499
    %v502 = vsel %vm500, %v497, %v498
    %v503 = vsel %vm500, %v496, %v497
    %v504 = vsel %vm500, %v499, %v496
    %v505 = vadd.s32 %v115, 1
    %v506 = vadd.s32 %v116, 1
    %v507 = vadd.s32 %v117, 1
    %v508 = vadd.s32 %v118, 1
    %vm509 = vcmp.ge.s32.totalorder %v505, 0
    %vm510 = vcmp.ge.s32.totalorder %v506, 0
    %vm511 = vcmp.ge.s32.totalorder %v507, 0
    %vm512 = vcmp.ge.s32.totalorder %v508, 0
    %vm513 = vcmp.lt.s32.totalorder %v505, 16
    %vm514 = vcmp.lt.s32.totalorder %v506, 16
    %vm515 = vcmp.lt.s32.totalorder %v507, 16
    %vm516 = vcmp.lt.s32.totalorder %v508, 16
    %vm517 = vmand %vm509, %vm513
    %vm518 = vmand %vm510, %vm514
    %vm519 = vmand %vm511, %vm515
    %vm520 = vmand %vm512, %vm516
    %v521 = vsel %vm517, 1, 0
    %v522 = vsel %vm518, 1, 0
    %v523 = vsel %vm519, 1, 0
    %v524 = vsel %vm520, 1, 0
    %vm525 = vcmp.eq.s32.totalorder %v521, 1
    %vm526 = vcmp.eq.s32.totalorder %v522, 1
    %vm527 = vcmp.eq.s32.totalorder %v523, 1
    %vm528 = vcmp.eq.s32.totalorder %v524, 1
    %v529 = vsel %vm525, %v503, 0.0
    %v530 = vsel %vm526, %v502, 0.0
    %v531 = vsel %vm527, %v501, 0.0
    %v532 = vsel %vm528, %v504, 0.0
    %v533 = vld [vmem:[%s1 + $0x18] sm:$0xff]
    %v535 = vsel %vm199, %v529, 0
    %v538 = vsel %vm199, %v530, 0
    %v541 = vsel %vm199, %v531, 0
    %v544 = vsel %vm199, %v532, 0
    %546 = vmatprep.subr.mxu0 0.0
    %547 = vmatpush1.msra.mxu0 0.0
    %548 = vmatprep.subr.mxu0 0.0
    %549 = vmatpush1.msra.mxu0 0.0
    %550 = vmatprep.subr.mxu0 0.0
    %551 = vmatpush1.msra.mxu0 0.0
    %552 = vmatprep.subr.mxu0 0.0
    %553 = vmatpush1.msra.mxu0 0.0
    %554 = vmatprep.subr.mxu0 0.0
    %555 = vmatpush1.msra.mxu0 0.0
    %556 = vmatprep.subr.mxu0 0.0
    %557 = vmatpush1.msra.mxu0 0.0
    %558 = vmatprep.subr.mxu0 0.0
    %559 = vmatpush1.msra.mxu0 0.0
    %560 = vmatprep.subr.mxu0 0.0
    %561 = vmatpush1.msra.mxu0 0.0
    %562 = vmatprep.subr.mxu0 0.0
    %563 = vmatpush1.msra.mxu0 0.0
    %564 = vmatprep.subr.mxu0 0.0
    %565 = vmatpush1.msra.mxu0 0.0
    %566 = vmatprep.subr.mxu0 0.0
    %567 = vmatpush1.msra.mxu0 0.0
    %568 = vmatprep.subr.mxu0 0.0
    %569 = vmatpush1.msra.mxu0 0.0
    %570 = vmatprep.subr.mxu0 0.0
    %571 = vmatpush1.msra.mxu0 0.0
    %572 = vmatprep.subr.mxu0 0.0
    %573 = vmatpush1.msra.mxu0 0.0
    %574 = vmatprep.subr.mxu0 0.0
    %575 = vmatpush1.msra.mxu0 0.0
    %576 = vmatprep.subr.mxu0 0.0
    %577 = vmatpush1.msra.mxu0 %v533
    %578 = vmatprep.subr.mxu0 0.0
    %579 = vmatpush2.msra.mxu0 0.0
    %580 = vmatprep.subr.mxu0 0.0
    %581 = vmatpush2.msra.mxu0 0.0
    %582 = vmatprep.subr.mxu0 0.0
    %583 = vmatpush2.msra.mxu0 0.0
    %584 = vmatprep.subr.mxu0 0.0
    %585 = vmatpush2.msra.mxu0 0.0
    %586 = vmatprep.subr.mxu0 0.0
    %587 = vmatpush2.msra.mxu0 0.0
    %588 = vmatprep.subr.mxu0 0.0
    %589 = vmatpush2.msra.mxu0 0.0
    %590 = vmatprep.subr.mxu0 0.0
    %591 = vmatpush2.msra.mxu0 0.0
    %592 = vmatprep.subr.mxu0 0.0
    %593 = vmatpush2.msra.mxu0 0.0
    %594 = vmatprep.subr.mxu0 0.0
    %595 = vmatpush2.msra.mxu0 0.0
    %596 = vmatprep.subr.mxu0 0.0
    %597 = vmatpush2.msra.mxu0 0.0
    %598 = vmatprep.subr.mxu0 0.0
    %599 = vmatpush2.msra.mxu0 0.0
    %600 = vmatprep.subr.mxu0 0.0
    %601 = vmatpush2.msra.mxu0 0.0
    %602 = vmatprep.subr.mxu0 0.0
    %603 = vmatpush2.msra.mxu0 0.0
    %604 = vmatprep.subr.mxu0 0.0
    %605 = vmatpush2.msra.mxu0 0.0
    %606 = vmatprep.subr.mxu0 0.0
    %607 = vmatpush2.msra.mxu0 0.0
    %608 = vmatprep.subr.mxu0 0.0
    %609 = vmatpush2.msra.mxu0 0.0
    %610 = vmatprep.mubr.f32.mxu0 0.0
    %611 = vmatmul.mubr.f32.gmra.mxu0 %v535
    %v612 = vpop.f32.mrf.mxu0
    %v613 = vadd.f32 0.0, %v612
    %v614 = vpop.f32.mrf.mxu0
    %615 = vmatprep.mubr.f32.mxu0 0.0
    %616 = vmatmul.mubr.f32.gmra.mxu0 %v538
    %v617 = vpop.f32.mrf.mxu0
    %v618 = vadd.f32 0.0, %v617
    %v619 = vpop.f32.mrf.mxu0
    %620 = vmatprep.mubr.f32.mxu0 0.0
    %621 = vmatmul.mubr.f32.gmra.mxu0 %v541
    %v622 = vpop.f32.mrf.mxu0
    %v623 = vadd.f32 0.0, %v622
    %v624 = vpop.f32.mrf.mxu0
    %625 = vmatprep.mubr.f32.mxu0 0.0
    %626 = vmatmul.mubr.f32.gmra.mxu0 %v544
    %v627 = vpop.f32.mrf.mxu0
    %v628 = vadd.f32 0.0, %v627
    %v629 = vpop.f32.mrf.mxu0
    %630 = vdwg.mxu0
    %v631 = vadd.f32 %v492, %v613
    %v632 = vadd.f32 %v493, %v618
    %v633 = vadd.f32 %v494, %v623
    %v634 = vadd.f32 %v495, %v628
    %v635 = vrot.slane %v119, 2
    %v636 = vrot.slane %v120, 2
    %v637 = vrot.slane %v121, 2
    %v638 = vrot.slane %v122, 2
    %vm639 = vcmp.lt.s32.totalorder %v67, 6
    %v640 = vsel %vm639, %v637, %v638
    %v641 = vsel %vm639, %v636, %v637
    %v642 = vsel %vm639, %v635, %v636
    %v643 = vsel %vm639, %v638, %v635
    %v644 = vadd.s32 %v115, 2
    %v645 = vadd.s32 %v116, 2
    %v646 = vadd.s32 %v117, 2
    %v647 = vadd.s32 %v118, 2
    %vm648 = vcmp.ge.s32.totalorder %v644, 0
    %vm649 = vcmp.ge.s32.totalorder %v645, 0
    %vm650 = vcmp.ge.s32.totalorder %v646, 0
    %vm651 = vcmp.ge.s32.totalorder %v647, 0
    %vm652 = vcmp.lt.s32.totalorder %v644, 16
    %vm653 = vcmp.lt.s32.totalorder %v645, 16
    %vm654 = vcmp.lt.s32.totalorder %v646, 16
    %vm655 = vcmp.lt.s32.totalorder %v647, 16
    %vm656 = vmand %vm648, %vm652
    %vm657 = vmand %vm649, %vm653
    %vm658 = vmand %vm650, %vm654
    %vm659 = vmand %vm651, %vm655
    %v660 = vsel %vm656, 1, 0
    %v661 = vsel %vm657, 1, 0
    %v662 = vsel %vm658, 1, 0
    %v663 = vsel %vm659, 1, 0
    %vm664 = vcmp.eq.s32.totalorder %v660, 1
    %vm665 = vcmp.eq.s32.totalorder %v661, 1
    %vm666 = vcmp.eq.s32.totalorder %v662, 1
    %vm667 = vcmp.eq.s32.totalorder %v663, 1
    %v668 = vsel %vm664, %v642, 0.0
    %v669 = vsel %vm665, %v641, 0.0
    %v670 = vsel %vm666, %v640, 0.0
    %v671 = vsel %vm667, %v643, 0.0
    %v672 = vld [vmem:[%s1 + $0x20] sm:$0xff]
    %v674 = vsel %vm199, %v668, 0
    %v677 = vsel %vm199, %v669, 0
    %v680 = vsel %vm199, %v670, 0
    %v683 = vsel %vm199, %v671, 0
    %685 = vmatprep.subr.mxu0 0.0
    %686 = vmatpush1.msra.mxu0 0.0
    %687 = vmatprep.subr.mxu0 0.0
    %688 = vmatpush1.msra.mxu0 0.0
    %689 = vmatprep.subr.mxu0 0.0
    %690 = vmatpush1.msra.mxu0 0.0
    %691 = vmatprep.subr.mxu0 0.0
    %692 = vmatpush1.msra.mxu0 0.0
    %693 = vmatprep.subr.mxu0 0.0
    %694 = vmatpush1.msra.mxu0 0.0
    %695 = vmatprep.subr.mxu0 0.0
    %696 = vmatpush1.msra.mxu0 0.0
    %697 = vmatprep.subr.mxu0 0.0
    %698 = vmatpush1.msra.mxu0 0.0
    %699 = vmatprep.subr.mxu0 0.0
    %700 = vmatpush1.msra.mxu0 0.0
    %701 = vmatprep.subr.mxu0 0.0
    %702 = vmatpush1.msra.mxu0 0.0
    %703 = vmatprep.subr.mxu0 0.0
    %704 = vmatpush1.msra.mxu0 0.0
    %705 = vmatprep.subr.mxu0 0.0
    %706 = vmatpush1.msra.mxu0 0.0
    %707 = vmatprep.subr.mxu0 0.0
    %708 = vmatpush1.msra.mxu0 0.0
    %709 = vmatprep.subr.mxu0 0.0
    %710 = vmatpush1.msra.mxu0 0.0
    %711 = vmatprep.subr.mxu0 0.0
    %712 = vmatpush1.msra.mxu0 0.0
    %713 = vmatprep.subr.mxu0 0.0
    %714 = vmatpush1.msra.mxu0 0.0
    %715 = vmatprep.subr.mxu0 0.0
    %716 = vmatpush1.msra.mxu0 %v672
    %717 = vmatprep.subr.mxu0 0.0
    %718 = vmatpush2.msra.mxu0 0.0
    %719 = vmatprep.subr.mxu0 0.0
    %720 = vmatpush2.msra.mxu0 0.0
    %721 = vmatprep.subr.mxu0 0.0
    %722 = vmatpush2.msra.mxu0 0.0
    %723 = vmatprep.subr.mxu0 0.0
    %724 = vmatpush2.msra.mxu0 0.0
    %725 = vmatprep.subr.mxu0 0.0
    %726 = vmatpush2.msra.mxu0 0.0
    %727 = vmatprep.subr.mxu0 0.0
    %728 = vmatpush2.msra.mxu0 0.0
    %729 = vmatprep.subr.mxu0 0.0
    %730 = vmatpush2.msra.mxu0 0.0
    %731 = vmatprep.subr.mxu0 0.0
    %732 = vmatpush2.msra.mxu0 0.0
    %733 = vmatprep.subr.mxu0 0.0
    %734 = vmatpush2.msra.mxu0 0.0
    %735 = vmatprep.subr.mxu0 0.0
    %736 = vmatpush2.msra.mxu0 0.0
    %737 = vmatprep.subr.mxu0 0.0
    %738 = vmatpush2.msra.mxu0 0.0
    %739 = vmatprep.subr.mxu0 0.0
    %740 = vmatpush2.msra.mxu0 0.0
    %741 = vmatprep.subr.mxu0 0.0
    %742 = vmatpush2.msra.mxu0 0.0
    %743 = vmatprep.subr.mxu0 0.0
    %744 = vmatpush2.msra.mxu0 0.0
    %745 = vmatprep.subr.mxu0 0.0
    %746 = vmatpush2.msra.mxu0 0.0
    %747 = vmatprep.subr.mxu0 0.0
    %748 = vmatpush2.msra.mxu0 0.0
    %749 = vmatprep.mubr.f32.mxu0 0.0
    %750 = vmatmul.mubr.f32.gmra.mxu0 %v674
    %v751 = vpop.f32.mrf.mxu0
    %v752 = vadd.f32 0.0, %v751
    %v753 = vpop.f32.mrf.mxu0
    %754 = vmatprep.mubr.f32.mxu0 0.0
    %755 = vmatmul.mubr.f32.gmra.mxu0 %v677
    %v756 = vpop.f32.mrf.mxu0
    %v757 = vadd.f32 0.0, %v756
    %v758 = vpop.f32.mrf.mxu0
    %759 = vmatprep.mubr.f32.mxu0 0.0
    %760 = vmatmul.mubr.f32.gmra.mxu0 %v680
    %v761 = vpop.f32.mrf.mxu0
    %v762 = vadd.f32 0.0, %v761
    %v763 = vpop.f32.mrf.mxu0
    %764 = vmatprep.mubr.f32.mxu0 0.0
    %765 = vmatmul.mubr.f32.gmra.mxu0 %v683
    %v766 = vpop.f32.mrf.mxu0
    %v767 = vadd.f32 0.0, %v766
    %v768 = vpop.f32.mrf.mxu0
    %769 = vdwg.mxu0
    %v770 = vadd.f32 %v631, %v752
    %v771 = vadd.f32 %v632, %v757
    %v772 = vadd.f32 %v633, %v762
    %v773 = vadd.f32 %v634, %v767
    %v774 = vld [vmem:[%s2] sm:$0x1]
    %v776 = vlaneseq
    %v777 = vshrl.u32 %v776, 7
    %v778 = vsub.s32 0, %v777
    %v779 = vrot.slane %v774, %v778
    %v781 = vmul.f32 %v770, %v779
    %v782 = vmul.f32 %v771, %v779
    %v783 = vmul.f32 %v772, %v779
    %v784 = vmul.f32 %v773, %v779
    %v785 = vld [vmem:[%s3] sm:$0x1]
    %v787 = vlaneseq
    %v788 = vshrl.u32 %v787, 7
    %v789 = vsub.s32 0, %v788
    %v790 = vrot.slane %v785, %v789
    %v792 = vadd.f32 %v781, %v790
    %v793 = vadd.f32 %v782, %v790
    %v794 = vadd.f32 %v783, %v790
    %v795 = vadd.f32 %v784, %v790
    %v796 = vmul.f32 %v792, 0.5
    %v797 = vmul.f32 %v793, 0.5
    %v798 = vmul.f32 %v794, 0.5
    %v799 = vmul.f32 %v795, 0.5
    %v800 = vmul.f32 %v792, 0.70710677
    %v801 = vmul.f32 %v793, 0.70710677
    %v802 = vmul.f32 %v794, 0.70710677
    %v803 = vmul.f32 %v795, 0.70710677
    %v804 = verf.f32.pop %v800
    %v805 = verf.f32.pop %v801
    %v806 = verf.f32.pop %v802
    %v807 = verf.f32.pop %v803
    %v808 = vadd.f32 %v804, 1.0
    %v809 = vadd.f32 %v805, 1.0
    %v810 = vadd.f32 %v806, 1.0
    %v811 = vadd.f32 %v807, 1.0
    %v812 = vmul.f32 %v796, %v808
    %v813 = vmul.f32 %v797, %v809
    %v814 = vmul.f32 %v798, %v810
    %v815 = vmul.f32 %v799, %v811
    %v816 = vrot.slane %v812, 5
    %v817 = vrot.slane %v813, 5
    %v818 = vrot.slane %v814, 5
    %v819 = vrot.slane %v815, 5
    %vm820 = vcmp.lt.s32.totalorder %v67, 3
    %v821 = vsel %vm820, %v818, %v819
    %v822 = vsel %vm820, %v817, %v818
    %v823 = vsel %vm820, %v816, %v817
    %v824 = vsel %vm820, %v819, %v816
    %v825 = vadd.s32 %v115, 4294967293
    %v826 = vadd.s32 %v116, 4294967293
    %v827 = vadd.s32 %v117, 4294967293
    %v828 = vadd.s32 %v118, 4294967293
    %vm829 = vcmp.ge.s32.totalorder %v825, 0
    %vm830 = vcmp.ge.s32.totalorder %v826, 0
    %vm831 = vcmp.ge.s32.totalorder %v827, 0
    %vm832 = vcmp.ge.s32.totalorder %v828, 0
    %vm833 = vcmp.lt.s32.totalorder %v825, 16
    %vm834 = vcmp.lt.s32.totalorder %v826, 16
    %vm835 = vcmp.lt.s32.totalorder %v827, 16
    %vm836 = vcmp.lt.s32.totalorder %v828, 16
    %vm837 = vmand %vm829, %vm833
    %vm838 = vmand %vm830, %vm834
    %vm839 = vmand %vm831, %vm835
    %vm840 = vmand %vm832, %vm836
    %v841 = vsel %vm837, 1, 0
    %v842 = vsel %vm838, 1, 0
    %v843 = vsel %vm839, 1, 0
    %v844 = vsel %vm840, 1, 0
    %vm845 = vcmp.eq.s32.totalorder %v841, 1
    %vm846 = vcmp.eq.s32.totalorder %v842, 1
    %vm847 = vcmp.eq.s32.totalorder %v843, 1
    %vm848 = vcmp.eq.s32.totalorder %v844, 1
    %v849 = vsel %vm845, %v824, 0.0
    %v850 = vsel %vm846, %v823, 0.0
    %v851 = vsel %vm847, %v822, 0.0
    %v852 = vsel %vm848, %v821, 0.0
    %v853 = vld [vmem:[%s4] sm:$0xff]
    %v854 = vld [vmem:[%s4 + $0x8] sm:$0xff]
    %v855 = vrot.slane %v812, 6
    %v856 = vrot.slane %v813, 6
    %v857 = vrot.slane %v814, 6
    %v858 = vrot.slane %v815, 6
    %v859 = vsel %vm127, %v857, %v858
    %v860 = vsel %vm127, %v856, %v857
    %v861 = vsel %vm127, %v855, %v856
    %v862 = vsel %vm127, %v858, %v855
    %v863 = vsel %vm152, %v862, 0.0
    %v864 = vsel %vm153, %v861, 0.0
    %v865 = vsel %vm154, %v860, 0.0
    %v866 = vsel %vm155, %v859, 0.0
    %v867 = vld [vmem:[%s4 + $0x10] sm:$0xff]
    %v868 = vld [vmem:[%s4 + $0x18] sm:$0xff]
    %vm869 = vcmask 130048
    %v871 = vsel %vm869, %v863, 0
    %v874 = vsel %vm869, %v864, 0
    %v877 = vsel %vm869, %v865, 0
    %v880 = vsel %vm869, %v866, 0
    %882 = vmatprep.subr.mxu0 0.0
    %883 = vmatpush1.msra.mxu0 0.0
    %884 = vmatprep.subr.mxu0 0.0
    %885 = vmatpush1.msra.mxu0 0.0
    %886 = vmatprep.subr.mxu0 0.0
    %887 = vmatpush1.msra.mxu0 0.0
    %888 = vmatprep.subr.mxu0 0.0
    %889 = vmatpush1.msra.mxu0 0.0
    %890 = vmatprep.subr.mxu0 0.0
    %891 = vmatpush1.msra.mxu0 0.0
    %892 = vmatprep.subr.mxu0 0.0
    %893 = vmatpush1.msra.mxu0 0.0
    %894 = vmatprep.subr.mxu0 0.0
    %895 = vmatpush1.msra.mxu0 0.0
    %896 = vmatprep.subr.mxu0 0.0
    %897 = vmatpush1.msra.mxu0 0.0
    %898 = vmatprep.subr.mxu0 0.0
    %899 = vmatpush1.msra.mxu0 0.0
    %900 = vmatprep.subr.mxu0 0.0
    %901 = vmatpush1.msra.mxu0 0.0
    %902 = vmatprep.subr.mxu0 0.0
    %903 = vmatpush1.msra.mxu0 0.0
    %904 = vmatprep.subr.mxu0 0.0
    %905 = vmatpush1.msra.mxu0 0.0
    %906 = vmatprep.subr.mxu0 0.0
    %907 = vmatpush1.msra.mxu0 0.0
    %908 = vmatprep.subr.mxu0 0.0
    %909 = vmatpush1.msra.mxu0 0.0
    %910 = vmatprep.subr.mxu0 0.0
    %911 = vmatpush1.msra.mxu0 %v868
    %912 = vmatprep.subr.mxu0 0.0
    %913 = vmatpush1.msra.mxu0 %v867
    %914 = vmatprep.subr.mxu0 0.0
    %915 = vmatpush2.msra.mxu0 0.0
    %916 = vmatprep.subr.mxu0 0.0
    %917 = vmatpush2.msra.mxu0 0.0
    %918 = vmatprep.subr.mxu0 0.0
    %919 = vmatpush2.msra.mxu0 0.0
    %920 = vmatprep.subr.mxu0 0.0
    %921 = vmatpush2.msra.mxu0 0.0
    %922 = vmatprep.subr.mxu0 0.0
    %923 = vmatpush2.msra.mxu0 0.0
    %924 = vmatprep.subr.mxu0 0.0
    %925 = vmatpush2.msra.mxu0 0.0
    %926 = vmatprep.subr.mxu0 0.0
    %927 = vmatpush2.msra.mxu0 0.0
    %928 = vmatprep.subr.mxu0 0.0
    %929 = vmatpush2.msra.mxu0 0.0
    %930 = vmatprep.subr.mxu0 0.0
    %931 = vmatpush2.msra.mxu0 0.0
    %932 = vmatprep.subr.mxu0 0.0
    %933 = vmatpush2.msra.mxu0 0.0
    %934 = vmatprep.subr.mxu0 0.0
    %935 = vmatpush2.msra.mxu0 0.0
    %936 = vmatprep.subr.mxu0 0.0
    %937 = vmatpush2.msra.mxu0 0.0
    %938 = vmatprep.subr.mxu0 0.0
    %939 = vmatpush2.msra.mxu0 0.0
    %940 = vmatprep.subr.mxu0 0.0
    %941 = vmatpush2.msra.mxu0 0.0
    %942 = vmatprep.subr.mxu0 0.0
    %943 = vmatpush2.msra.mxu0 0.0
    %944 = vmatprep.subr.mxu0 0.0
    %945 = vmatpush2.msra.mxu0 0.0
    %946 = vmatprep.mubr.f32.mxu0 0.0
    %947 = vmatmul.mubr.f32.gmra.mxu0 %v871
    %v948 = vpop.f32.mrf.mxu0
    %v949 = vadd.f32 0.0, %v948
    %v950 = vpop.f32.mrf.mxu0
    %951 = vmatprep.mubr.f32.mxu0 0.0
    %952 = vmatmul.mubr.f32.gmra.mxu0 %v874
    %v953 = vpop.f32.mrf.mxu0
    %v954 = vadd.f32 0.0, %v953
    %v955 = vpop.f32.mrf.mxu0
    %956 = vmatprep.mubr.f32.mxu0 0.0
    %957 = vmatmul.mubr.f32.gmra.mxu0 %v877
    %v958 = vpop.f32.mrf.mxu0
    %v959 = vadd.f32 0.0, %v958
    %v960 = vpop.f32.mrf.mxu0
    %961 = vmatprep.mubr.f32.mxu0 0.0
    %962 = vmatmul.mubr.f32.gmra.mxu0 %v880
    %v963 = vpop.f32.mrf.mxu0
    %v964 = vadd.f32 0.0, %v963
    %v965 = vpop.f32.mrf.mxu0
    %966 = vdwg.mxu0
    %v968 = vsel %vm869, %v849, 0
    %v971 = vsel %vm869, %v850, 0
    %v974 = vsel %vm869, %v851, 0
    %v977 = vsel %vm869, %v852, 0
    %979 = vmatprep.subr.mxu0 0.0
    %980 = vmatpush1.msra.mxu0 0.0
    %981 = vmatprep.subr.mxu0 0.0
    %982 = vmatpush1.msra.mxu0 0.0
    %983 = vmatprep.subr.mxu0 0.0
    %984 = vmatpush1.msra.mxu0 0.0
    %985 = vmatprep.subr.mxu0 0.0
    %986 = vmatpush1.msra.mxu0 0.0
    %987 = vmatprep.subr.mxu0 0.0
    %988 = vmatpush1.msra.mxu0 0.0
    %989 = vmatprep.subr.mxu0 0.0
    %990 = vmatpush1.msra.mxu0 0.0
    %991 = vmatprep.subr.mxu0 0.0
    %992 = vmatpush1.msra.mxu0 0.0
    %993 = vmatprep.subr.mxu0 0.0
    %994 = vmatpush1.msra.mxu0 0.0
    %995 = vmatprep.subr.mxu0 0.0
    %996 = vmatpush1.msra.mxu0 0.0
    %997 = vmatprep.subr.mxu0 0.0
    %998 = vmatpush1.msra.mxu0 0.0
    %999 = vmatprep.subr.mxu0 0.0
    %1000 = vmatpush1.msra.mxu0 0.0
    %1001 = vmatprep.subr.mxu0 0.0
    %1002 = vmatpush1.msra.mxu0 0.0
    %1003 = vmatprep.subr.mxu0 0.0
    %1004 = vmatpush1.msra.mxu0 0.0
    %1005 = vmatprep.subr.mxu0 0.0
    %1006 = vmatpush1.msra.mxu0 0.0
    %1007 = vmatprep.subr.mxu0 0.0
    %1008 = vmatpush1.msra.mxu0 %v854
    %1009 = vmatprep.subr.mxu0 0.0
    %1010 = vmatpush1.msra.mxu0 %v853
    %1011 = vmatprep.subr.mxu0 0.0
    %1012 = vmatpush2.msra.mxu0 0.0
    %1013 = vmatprep.subr.mxu0 0.0
    %1014 = vmatpush2.msra.mxu0 0.0
    %1015 = vmatprep.subr.mxu0 0.0
    %1016 = vmatpush2.msra.mxu0 0.0
    %1017 = vmatprep.subr.mxu0 0.0
    %1018 = vmatpush2.msra.mxu0 0.0
    %1019 = vmatprep.subr.mxu0 0.0
    %1020 = vmatpush2.msra.mxu0 0.0
    %1021 = vmatprep.subr.mxu0 0.0
    %1022 = vmatpush2.msra.mxu0 0.0
    %1023 = vmatprep.subr.mxu0 0.0
    %1024 = vmatpush2.msra.mxu0 0.0
    %1025 = vmatprep.subr.mxu0 0.0
    %1026 = vmatpush2.msra.mxu0 0.0
    %1027 = vmatprep.subr.mxu0 0.0
    %1028 = vmatpush2.msra.mxu0 0.0
    %1029 = vmatprep.subr.mxu0 0.0
    %1030 = vmatpush2.msra.mxu0 0.0
    %1031 = vmatprep.subr.mxu0 0.0
    %1032 = vmatpush2.msra.mxu0 0.0
    %1033 = vmatprep.subr.mxu0 0.0
    %1034 = vmatpush2.msra.mxu0 0.0
    %1035 = vmatprep.subr.mxu0 0.0
    %1036 = vmatpush2.msra.mxu0 0.0
    %1037 = vmatprep.subr.mxu0 0.0
    %1038 = vmatpush2.msra.mxu0 0.0
    %1039 = vmatprep.subr.mxu0 0.0
    %1040 = vmatpush2.msra.mxu0 0.0
    %1041 = vmatprep.subr.mxu0 0.0
    %1042 = vmatpush2.msra.mxu0 0.0
    %1043 = vmatprep.mubr.f32.mxu0 0.0
    %1044 = vmatmul.mubr.f32.gmra.mxu0 %v968
    %v1045 = vpop.f32.mrf.mxu0
    %v1046 = vadd.f32 %v949, %v1045
    %v1047 = vpop.f32.mrf.mxu0
    %1048 = vmatprep.mubr.f32.mxu0 0.0
    %1049 = vmatmul.mubr.f32.gmra.mxu0 %v971
    %v1050 = vpop.f32.mrf.mxu0
    %v1051 = vadd.f32 %v954, %v1050
    %v1052 = vpop.f32.mrf.mxu0
    %1053 = vmatprep.mubr.f32.mxu0 0.0
    %1054 = vmatmul.mubr.f32.gmra.mxu0 %v974
    %v1055 = vpop.f32.mrf.mxu0
    %v1056 = vadd.f32 %v959, %v1055
    %v1057 = vpop.f32.mrf.mxu0
    %1058 = vmatprep.mubr.f32.mxu0 0.0
    %1059 = vmatmul.mubr.f32.gmra.mxu0 %v977
    %v1060 = vpop.f32.mrf.mxu0
    %v1061 = vadd.f32 %v964, %v1060
    %v1062 = vpop.f32.mrf.mxu0
    %1063 = vdwg.mxu0
    %v1064 = vrot.slane %v812, 7
    %v1065 = vrot.slane %v813, 7
    %v1066 = vrot.slane %v814, 7
    %v1067 = vrot.slane %v815, 7
    %v1068 = vsel %vm165, %v1066, %v1067
    %v1069 = vsel %vm165, %v1065, %v1066
    %v1070 = vsel %vm165, %v1064, %v1065
    %v1071 = vsel %vm165, %v1067, %v1064
    %v1072 = vsel %vm190, %v1071, 0.0
    %v1073 = vsel %vm191, %v1070, 0.0
    %v1074 = vsel %vm192, %v1069, 0.0
    %v1075 = vsel %vm193, %v1068, 0.0
    %v1076 = vld [vmem:[%s4 + $0x20] sm:$0xff]
    %v1077 = vld [vmem:[%s4 + $0x28] sm:$0xff]
    %v1079 = vsel %vm869, %v1072, 0
    %v1082 = vsel %vm869, %v1073, 0
    %v1085 = vsel %vm869, %v1074, 0
    %v1088 = vsel %vm869, %v1075, 0
    %1090 = vmatprep.subr.mxu0 0.0
    %1091 = vmatpush1.msra.mxu0 0.0
    %1092 = vmatprep.subr.mxu0 0.0
    %1093 = vmatpush1.msra.mxu0 0.0
    %1094 = vmatprep.subr.mxu0 0.0
    %1095 = vmatpush1.msra.mxu0 0.0
    %1096 = vmatprep.subr.mxu0 0.0
    %1097 = vmatpush1.msra.mxu0 0.0
    %1098 = vmatprep.subr.mxu0 0.0
    %1099 = vmatpush1.msra.mxu0 0.0
    %1100 = vmatprep.subr.mxu0 0.0
    %1101 = vmatpush1.msra.mxu0 0.0
    %1102 = vmatprep.subr.mxu0 0.0
    %1103 = vmatpush1.msra.mxu0 0.0
    %1104 = vmatprep.subr.mxu0 0.0
    %1105 = vmatpush1.msra.mxu0 0.0
    %1106 = vmatprep.subr.mxu0 0.0
    %1107 = vmatpush1.msra.mxu0 0.0
    %1108 = vmatprep.subr.mxu0 0.0
    %1109 = vmatpush1.msra.mxu0 0.0
    %1110 = vmatprep.subr.mxu0 0.0
    %1111 = vmatpush1.msra.mxu0 0.0
    %1112 = vmatprep.subr.mxu0 0.0
    %1113 = vmatpush1.msra.mxu0 0.0
    %1114 = vmatprep.subr.mxu0 0.0
    %1115 = vmatpush1.msra.mxu0 0.0
    %1116 = vmatprep.subr.mxu0 0.0
    %1117 = vmatpush1.msra.mxu0 0.0
    %1118 = vmatprep.subr.mxu0 0.0
    %1119 = vmatpush1.msra.mxu0 %v1077
    %1120 = vmatprep.subr.mxu0 0.0
    %1121 = vmatpush1.msra.mxu0 %v1076
    %1122 = vmatprep.subr.mxu0 0.0
    %1123 = vmatpush2.msra.mxu0 0.0
    %1124 = vmatprep.subr.mxu0 0.0
    %1125 = vmatpush2.msra.mxu0 0.0
    %1126 = vmatprep.subr.mxu0 0.0
    %1127 = vmatpush2.msra.mxu0 0.0
    %1128 = vmatprep.subr.mxu0 0.0
    %1129 = vmatpush2.msra.mxu0 0.0
    %1130 = vmatprep.subr.mxu0 0.0
    %1131 = vmatpush2.msra.mxu0 0.0
    %1132 = vmatprep.subr.mxu0 0.0
    %1133 = vmatpush2.msra.mxu0 0.0
    %1134 = vmatprep.subr.mxu0 0.0
    %1135 = vmatpush2.msra.mxu0 0.0
    %1136 = vmatprep.subr.mxu0 0.0
    %1137 = vmatpush2.msra.mxu0 0.0
    %1138 = vmatprep.subr.mxu0 0.0
    %1139 = vmatpush2.msra.mxu0 0.0
    %1140 = vmatprep.subr.mxu0 0.0
    %1141 = vmatpush2.msra.mxu0 0.0
    %1142 = vmatprep.subr.mxu0 0.0
    %1143 = vmatpush2.msra.mxu0 0.0
    %1144 = vmatprep.subr.mxu0 0.0
    %1145 = vmatpush2.msra.mxu0 0.0
    %1146 = vmatprep.subr.mxu0 0.0
    %1147 = vmatpush2.msra.mxu0 0.0
    %1148 = vmatprep.subr.mxu0 0.0
    %1149 = vmatpush2.msra.mxu0 0.0
    %1150 = vmatprep.subr.mxu0 0.0
    %1151 = vmatpush2.msra.mxu0 0.0
    %1152 = vmatprep.subr.mxu0 0.0
    %1153 = vmatpush2.msra.mxu0 0.0
    %1154 = vmatprep.mubr.f32.mxu0 0.0
    %1155 = vmatmul.mubr.f32.gmra.mxu0 %v1079
    %v1156 = vpop.f32.mrf.mxu0
    %v1157 = vadd.f32 0.0, %v1156
    %v1158 = vpop.f32.mrf.mxu0
    %1159 = vmatprep.mubr.f32.mxu0 0.0
    %1160 = vmatmul.mubr.f32.gmra.mxu0 %v1082
    %v1161 = vpop.f32.mrf.mxu0
    %v1162 = vadd.f32 0.0, %v1161
    %v1163 = vpop.f32.mrf.mxu0
    %1164 = vmatprep.mubr.f32.mxu0 0.0
    %1165 = vmatmul.mubr.f32.gmra.mxu0 %v1085
    %v1166 = vpop.f32.mrf.mxu0
    %v1167 = vadd.f32 0.0, %v1166
    %v1168 = vpop.f32.mrf.mxu0
    %1169 = vmatprep.mubr.f32.mxu0 0.0
    %1170 = vmatmul.mubr.f32.gmra.mxu0 %v1088
    %v1171 = vpop.f32.mrf.mxu0
    %v1172 = vadd.f32 0.0, %v1171
    %v1173 = vpop.f32.mrf.mxu0
    %1174 = vdwg.mxu0
    %v1175 = vadd.f32 %v1046, %v1157
    %v1176 = vadd.f32 %v1051, %v1162
    %v1177 = vadd.f32 %v1056, %v1167
    %v1178 = vadd.f32 %v1061, %v1172
    %v1179 = vld [vmem:[%s4 + $0x30] sm:$0xff]
    %v1180 = vld [vmem:[%s4 + $0x38] sm:$0xff]
    %v1182 = vsel %vm869, %v812, 0
    %v1185 = vsel %vm869, %v813, 0
    %v1188 = vsel %vm869, %v814, 0
    %v1191 = vsel %vm869, %v815, 0
    %1193 = vmatprep.subr.mxu0 0.0
    %1194 = vmatpush1.msra.mxu0 0.0
    %1195 = vmatprep.subr.mxu0 0.0
    %1196 = vmatpush1.msra.mxu0 0.0
    %1197 = vmatprep.subr.mxu0 0.0
    %1198 = vmatpush1.msra.mxu0 0.0
    %1199 = vmatprep.subr.mxu0 0.0
    %1200 = vmatpush1.msra.mxu0 0.0
    %1201 = vmatprep.subr.mxu0 0.0
    %1202 = vmatpush1.msra.mxu0 0.0
    %1203 = vmatprep.subr.mxu0 0.0
    %1204 = vmatpush1.msra.mxu0 0.0
    %1205 = vmatprep.subr.mxu0 0.0
    %1206 = vmatpush1.msra.mxu0 0.0
    %1207 = vmatprep.subr.mxu0 0.0
    %1208 = vmatpush1.msra.mxu0 0.0
    %1209 = vmatprep.subr.mxu0 0.0
    %1210 = vmatpush1.msra.mxu0 0.0
    %1211 = vmatprep.subr.mxu0 0.0
    %1212 = vmatpush1.msra.mxu0 0.0
    %1213 = vmatprep.subr.mxu0 0.0
    %1214 = vmatpush1.msra.mxu0 0.0
    %1215 = vmatprep.subr.mxu0 0.0
    %1216 = vmatpush1.msra.mxu0 0.0
    %1217 = vmatprep.subr.mxu0 0.0
    %1218 = vmatpush1.msra.mxu0 0.0
    %1219 = vmatprep.subr.mxu0 0.0
    %1220 = vmatpush1.msra.mxu0 0.0
    %1221 = vmatprep.subr.mxu0 0.0
    %1222 = vmatpush1.msra.mxu0 %v1180
    %1223 = vmatprep.subr.mxu0 0.0
    %1224 = vmatpush1.msra.mxu0 %v1179
    %1225 = vmatprep.subr.mxu0 0.0
    %1226 = vmatpush2.msra.mxu0 0.0
    %1227 = vmatprep.subr.mxu0 0.0
    %1228 = vmatpush2.msra.mxu0 0.0
    %1229 = vmatprep.subr.mxu0 0.0
    %1230 = vmatpush2.msra.mxu0 0.0
    %1231 = vmatprep.subr.mxu0 0.0
    %1232 = vmatpush2.msra.mxu0 0.0
    %1233 = vmatprep.subr.mxu0 0.0
    %1234 = vmatpush2.msra.mxu0 0.0
    %1235 = vmatprep.subr.mxu0 0.0
    %1236 = vmatpush2.msra.mxu0 0.0
    %1237 = vmatprep.subr.mxu0 0.0
    %1238 = vmatpush2.msra.mxu0 0.0
    %1239 = vmatprep.subr.mxu0 0.0
    %1240 = vmatpush2.msra.mxu0 0.0
    %1241 = vmatprep.subr.mxu0 0.0
    %1242 = vmatpush2.msra.mxu0 0.0
    %1243 = vmatprep.subr.mxu0 0.0
    %1244 = vmatpush2.msra.mxu0 0.0
    %1245 = vmatprep.subr.mxu0 0.0
    %1246 = vmatpush2.msra.mxu0 0.0
    %1247 = vmatprep.subr.mxu0 0.0
    %1248 = vmatpush2.msra.mxu0 0.0
    %1249 = vmatprep.subr.mxu0 0.0
    %1250 = vmatpush2.msra.mxu0 0.0
    %1251 = vmatprep.subr.mxu0 0.0
    %1252 = vmatpush2.msra.mxu0 0.0
    %1253 = vmatprep.subr.mxu0 0.0
    %1254 = vmatpush2.msra.mxu0 0.0
    %1255 = vmatprep.subr.mxu0 0.0
    %1256 = vmatpush2.msra.mxu0 0.0
    %1257 = vmatprep.mubr.f32.mxu0 0.0
    %1258 = vmatmul.mubr.f32.gmra.mxu0 %v1182
    %v1259 = vpop.f32.mrf.mxu0
    %v1260 = vadd.f32 0.0, %v1259
    %v1261 = vpop.f32.mrf.mxu0
    %1262 = vmatprep.mubr.f32.mxu0 0.0
    %1263 = vmatmul.mubr.f32.gmra.mxu0 %v1185
    %v1264 = vpop.f32.mrf.mxu0
    %v1265 = vadd.f32 0.0, %v1264
    %v1266 = vpop.f32.mrf.mxu0
    %1267 = vmatprep.mubr.f32.mxu0 0.0
    %1268 = vmatmul.mubr.f32.gmra.mxu0 %v1188
    %v1269 = vpop.f32.mrf.mxu0
    %v1270 = vadd.f32 0.0, %v1269
    %v1271 = vpop.f32.mrf.mxu0
    %1272 = vmatprep.mubr.f32.mxu0 0.0
    %1273 = vmatmul.mubr.f32.gmra.mxu0 %v1191
    %v1274 = vpop.f32.mrf.mxu0
    %v1275 = vadd.f32 0.0, %v1274
    %v1276 = vpop.f32.mrf.mxu0
    %1277 = vdwg.mxu0
    %v1278 = vadd.f32 %v1175, %v1260
    %v1279 = vadd.f32 %v1176, %v1265
    %v1280 = vadd.f32 %v1177, %v1270
    %v1281 = vadd.f32 %v1178, %v1275
    %v1282 = vrot.slane %v812, 1
    %v1283 = vrot.slane %v813, 1
    %v1284 = vrot.slane %v814, 1
    %v1285 = vrot.slane %v815, 1
    %v1286 = vsel %vm500, %v1284, %v1285
    %v1287 = vsel %vm500, %v1283, %v1284
    %v1288 = vsel %vm500, %v1282, %v1283
    %v1289 = vsel %vm500, %v1285, %v1282
    %v1290 = vsel %vm525, %v1288, 0.0
    %v1291 = vsel %vm526, %v1287, 0.0
    %v1292 = vsel %vm527, %v1286, 0.0
    %v1293 = vsel %vm528, %v1289, 0.0
    %v1294 = vld [vmem:[%s4 + $0x40] sm:$0xff]
    %v1295 = vld [vmem:[%s4 + $0x48] sm:$0xff]
    %v1297 = vsel %vm869, %v1290, 0
    %v1300 = vsel %vm869, %v1291, 0
    %v1303 = vsel %vm869, %v1292, 0
    %v1306 = vsel %vm869, %v1293, 0
    %1308 = vmatprep.subr.mxu0 0.0
    %1309 = vmatpush1.msra.mxu0 0.0
    %1310 = vmatprep.subr.mxu0 0.0
    %1311 = vmatpush1.msra.mxu0 0.0
    %1312 = vmatprep.subr.mxu0 0.0
    %1313 = vmatpush1.msra.mxu0 0.0
    %1314 = vmatprep.subr.mxu0 0.0
    %1315 = vmatpush1.msra.mxu0 0.0
    %1316 = vmatprep.subr.mxu0 0.0
    %1317 = vmatpush1.msra.mxu0 0.0
    %1318 = vmatprep.subr.mxu0 0.0
    %1319 = vmatpush1.msra.mxu0 0.0
    %1320 = vmatprep.subr.mxu0 0.0
    %1321 = vmatpush1.msra.mxu0 0.0
    %1322 = vmatprep.subr.mxu0 0.0
    %1323 = vmatpush1.msra.mxu0 0.0
    %1324 = vmatprep.subr.mxu0 0.0
    %1325 = vmatpush1.msra.mxu0 0.0
    %1326 = vmatprep.subr.mxu0 0.0
    %1327 = vmatpush1.msra.mxu0 0.0
    %1328 = vmatprep.subr.mxu0 0.0
    %1329 = vmatpush1.msra.mxu0 0.0
    %1330 = vmatprep.subr.mxu0 0.0
    %1331 = vmatpush1.msra.mxu0 0.0
    %1332 = vmatprep.subr.mxu0 0.0
    %1333 = vmatpush1.msra.mxu0 0.0
    %1334 = vmatprep.subr.mxu0 0.0
    %1335 = vmatpush1.msra.mxu0 0.0
    %1336 = vmatprep.subr.mxu0 0.0
    %1337 = vmatpush1.msra.mxu0 %v1295
    %1338 = vmatprep.subr.mxu0 0.0
    %1339 = vmatpush1.msra.mxu0 %v1294
    %1340 = vmatprep.subr.mxu0 0.0
    %1341 = vmatpush2.msra.mxu0 0.0
    %1342 = vmatprep.subr.mxu0 0.0
    %1343 = vmatpush2.msra.mxu0 0.0
    %1344 = vmatprep.subr.mxu0 0.0
    %1345 = vmatpush2.msra.mxu0 0.0
    %1346 = vmatprep.subr.mxu0 0.0
    %1347 = vmatpush2.msra.mxu0 0.0
    %1348 = vmatprep.subr.mxu0 0.0
    %1349 = vmatpush2.msra.mxu0 0.0
    %1350 = vmatprep.subr.mxu0 0.0
    %1351 = vmatpush2.msra.mxu0 0.0
    %1352 = vmatprep.subr.mxu0 0.0
    %1353 = vmatpush2.msra.mxu0 0.0
    %1354 = vmatprep.subr.mxu0 0.0
    %1355 = vmatpush2.msra.mxu0 0.0
    %1356 = vmatprep.subr.mxu0 0.0
    %1357 = vmatpush2.msra.mxu0 0.0
    %1358 = vmatprep.subr.mxu0 0.0
    %1359 = vmatpush2.msra.mxu0 0.0
    %1360 = vmatprep.subr.mxu0 0.0
    %1361 = vmatpush2.msra.mxu0 0.0
    %1362 = vmatprep.subr.mxu0 0.0
    %1363 = vmatpush2.msra.mxu0 0.0
    %1364 = vmatprep.subr.mxu0 0.0
    %1365 = vmatpush2.msra.mxu0 0.0
    %1366 = vmatprep.subr.mxu0 0.0
    %1367 = vmatpush2.msra.mxu0 0.0
    %1368 = vmatprep.subr.mxu0 0.0
    %1369 = vmatpush2.msra.mxu0 0.0
    %1370 = vmatprep.subr.mxu0 0.0
    %1371 = vmatpush2.msra.mxu0 0.0
    %1372 = vmatprep.mubr.f32.mxu0 0.0
    %1373 = vmatmul.mubr.f32.gmra.mxu0 %v1297
    %v1374 = vpop.f32.mrf.mxu0
    %v1375 = vadd.f32 0.0, %v1374
    %v1376 = vpop.f32.mrf.mxu0
    %1377 = vmatprep.mubr.f32.mxu0 0.0
    %1378 = vmatmul.mubr.f32.gmra.mxu0 %v1300
    %v1379 = vpop.f32.mrf.mxu0
    %v1380 = vadd.f32 0.0, %v1379
    %v1381 = vpop.f32.mrf.mxu0
    %1382 = vmatprep.mubr.f32.mxu0 0.0
    %1383 = vmatmul.mubr.f32.gmra.mxu0 %v1303
    %v1384 = vpop.f32.mrf.mxu0
    %v1385 = vadd.f32 0.0, %v1384
    %v1386 = vpop.f32.mrf.mxu0
    %1387 = vmatprep.mubr.f32.mxu0 0.0
    %1388 = vmatmul.mubr.f32.gmra.mxu0 %v1306
    %v1389 = vpop.f32.mrf.mxu0
    %v1390 = vadd.f32 0.0, %v1389
    %v1391 = vpop.f32.mrf.mxu0
    %1392 = vdwg.mxu0
    %v1393 = vadd.f32 %v1278, %v1375
    %v1394 = vadd.f32 %v1279, %v1380
    %v1395 = vadd.f32 %v1280, %v1385
    %v1396 = vadd.f32 %v1281, %v1390
    %v1397 = vrot.slane %v812, 2
    %v1398 = vrot.slane %v813, 2
    %v1399 = vrot.slane %v814, 2
    %v1400 = vrot.slane %v815, 2
    %v1401 = vsel %vm639, %v1399, %v1400
    %v1402 = vsel %vm639, %v1398, %v1399
    %v1403 = vsel %vm639, %v1397, %v1398
    %v1404 = vsel %vm639, %v1400, %v1397
    %v1405 = vsel %vm664, %v1403, 0.0
    %v1406 = vsel %vm665, %v1402, 0.0
    %v1407 = vsel %vm666, %v1401, 0.0
    %v1408 = vsel %vm667, %v1404, 0.0
    %v1409 = vld [vmem:[%s4 + $0x50] sm:$0xff]
    %v1410 = vld [vmem:[%s4 + $0x58] sm:$0xff]
    %v1412 = vsel %vm869, %v1405, 0
    %v1415 = vsel %vm869, %v1406, 0
    %v1418 = vsel %vm869, %v1407, 0
    %v1421 = vsel %vm869, %v1408, 0
    %1423 = vmatprep.subr.mxu0 0.0
    %1424 = vmatpush1.msra.mxu0 0.0
    %1425 = vmatprep.subr.mxu0 0.0
    %1426 = vmatpush1.msra.mxu0 0.0
    %1427 = vmatprep.subr.mxu0 0.0
    %1428 = vmatpush1.msra.mxu0 0.0
    %1429 = vmatprep.subr.mxu0 0.0
    %1430 = vmatpush1.msra.mxu0 0.0
    %1431 = vmatprep.subr.mxu0 0.0
    %1432 = vmatpush1.msra.mxu0 0.0
    %1433 = vmatprep.subr.mxu0 0.0
    %1434 = vmatpush1.msra.mxu0 0.0
    %1435 = vmatprep.subr.mxu0 0.0
    %1436 = vmatpush1.msra.mxu0 0.0
    %1437 = vmatprep.subr.mxu0 0.0
    %1438 = vmatpush1.msra.mxu0 0.0
    %1439 = vmatprep.subr.mxu0 0.0
    %1440 = vmatpush1.msra.mxu0 0.0
    %1441 = vmatprep.subr.mxu0 0.0
    %1442 = vmatpush1.msra.mxu0 0.0
    %1443 = vmatprep.subr.mxu0 0.0
    %1444 = vmatpush1.msra.mxu0 0.0
    %1445 = vmatprep.subr.mxu0 0.0
    %1446 = vmatpush1.msra.mxu0 0.0
    %1447 = vmatprep.subr.mxu0 0.0
    %1448 = vmatpush1.msra.mxu0 0.0
    %1449 = vmatprep.subr.mxu0 0.0
    %1450 = vmatpush1.msra.mxu0 0.0
    %1451 = vmatprep.subr.mxu0 0.0
    %1452 = vmatpush1.msra.mxu0 %v1410
    %1453 = vmatprep.subr.mxu0 0.0
    %1454 = vmatpush1.msra.mxu0 %v1409
    %1455 = vmatprep.subr.mxu0 0.0
    %1456 = vmatpush2.msra.mxu0 0.0
    %1457 = vmatprep.subr.mxu0 0.0
    %1458 = vmatpush2.msra.mxu0 0.0
    %1459 = vmatprep.subr.mxu0 0.0
    %1460 = vmatpush2.msra.mxu0 0.0
    %1461 = vmatprep.subr.mxu0 0.0
    %1462 = vmatpush2.msra.mxu0 0.0
    %1463 = vmatprep.subr.mxu0 0.0
    %1464 = vmatpush2.msra.mxu0 0.0
    %1465 = vmatprep.subr.mxu0 0.0
    %1466 = vmatpush2.msra.mxu0 0.0
    %1467 = vmatprep.subr.mxu0 0.0
    %1468 = vmatpush2.msra.mxu0 0.0
    %1469 = vmatprep.subr.mxu0 0.0
    %1470 = vmatpush2.msra.mxu0 0.0
    %1471 = vmatprep.subr.mxu0 0.0
    %1472 = vmatpush2.msra.mxu0 0.0
    %1473 = vmatprep.subr.mxu0 0.0
    %1474 = vmatpush2.msra.mxu0 0.0
    %1475 = vmatprep.subr.mxu0 0.0
    %1476 = vmatpush2.msra.mxu0 0.0
    %1477 = vmatprep.subr.mxu0 0.0
    %1478 = vmatpush2.msra.mxu0 0.0
    %1479 = vmatprep.subr.mxu0 0.0
    %1480 = vmatpush2.msra.mxu0 0.0
    %1481 = vmatprep.subr.mxu0 0.0
    %1482 = vmatpush2.msra.mxu0 0.0
    %1483 = vmatprep.subr.mxu0 0.0
    %1484 = vmatpush2.msra.mxu0 0.0
    %1485 = vmatprep.subr.mxu0 0.0
    %1486 = vmatpush2.msra.mxu0 0.0
    %1487 = vmatprep.mubr.f32.mxu0 0.0
    %1488 = vmatmul.mubr.f32.gmra.mxu0 %v1412
    %v1489 = vpop.f32.mrf.mxu0
    %v1490 = vadd.f32 0.0, %v1489
    %v1491 = vpop.f32.mrf.mxu0
    %1492 = vmatprep.mubr.f32.mxu0 0.0
    %1493 = vmatmul.mubr.f32.gmra.mxu0 %v1415
    %v1494 = vpop.f32.mrf.mxu0
    %v1495 = vadd.f32 0.0, %v1494
    %v1496 = vpop.f32.mrf.mxu0
    %1497 = vmatprep.mubr.f32.mxu0 0.0
    %1498 = vmatmul.mubr.f32.gmra.mxu0 %v1418
    %v1499 = vpop.f32.mrf.mxu0
    %v1500 = vadd.f32 0.0, %v1499
    %v1501 = vpop.f32.mrf.mxu0
    %1502 = vmatprep.mubr.f32.mxu0 0.0
    %1503 = vmatmul.mubr.f32.gmra.mxu0 %v1421
    %v1504 = vpop.f32.mrf.mxu0
    %v1505 = vadd.f32 0.0, %v1504
    %v1506 = vpop.f32.mrf.mxu0
    %1507 = vdwg.mxu0
    %v1508 = vadd.f32 %v1393, %v1490
    %v1509 = vadd.f32 %v1394, %v1495
    %v1510 = vadd.f32 %v1395, %v1500
    %v1511 = vadd.f32 %v1396, %v1505
    %v1512 = vrot.slane %v812, 3
    %v1513 = vrot.slane %v813, 3
    %v1514 = vrot.slane %v814, 3
    %v1515 = vrot.slane %v815, 3
    %vm1516 = vcmp.lt.s32.totalorder %v67, 5
    %v1517 = vsel %vm1516, %v1514, %v1515
    %v1518 = vsel %vm1516, %v1513, %v1514
    %v1519 = vsel %vm1516, %v1512, %v1513
    %v1520 = vsel %vm1516, %v1515, %v1512
    %v1521 = vadd.s32 %v115, 3
    %v1522 = vadd.s32 %v116, 3
    %v1523 = vadd.s32 %v117, 3
    %v1524 = vadd.s32 %v118, 3
    %vm1525 = vcmp.ge.s32.totalorder %v1521, 0
    %vm1526 = vcmp.ge.s32.totalorder %v1522, 0
    %vm1527 = vcmp.ge.s32.totalorder %v1523, 0
    %vm1528 = vcmp.ge.s32.totalorder %v1524, 0
    %vm1529 = vcmp.lt.s32.totalorder %v1521, 16
    %vm1530 = vcmp.lt.s32.totalorder %v1522, 16
    %vm1531 = vcmp.lt.s32.totalorder %v1523, 16
    %vm1532 = vcmp.lt.s32.totalorder %v1524, 16
    %vm1533 = vmand %vm1525, %vm1529
    %vm1534 = vmand %vm1526, %vm1530
    %vm1535 = vmand %vm1527, %vm1531
    %vm1536 = vmand %vm1528, %vm1532
    %v1537 = vsel %vm1533, 1, 0
    %v1538 = vsel %vm1534, 1, 0
    %v1539 = vsel %vm1535, 1, 0
    %v1540 = vsel %vm1536, 1, 0
    %vm1541 = vcmp.eq.s32.totalorder %v1537, 1
    %vm1542 = vcmp.eq.s32.totalorder %v1538, 1
    %vm1543 = vcmp.eq.s32.totalorder %v1539, 1
    %vm1544 = vcmp.eq.s32.totalorder %v1540, 1
    %v1545 = vsel %vm1541, %v1519, 0.0
    %v1546 = vsel %vm1542, %v1518, 0.0
    %v1547 = vsel %vm1543, %v1517, 0.0
    %v1548 = vsel %vm1544, %v1520, 0.0
    %v1549 = vld [vmem:[%s4 + $0x60] sm:$0xff]
    %v1550 = vld [vmem:[%s4 + $0x68] sm:$0xff]
    %v1552 = vsel %vm869, %v1545, 0
    %v1555 = vsel %vm869, %v1546, 0
    %v1558 = vsel %vm869, %v1547, 0
    %v1561 = vsel %vm869, %v1548, 0
    %1563 = vmatprep.subr.mxu0 0.0
    %1564 = vmatpush1.msra.mxu0 0.0
    %1565 = vmatprep.subr.mxu0 0.0
    %1566 = vmatpush1.msra.mxu0 0.0
    %1567 = vmatprep.subr.mxu0 0.0
    %1568 = vmatpush1.msra.mxu0 0.0
    %1569 = vmatprep.subr.mxu0 0.0
    %1570 = vmatpush1.msra.mxu0 0.0
    %1571 = vmatprep.subr.mxu0 0.0
    %1572 = vmatpush1.msra.mxu0 0.0
    %1573 = vmatprep.subr.mxu0 0.0
    %1574 = vmatpush1.msra.mxu0 0.0
    %1575 = vmatprep.subr.mxu0 0.0
    %1576 = vmatpush1.msra.mxu0 0.0
    %1577 = vmatprep.subr.mxu0 0.0
    %1578 = vmatpush1.msra.mxu0 0.0
    %1579 = vmatprep.subr.mxu0 0.0
    %1580 = vmatpush1.msra.mxu0 0.0
    %1581 = vmatprep.subr.mxu0 0.0
    %1582 = vmatpush1.msra.mxu0 0.0
    %1583 = vmatprep.subr.mxu0 0.0
    %1584 = vmatpush1.msra.mxu0 0.0
    %1585 = vmatprep.subr.mxu0 0.0
    %1586 = vmatpush1.msra.mxu0 0.0
    %1587 = vmatprep.subr.mxu0 0.0
    %1588 = vmatpush1.msra.mxu0 0.0
    %1589 = vmatprep.subr.mxu0 0.0
    %1590 = vmatpush1.msra.mxu0 0.0
    %1591 = vmatprep.subr.mxu0 0.0
    %1592 = vmatpush1.msra.mxu0 %v1550
    %1593 = vmatprep.subr.mxu0 0.0
    %1594 = vmatpush1.msra.mxu0 %v1549
    %1595 = vmatprep.subr.mxu0 0.0
    %1596 = vmatpush2.msra.mxu0 0.0
    %1597 = vmatprep.subr.mxu0 0.0
    %1598 = vmatpush2.msra.mxu0 0.0
    %1599 = vmatprep.subr.mxu0 0.0
    %1600 = vmatpush2.msra.mxu0 0.0
    %1601 = vmatprep.subr.mxu0 0.0
    %1602 = vmatpush2.msra.mxu0 0.0
    %1603 = vmatprep.subr.mxu0 0.0
    %1604 = vmatpush2.msra.mxu0 0.0
    %1605 = vmatprep.subr.mxu0 0.0
    %1606 = vmatpush2.msra.mxu0 0.0
    %1607 = vmatprep.subr.mxu0 0.0
    %1608 = vmatpush2.msra.mxu0 0.0
    %1609 = vmatprep.subr.mxu0 0.0
    %1610 = vmatpush2.msra.mxu0 0.0
    %1611 = vmatprep.subr.mxu0 0.0
    %1612 = vmatpush2.msra.mxu0 0.0
    %1613 = vmatprep.subr.mxu0 0.0
    %1614 = vmatpush2.msra.mxu0 0.0
    %1615 = vmatprep.subr.mxu0 0.0
    %1616 = vmatpush2.msra.mxu0 0.0
    %1617 = vmatprep.subr.mxu0 0.0
    %1618 = vmatpush2.msra.mxu0 0.0
    %1619 = vmatprep.subr.mxu0 0.0
    %1620 = vmatpush2.msra.mxu0 0.0
    %1621 = vmatprep.subr.mxu0 0.0
    %1622 = vmatpush2.msra.mxu0 0.0
    %1623 = vmatprep.subr.mxu0 0.0
    %1624 = vmatpush2.msra.mxu0 0.0
    %1625 = vmatprep.subr.mxu0 0.0
    %1626 = vmatpush2.msra.mxu0 0.0
    %1627 = vmatprep.mubr.f32.mxu0 0.0
    %1628 = vmatmul.mubr.f32.gmra.mxu0 %v1552
    %v1629 = vpop.f32.mrf.mxu0
    %v1630 = vadd.f32 0.0, %v1629
    %v1631 = vpop.f32.mrf.mxu0
    %1632 = vmatprep.mubr.f32.mxu0 0.0
    %1633 = vmatmul.mubr.f32.gmra.mxu0 %v1555
    %v1634 = vpop.f32.mrf.mxu0
    %v1635 = vadd.f32 0.0, %v1634
    %v1636 = vpop.f32.mrf.mxu0
    %1637 = vmatprep.mubr.f32.mxu0 0.0
    %1638 = vmatmul.mubr.f32.gmra.mxu0 %v1558
    %v1639 = vpop.f32.mrf.mxu0
    %v1640 = vadd.f32 0.0, %v1639
    %v1641 = vpop.f32.mrf.mxu0
    %1642 = vmatprep.mubr.f32.mxu0 0.0
    %1643 = vmatmul.mubr.f32.gmra.mxu0 %v1561
    %v1644 = vpop.f32.mrf.mxu0
    %v1645 = vadd.f32 0.0, %v1644
    %v1646 = vpop.f32.mrf.mxu0
    %1647 = vdwg.mxu0
    %v1648 = vadd.f32 %v1508, %v1630
    %v1649 = vadd.f32 %v1509, %v1635
    %v1650 = vadd.f32 %v1510, %v1640
    %v1651 = vadd.f32 %v1511, %v1645
    %v1652 = vld [vmem:[%s5] sm:$0x1]
    %v1654 = vlaneseq
    %v1655 = vshrl.u32 %v1654, 7
    %v1656 = vsub.s32 0, %v1655
    %v1657 = vrot.slane %v1652, %v1656
    %v1659 = vmul.f32 %v1648, %v1657
    %v1660 = vmul.f32 %v1649, %v1657
    %v1661 = vmul.f32 %v1650, %v1657
    %v1662 = vmul.f32 %v1651, %v1657
    %v1663 = vld [vmem:[%s6] sm:$0x1]
    %v1665 = vlaneseq
    %v1666 = vshrl.u32 %v1665, 7
    %v1667 = vsub.s32 0, %v1666
    %v1668 = vrot.slane %v1663, %v1667
    %v1670 = vadd.f32 %v1659, %v1668
    %v1671 = vadd.f32 %v1660, %v1668
    %v1672 = vadd.f32 %v1661, %v1668
    %v1673 = vadd.f32 %v1662, %v1668
    %v1674 = vmul.f32 %v1670, 0.5
    %v1675 = vmul.f32 %v1671, 0.5
    %v1676 = vmul.f32 %v1672, 0.5
    %v1677 = vmul.f32 %v1673, 0.5
    %v1678 = vmul.f32 %v1670, 0.70710677
    %v1679 = vmul.f32 %v1671, 0.70710677
    %v1680 = vmul.f32 %v1672, 0.70710677
    %v1681 = vmul.f32 %v1673, 0.70710677
    %v1682 = verf.f32.pop %v1678
    %v1683 = verf.f32.pop %v1679
    %v1684 = verf.f32.pop %v1680
    %v1685 = verf.f32.pop %v1681
    %v1686 = vadd.f32 %v1682, 1.0
    %v1687 = vadd.f32 %v1683, 1.0
    %v1688 = vadd.f32 %v1684, 1.0
    %v1689 = vadd.f32 %v1685, 1.0
    %v1690 = vmul.f32 %v1674, %v1686
    %v1691 = vmul.f32 %v1675, %v1687
    %v1692 = vmul.f32 %v1676, %v1688
    %v1693 = vmul.f32 %v1677, %v1689
    %v1694 = vld [vmem:[%s7] sm:$0xff]
    %v1695 = vld [vmem:[%s7 + $0x8] sm:$0x1]
    %v1696 = vrot.slane %v1690, 4
    %v1697 = vrot.slane %v1691, 4
    %v1698 = vrot.slane %v1692, 4
    %v1699 = vrot.slane %v1693, 4
    %vm1700 = vcmp.lt.s32.totalorder %v67, 4
    %v1701 = vsel %vm1700, %v1698, %v1699
    %v1702 = vsel %vm1700, %v1697, %v1698
    %v1703 = vsel %vm1700, %v1696, %v1697
    %v1704 = vsel %vm1700, %v1699, %v1696
    %v1705 = vadd.s32 %v115, 4294967292
    %v1706 = vadd.s32 %v116, 4294967292
    %v1707 = vadd.s32 %v117, 4294967292
    %v1708 = vadd.s32 %v118, 4294967292
    %vm1709 = vcmp.ge.s32.totalorder %v1705, 0
    %vm1710 = vcmp.ge.s32.totalorder %v1706, 0
    %vm1711 = vcmp.ge.s32.totalorder %v1707, 0
    %vm1712 = vcmp.ge.s32.totalorder %v1708, 0
    %vm1713 = vcmp.lt.s32.totalorder %v1705, 16
    %vm1714 = vcmp.lt.s32.totalorder %v1706, 16
    %vm1715 = vcmp.lt.s32.totalorder %v1707, 16
    %vm1716 = vcmp.lt.s32.totalorder %v1708, 16
    %vm1717 = vmand %vm1709, %vm1713
    %vm1718 = vmand %vm1710, %vm1714
    %vm1719 = vmand %vm1711, %vm1715
    %vm1720 = vmand %vm1712, %vm1716
    %v1721 = vsel %vm1717, 1, 0
    %v1722 = vsel %vm1718, 1, 0
    %v1723 = vsel %vm1719, 1, 0
    %v1724 = vsel %vm1720, 1, 0
    %vm1725 = vcmp.eq.s32.totalorder %v1721, 1
    %vm1726 = vcmp.eq.s32.totalorder %v1722, 1
    %vm1727 = vcmp.eq.s32.totalorder %v1723, 1
    %vm1728 = vcmp.eq.s32.totalorder %v1724, 1
    %v1729 = vsel %vm1725, %v1704, 0.0
    %v1730 = vsel %vm1726, %v1703, 0.0
    %v1731 = vsel %vm1727, %v1702, 0.0
    %v1732 = vsel %vm1728, %v1701, 0.0
    %v1733 = vlaneseq
    %v1734 = vshrl.u32 %v1733, 7
    %v1735 = vsub.s32 0, %v1734
    %v1736 = vrot.slane %v1694, %v1735
    %v1737 = vmul.f32 %v1729, %v1736
    %v1738 = vmul.f32 %v1730, %v1736
    %v1739 = vmul.f32 %v1731, %v1736
    %v1740 = vmul.f32 %v1732, %v1736
    %v1741 = vadd.f32 %v1737, 0.0
    %v1742 = vadd.f32 %v1738, 0.0
    %v1743 = vadd.f32 %v1739, 0.0
    %v1744 = vadd.f32 %v1740, 0.0
    %v1745 = vrot.slane %v1690, 5
    %v1746 = vrot.slane %v1691, 5
    %v1747 = vrot.slane %v1692, 5
    %v1748 = vrot.slane %v1693, 5
    %v1749 = vsel %vm820, %v1747, %v1748
    %v1750 = vsel %vm820, %v1746, %v1747
    %v1751 = vsel %vm820, %v1745, %v1746
    %v1752 = vsel %vm820, %v1748, %v1745
    %v1753 = vsel %vm845, %v1752, 0.0
    %v1754 = vsel %vm846, %v1751, 0.0
    %v1755 = vsel %vm847, %v1750, 0.0
    %v1756 = vsel %vm848, %v1749, 0.0
    %v1757 = vlaneseq
    %v1758 = vshrl.u32 %v1757, 7
    %v1759 = vsub.s32 1, %v1758
    %v1760 = vrot.slane %v1694, %v1759
    %v1761 = vmul.f32 %v1753, %v1760
    %v1762 = vmul.f32 %v1754, %v1760
    %v1763 = vmul.f32 %v1755, %v1760
    %v1764 = vmul.f32 %v1756, %v1760
    %v1765 = vadd.f32 %v1741, %v1761
    %v1766 = vadd.f32 %v1742, %v1762
    %v1767 = vadd.f32 %v1743, %v1763
    %v1768 = vadd.f32 %v1744, %v1764
    %v1769 = vrot.slane %v1690, 6
    %v1770 = vrot.slane %v1691, 6
    %v1771 = vrot.slane %v1692, 6
    %v1772 = vrot.slane %v1693, 6
    %v1773 = vsel %vm127, %v1771, %v1772
    %v1774 = vsel %vm127, %v1770, %v1771
    %v1775 = vsel %vm127, %v1769, %v1770
    %v1776 = vsel %vm127, %v1772, %v1769
    %v1777 = vsel %vm152, %v1776, 0.0
    %v1778 = vsel %vm153, %v1775, 0.0
    %v1779 = vsel %vm154, %v1774, 0.0
    %v1780 = vsel %vm155, %v1773, 0.0
    %v1781 = vlaneseq
    %v1782 = vshrl.u32 %v1781, 7
    %v1783 = vsub.s32 2, %v1782
    %v1784 = vrot.slane %v1694, %v1783
    %v1785 = vmul.f32 %v1777, %v1784
    %v1786 = vmul.f32 %v1778, %v1784
    %v1787 = vmul.f32 %v1779, %v1784
    %v1788 = vmul.f32 %v1780, %v1784
    %v1789 = vadd.f32 %v1765, %v1785
    %v1790 = vadd.f32 %v1766, %v1786
    %v1791 = vadd.f32 %v1767, %v1787
    %v1792 = vadd.f32 %v1768, %v1788
    %v1793 = vrot.slane %v1690, 7
    %v1794 = vrot.slane %v1691, 7
    %v1795 = vrot.slane %v1692, 7
    %v1796 = vrot.slane %v1693, 7
    %v1797 = vsel %vm165, %v1795, %v1796
    %v1798 = vsel %vm165, %v1794, %v1795
    %v1799 = vsel %vm165, %v1793, %v1794
    %v1800 = vsel %vm165, %v1796, %v1793
    %v1801 = vsel %vm190, %v1800, 0.0
    %v1802 = vsel %vm191, %v1799, 0.0
    %v1803 = vsel %vm192, %v1798, 0.0
    %v1804 = vsel %vm193, %v1797, 0.0
    %v1805 = vlaneseq
    %v1806 = vshrl.u32 %v1805, 7
    %v1807 = vsub.s32 3, %v1806
    %v1808 = vrot.slane %v1694, %v1807
    %v1809 = vmul.f32 %v1801, %v1808
    %v1810 = vmul.f32 %v1802, %v1808
    %v1811 = vmul.f32 %v1803, %v1808
    %v1812 = vmul.f32 %v1804, %v1808
    %v1813 = vadd.f32 %v1789, %v1809
    %v1814 = vadd.f32 %v1790, %v1810
    %v1815 = vadd.f32 %v1791, %v1811
    %v1816 = vadd.f32 %v1792, %v1812
    %v1817 = vlaneseq
    %v1818 = vshrl.u32 %v1817, 7
    %v1819 = vsub.s32 4, %v1818
    %v1820 = vrot.slane %v1694, %v1819
    %v1821 = vmul.f32 %v1690, %v1820
    %v1822 = vmul.f32 %v1691, %v1820
    %v1823 = vmul.f32 %v1692, %v1820
    %v1824 = vmul.f32 %v1693, %v1820
    %v1825 = vadd.f32 %v1813, %v1821
    %v1826 = vadd.f32 %v1814, %v1822
    %v1827 = vadd.f32 %v1815, %v1823
    %v1828 = vadd.f32 %v1816, %v1824
    %v1829 = vrot.slane %v1690, 1
    %v1830 = vrot.slane %v1691, 1
    %v1831 = vrot.slane %v1692, 1
    %v1832 = vrot.slane %v1693, 1
    %v1833 = vsel %vm500, %v1831, %v1832
    %v1834 = vsel %vm500, %v1830, %v1831
    %v1835 = vsel %vm500, %v1829, %v1830
    %v1836 = vsel %vm500, %v1832, %v1829
    %v1837 = vsel %vm525, %v1835, 0.0
    %v1838 = vsel %vm526, %v1834, 0.0
    %v1839 = vsel %vm527, %v1833, 0.0
    %v1840 = vsel %vm528, %v1836, 0.0
    %v1841 = vlaneseq
    %v1842 = vshrl.u32 %v1841, 7
    %v1843 = vsub.s32 5, %v1842
    %v1844 = vrot.slane %v1694, %v1843
    %v1845 = vmul.f32 %v1837, %v1844
    %v1846 = vmul.f32 %v1838, %v1844
    %v1847 = vmul.f32 %v1839, %v1844
    %v1848 = vmul.f32 %v1840, %v1844
    %v1849 = vadd.f32 %v1825, %v1845
    %v1850 = vadd.f32 %v1826, %v1846
    %v1851 = vadd.f32 %v1827, %v1847
    %v1852 = vadd.f32 %v1828, %v1848
    %v1853 = vrot.slane %v1690, 2
    %v1854 = vrot.slane %v1691, 2
    %v1855 = vrot.slane %v1692, 2
    %v1856 = vrot.slane %v1693, 2
    %v1857 = vsel %vm639, %v1855, %v1856
    %v1858 = vsel %vm639, %v1854, %v1855
    %v1859 = vsel %vm639, %v1853, %v1854
    %v1860 = vsel %vm639, %v1856, %v1853
    %v1861 = vsel %vm664, %v1859, 0.0
    %v1862 = vsel %vm665, %v1858, 0.0
    %v1863 = vsel %vm666, %v1857, 0.0
    %v1864 = vsel %vm667, %v1860, 0.0
    %v1865 = vlaneseq
    %v1866 = vshrl.u32 %v1865, 7
    %v1867 = vsub.s32 6, %v1866
    %v1868 = vrot.slane %v1694, %v1867
    %v1869 = vmul.f32 %v1861, %v1868
    %v1870 = vmul.f32 %v1862, %v1868
    %v1871 = vmul.f32 %v1863, %v1868
    %v1872 = vmul.f32 %v1864, %v1868
    %v1873 = vadd.f32 %v1849, %v1869
    %v1874 = vadd.f32 %v1850, %v1870
    %v1875 = vadd.f32 %v1851, %v1871
    %v1876 = vadd.f32 %v1852, %v1872
    %v1877 = vrot.slane %v1690, 3
    %v1878 = vrot.slane %v1691, 3
    %v1879 = vrot.slane %v1692, 3
    %v1880 = vrot.slane %v1693, 3
    %v1881 = vsel %vm1516, %v1879, %v1880
    %v1882 = vsel %vm1516, %v1878, %v1879
    %v1883 = vsel %vm1516, %v1877, %v1878
    %v1884 = vsel %vm1516, %v1880, %v1877
    %v1885 = vsel %vm1541, %v1883, 0.0
    %v1886 = vsel %vm1542, %v1882, 0.0
    %v1887 = vsel %vm1543, %v1881, 0.0
    %v1888 = vsel %vm1544, %v1884, 0.0
    %v1889 = vlaneseq
    %v1890 = vshrl.u32 %v1889, 7
    %v1891 = vsub.s32 7, %v1890
    %v1892 = vrot.slane %v1694, %v1891
    %v1893 = vmul.f32 %v1885, %v1892
    %v1894 = vmul.f32 %v1886, %v1892
    %v1895 = vmul.f32 %v1887, %v1892
    %v1896 = vmul.f32 %v1888, %v1892
    %v1897 = vadd.f32 %v1873, %v1893
    %v1898 = vadd.f32 %v1874, %v1894
    %v1899 = vadd.f32 %v1875, %v1895
    %v1900 = vadd.f32 %v1876, %v1896
    %v1901 = vadd.s32 %v115, 4
    %v1902 = vadd.s32 %v116, 4
    %v1903 = vadd.s32 %v117, 4
    %v1904 = vadd.s32 %v118, 4
    %vm1905 = vcmp.ge.s32.totalorder %v1901, 0
    %vm1906 = vcmp.ge.s32.totalorder %v1902, 0
    %vm1907 = vcmp.ge.s32.totalorder %v1903, 0
    %vm1908 = vcmp.ge.s32.totalorder %v1904, 0
    %vm1909 = vcmp.lt.s32.totalorder %v1901, 16
    %vm1910 = vcmp.lt.s32.totalorder %v1902, 16
    %vm1911 = vcmp.lt.s32.totalorder %v1903, 16
    %vm1912 = vcmp.lt.s32.totalorder %v1904, 16
    %vm1913 = vmand %vm1905, %vm1909
    %vm1914 = vmand %vm1906, %vm1910
    %vm1915 = vmand %vm1907, %vm1911
    %vm1916 = vmand %vm1908, %vm1912
    %v1917 = vsel %vm1913, 1, 0
    %v1918 = vsel %vm1914, 1, 0
    %v1919 = vsel %vm1915, 1, 0
    %v1920 = vsel %vm1916, 1, 0
    %vm1921 = vcmp.eq.s32.totalorder %v1917, 1
    %vm1922 = vcmp.eq.s32.totalorder %v1918, 1
    %vm1923 = vcmp.eq.s32.totalorder %v1919, 1
    %vm1924 = vcmp.eq.s32.totalorder %v1920, 1
    %v1925 = vsel %vm1921, %v1703, 0.0
    %v1926 = vsel %vm1922, %v1702, 0.0
    %v1927 = vsel %vm1923, %v1701, 0.0
    %v1928 = vsel %vm1924, %v1704, 0.0
    %v1929 = vlaneseq
    %v1930 = vshrl.u32 %v1929, 7
    %v1931 = vsub.s32 0, %v1930
    %v1932 = vrot.slane %v1695, %v1931
    %v1933 = vmul.f32 %v1925, %v1932
    %v1934 = vmul.f32 %v1926, %v1932
    %v1935 = vmul.f32 %v1927, %v1932
    %v1936 = vmul.f32 %v1928, %v1932
    %v1937 = vadd.f32 %v1897, %v1933
    %v1938 = vadd.f32 %v1898, %v1934
    %v1939 = vadd.f32 %v1899, %v1935
    %v1940 = vadd.f32 %v1900, %v1936
    %v1941 = vld [vmem:[%s8] sm:$0x1]
    %v1943 = vlaneseq
    %v1944 = vshrl.u32 %v1943, 7
    %v1945 = vsub.s32 0, %v1944
    %v1946 = vrot.slane %v1941, %v1945
    %v1948 = vmul.f32 %v1937, %v1946
    %v1949 = vmul.f32 %v1938, %v1946
    %v1950 = vmul.f32 %v1939, %v1946
    %v1951 = vmul.f32 %v1940, %v1946
    %v1952 = vld [vmem:[%s9] sm:$0x1]
    %v1954 = vlaneseq
    %v1955 = vshrl.u32 %v1954, 7
    %v1956 = vsub.s32 0, %v1955
    %v1957 = vrot.slane %v1952, %v1956
    %v1959 = vadd.f32 %v1948, %v1957
    %v1960 = vadd.f32 %v1949, %v1957
    %v1961 = vadd.f32 %v1950, %v1957
    %v1962 = vadd.f32 %v1951, %v1957
    %v1963 = vmul.f32 %v1959, 0.5
    %v1964 = vmul.f32 %v1960, 0.5
    %v1965 = vmul.f32 %v1961, 0.5
    %v1966 = vmul.f32 %v1962, 0.5
    %v1967 = vmul.f32 %v1959, 0.70710677
    %v1968 = vmul.f32 %v1960, 0.70710677
    %v1969 = vmul.f32 %v1961, 0.70710677
    %v1970 = vmul.f32 %v1962, 0.70710677
    %v1971 = verf.f32.pop %v1967
    %v1972 = verf.f32.pop %v1968
    %v1973 = verf.f32.pop %v1969
    %v1974 = verf.f32.pop %v1970
    %v1975 = vadd.f32 %v1971, 1.0
    %v1976 = vadd.f32 %v1972, 1.0
    %v1977 = vadd.f32 %v1973, 1.0
    %v1978 = vadd.f32 %v1974, 1.0
    %v1979 = vmul.f32 %v1963, %v1975
    %v1980 = vmul.f32 %v1964, %v1976
    %v1981 = vmul.f32 %v1965, %v1977
    %v1982 = vmul.f32 %v1966, %v1978
    %v1987 = vcombine.high %v1979, %v1979
    %v1989 = vunpack.c.l.s4 1983009808
    %v1990 = vunpack.c.0.s8 %v1989
    %v1991 = vlaneseq
    %v1992 = vshrl.u32 %v1991, 7
    %v1993 = vsub.s32 %v1990, %v1992
    %v1994 = vrot.slane %v1979, %v1993
    %v1996 = vunpack.c.l.s4 1983009808
    %v1997 = vunpack.c.0.s8 %v1996
    %v1998 = vlaneseq
    %v1999 = vshrl.u32 %v1998, 7
    %v2000 = vsub.s32 %v1997, %v1999
    %v2001 = vrot.slane %v1987, %v2000
    %v2002 = vcombine.high %v1994, %v1994
    %v2003 = vcombine.high %v2001, %v2001
    %v2004 = vcombine.high %v1980, %v1980
    %v2006 = vunpack.c.l.s4 1983009808
    %v2007 = vunpack.c.0.s8 %v2006
    %v2008 = vlaneseq
    %v2009 = vshrl.u32 %v2008, 7
    %v2010 = vsub.s32 %v2007, %v2009
    %v2011 = vrot.slane %v1980, %v2010
    %v2013 = vunpack.c.l.s4 1983009808
    %v2014 = vunpack.c.0.s8 %v2013
    %v2015 = vlaneseq
    %v2016 = vshrl.u32 %v2015, 7
    %v2017 = vsub.s32 %v2014, %v2016
    %v2018 = vrot.slane %v2004, %v2017
    %v2019 = vcombine.high %v2011, %v2011
    %v2020 = vcombine.high %v2018, %v2018
    %v2021 = vcombine.high %v1981, %v1981
    %v2023 = vunpack.c.l.s4 1983009808
    %v2024 = vunpack.c.0.s8 %v2023
    %v2025 = vlaneseq
    %v2026 = vshrl.u32 %v2025, 7
    %v2027 = vsub.s32 %v2024, %v2026
    %v2028 = vrot.slane %v1981, %v2027
    %v2030 = vunpack.c.l.s4 1983009808
    %v2031 = vunpack.c.0.s8 %v2030
    %v2032 = vlaneseq
    %v2033 = vshrl.u32 %v2032, 7
    %v2034 = vsub.s32 %v2031, %v2033
    %v2035 = vrot.slane %v2021, %v2034
    %v2036 = vcombine.high %v2028, %v2028
    %v2037 = vcombine.high %v2035, %v2035
    %v2038 = vcombine.high %v1982, %v1982
    %v2040 = vunpack.c.l.s4 1983009808
    %v2041 = vunpack.c.0.s8 %v2040
    %v2042 = vlaneseq
    %v2043 = vshrl.u32 %v2042, 7
    %v2044 = vsub.s32 %v2041, %v2043
    %v2045 = vrot.slane %v1982, %v2044
    %v2047 = vunpack.c.l.s4 1983009808
    %v2048 = vunpack.c.0.s8 %v2047
    %v2049 = vlaneseq
    %v2050 = vshrl.u32 %v2049, 7
    %v2051 = vsub.s32 %v2048, %v2050
    %v2052 = vrot.slane %v2038, %v2051
    %v2053 = vcombine.high %v2045, %v2045
    %v2054 = vcombine.high %v2052, %v2052
    %vm2071 = vcmask 254976
    %v2072 = vsel %vm2071, %v1994, -inf
    %v2073 = vrot.slane %v2072, 4
    %v2074 = vmax.f32 %v2072, %v2073
    %v2075 = vrot.slane %v2074, 2
    %v2076 = vmax.f32 %v2074, %v2075
    %v2077 = vrot.slane %v2076, 1
    %v2078 = vmax.f32 %v2076, %v2077
    %v2079 = vsel %vm2071, %v2002, -inf
    %v2080 = vrot.slane %v2079, 4
    %v2081 = vmax.f32 %v2079, %v2080
    %v2082 = vrot.slane %v2081, 2
    %v2083 = vmax.f32 %v2081, %v2082
    %v2084 = vrot.slane %v2083, 1
    %v2085 = vmax.f32 %v2083, %v2084
    %v2086 = vsel %vm2071, %v2001, -inf
    %v2087 = vrot.slane %v2086, 4
    %v2088 = vmax.f32 %v2086, %v2087
    %v2089 = vrot.slane %v2088, 2
    %v2090 = vmax.f32 %v2088, %v2089
    %v2091 = vrot.slane %v2090, 1
    %v2092 = vmax.f32 %v2090, %v2091
    %v2093 = vsel %vm2071, %v2003, -inf
    %v2094 = vrot.slane %v2093, 4
    %v2095 = vmax.f32 %v2093, %v2094
    %v2096 = vrot.slane %v2095, 2
    %v2097 = vmax.f32 %v2095, %v2096
    %v2098 = vrot.slane %v2097, 1
    %v2099 = vmax.f32 %v2097, %v2098
    %v2100 = vsel %vm2071, %v2011, -inf
    %v2101 = vrot.slane %v2100, 4
    %v2102 = vmax.f32 %v2100, %v2101
    %v2103 = vrot.slane %v2102, 2
    %v2104 = vmax.f32 %v2102, %v2103
    %v2105 = vrot.slane %v2104, 1
    %v2106 = vmax.f32 %v2104, %v2105
    %v2107 = vsel %vm2071, %v2019, -inf
    %v2108 = vrot.slane %v2107, 4
    %v2109 = vmax.f32 %v2107, %v2108
    %v2110 = vrot.slane %v2109, 2
    %v2111 = vmax.f32 %v2109, %v2110
    %v2112 = vrot.slane %v2111, 1
    %v2113 = vmax.f32 %v2111, %v2112
    %v2114 = vsel %vm2071, %v2018, -inf
    %v2115 = vrot.slane %v2114, 4
    %v2116 = vmax.f32 %v2114, %v2115
    %v2117 = vrot.slane %v2116, 2
    %v2118 = vmax.f32 %v2116, %v2117
    %v2119 = vrot.slane %v2118, 1
    %v2120 = vmax.f32 %v2118, %v2119
    %v2121 = vsel %vm2071, %v2020, -inf
    %v2122 = vrot.slane %v2121, 4
    %v2123 = vmax.f32 %v2121, %v2122
    %v2124 = vrot.slane %v2123, 2
    %v2125 = vmax.f32 %v2123, %v2124
    %v2126 = vrot.slane %v2125, 1
    %v2127 = vmax.f32 %v2125, %v2126
    %v2128 = vsel %vm2071, %v2028, -inf
    %v2129 = vrot.slane %v2128, 4
    %v2130 = vmax.f32 %v2128, %v2129
    %v2131 = vrot.slane %v2130, 2
    %v2132 = vmax.f32 %v2130, %v2131
    %v2133 = vrot.slane %v2132, 1
    %v2134 = vmax.f32 %v2132, %v2133
    %v2135 = vsel %vm2071, %v2036, -inf
    %v2136 = vrot.slane %v2135, 4
    %v2137 = vmax.f32 %v2135, %v2136
    %v2138 = vrot.slane %v2137, 2
    %v2139 = vmax.f32 %v2137, %v2138
    %v2140 = vrot.slane %v2139, 1
    %v2141 = vmax.f32 %v2139, %v2140
    %v2142 = vsel %vm2071, %v2035, -inf
    %v2143 = vrot.slane %v2142, 4
    %v2144 = vmax.f32 %v2142, %v2143
    %v2145 = vrot.slane %v2144, 2
    %v2146 = vmax.f32 %v2144, %v2145
    %v2147 = vrot.slane %v2146, 1
    %v2148 = vmax.f32 %v2146, %v2147
    %v2149 = vsel %vm2071, %v2037, -inf
    %v2150 = vrot.slane %v2149, 4
    %v2151 = vmax.f32 %v2149, %v2150
    %v2152 = vrot.slane %v2151, 2
    %v2153 = vmax.f32 %v2151, %v2152
    %v2154 = vrot.slane %v2153, 1
    %v2155 = vmax.f32 %v2153, %v2154
    %v2156 = vsel %vm2071, %v2045, -inf
    %v2157 = vrot.slane %v2156, 4
    %v2158 = vmax.f32 %v2156, %v2157
    %v2159 = vrot.slane %v2158, 2
    %v2160 = vmax.f32 %v2158, %v2159
    %v2161 = vrot.slane %v2160, 1
    %v2162 = vmax.f32 %v2160, %v2161
    %v2163 = vsel %vm2071, %v2053, -inf
    %v2164 = vrot.slane %v2163, 4
    %v2165 = vmax.f32 %v2163, %v2164
    %v2166 = vrot.slane %v2165, 2
    %v2167 = vmax.f32 %v2165, %v2166
    %v2168 = vrot.slane %v2167, 1
    %v2169 = vmax.f32 %v2167, %v2168
    %v2170 = vsel %vm2071, %v2052, -inf
    %v2171 = vrot.slane %v2170, 4
    %v2172 = vmax.f32 %v2170, %v2171
    %v2173 = vrot.slane %v2172, 2
    %v2174 = vmax.f32 %v2172, %v2173
    %v2175 = vrot.slane %v2174, 1
    %v2176 = vmax.f32 %v2174, %v2175
    %v2177 = vsel %vm2071, %v2054, -inf
    %v2178 = vrot.slane %v2177, 4
    %v2179 = vmax.f32 %v2177, %v2178
    %v2180 = vrot.slane %v2179, 2
    %v2181 = vmax.f32 %v2179, %v2180
    %v2182 = vrot.slane %v2181, 1
    %v2183 = vmax.f32 %v2181, %v2182
    %v2184 = vld [vmem:[%s10] sm:$0xff]
    %v2185 = vld [vmem:[%s10 + $0x8] sm:$0xff]
    %v2186 = vld [vmem:[%s10 + $0x10] sm:$0xff]
    %v2187 = vld [vmem:[%s10 + $0x18] sm:$0xff]
    %v2188 = vld [vmem:[%s11] sm:$0x1]
    %v2190 = vlaneseq
    %v2191 = vshrl.u32 %v2190, 7
    %v2192 = vsub.s32 0, %v2191
    %v2193 = vrot.slane %v2188, %v2192
    %vm2211 = vcmask 1041409
    %v2212 = vsel %vm2211, %v2085, %v2078
    %vm2213 = vcmask 1042434
    %v2214 = vsel %vm2213, %v2092, %v2212
    %vm2215 = vcmask 1043459
    %v2216 = vsel %vm2215, %v2099, %v2214
    %vm2217 = vcmask 1044484
    %v2218 = vsel %vm2217, %v2106, %v2216
    %vm2219 = vcmask 1045509
    %v2220 = vsel %vm2219, %v2113, %v2218
    %vm2221 = vcmask 1046534
    %v2222 = vsel %vm2221, %v2120, %v2220
    %vm2223 = vcmask 1047559
    %v2224 = vsel %vm2223, %v2127, %v2222
    %v2225 = vsel %vm2211, %v2141, %v2134
    %v2226 = vsel %vm2213, %v2148, %v2225
    %v2227 = vsel %vm2215, %v2155, %v2226
    %v2228 = vsel %vm2217, %v2162, %v2227
    %v2229 = vsel %vm2219, %v2169, %v2228
    %v2230 = vsel %vm2221, %v2176, %v2229
    %v2231 = vsel %vm2223, %v2183, %v2230
    %vm2232 = vcmask 261120
    %v2233 = vsel %vm2232, %v2224, 0
    %v2235 = vsel %vm2232, %v2231, 0
    %2237 = vmatprep.subr.mxu0 0.0
    %2238 = vmatpush1.msra.mxu0 0.0
    %2239 = vmatprep.subr.mxu0 0.0
    %2240 = vmatpush1.msra.mxu0 0.0
    %2241 = vmatprep.subr.mxu0 0.0
    %2242 = vmatpush1.msra.mxu0 0.0
    %2243 = vmatprep.subr.mxu0 0.0
    %2244 = vmatpush1.msra.mxu0 0.0
    %2245 = vmatprep.subr.mxu0 0.0
    %2246 = vmatpush1.msra.mxu0 0.0
    %2247 = vmatprep.subr.mxu0 0.0
    %2248 = vmatpush1.msra.mxu0 0.0
    %2249 = vmatprep.subr.mxu0 0.0
    %2250 = vmatpush1.msra.mxu0 0.0
    %2251 = vmatprep.subr.mxu0 0.0
    %2252 = vmatpush1.msra.mxu0 0.0
    %2253 = vmatprep.subr.mxu0 0.0
    %2254 = vmatpush1.msra.mxu0 0.0
    %2255 = vmatprep.subr.mxu0 0.0
    %2256 = vmatpush1.msra.mxu0 0.0
    %2257 = vmatprep.subr.mxu0 0.0
    %2258 = vmatpush1.msra.mxu0 0.0
    %2259 = vmatprep.subr.mxu0 0.0
    %2260 = vmatpush1.msra.mxu0 0.0
    %2261 = vmatprep.subr.mxu0 0.0
    %2262 = vmatpush1.msra.mxu0 %v2187
    %2263 = vmatprep.subr.mxu0 0.0
    %2264 = vmatpush1.msra.mxu0 %v2186
    %2265 = vmatprep.subr.mxu0 0.0
    %2266 = vmatpush1.msra.mxu0 %v2185
    %2267 = vmatprep.subr.mxu0 0.0
    %2268 = vmatpush1.msra.mxu0 %v2184
    %2269 = vmatprep.subr.mxu0 0.0
    %2270 = vmatpush2.msra.mxu0 0.0
    %2271 = vmatprep.subr.mxu0 0.0
    %2272 = vmatpush2.msra.mxu0 0.0
    %2273 = vmatprep.subr.mxu0 0.0
    %2274 = vmatpush2.msra.mxu0 0.0
    %2275 = vmatprep.subr.mxu0 0.0
    %2276 = vmatpush2.msra.mxu0 0.0
    %2277 = vmatprep.subr.mxu0 0.0
    %2278 = vmatpush2.msra.mxu0 0.0
    %2279 = vmatprep.subr.mxu0 0.0
    %2280 = vmatpush2.msra.mxu0 0.0
    %2281 = vmatprep.subr.mxu0 0.0
    %2282 = vmatpush2.msra.mxu0 0.0
    %2283 = vmatprep.subr.mxu0 0.0
    %2284 = vmatpush2.msra.mxu0 0.0
    %2285 = vmatprep.subr.mxu0 0.0
    %2286 = vmatpush2.msra.mxu0 0.0
    %2287 = vmatprep.subr.mxu0 0.0
    %2288 = vmatpush2.msra.mxu0 0.0
    %2289 = vmatprep.subr.mxu0 0.0
    %2290 = vmatpush2.msra.mxu0 0.0
    %2291 = vmatprep.subr.mxu0 0.0
    %2292 = vmatpush2.msra.mxu0 0.0
    %2293 = vmatprep.subr.mxu0 0.0
    %2294 = vmatpush2.msra.mxu0 0.0
    %2295 = vmatprep.subr.mxu0 0.0
    %2296 = vmatpush2.msra.mxu0 0.0
    %2297 = vmatprep.subr.mxu0 0.0
    %2298 = vmatpush2.msra.mxu0 0.0
    %2299 = vmatprep.subr.mxu0 0.0
    %2300 = vmatpush2.msra.mxu0 0.0
    %2301 = vmatprep.mubr.f32.mxu0 0.0
    %2302 = vmatmul.mubr.f32.gmra.mxu0 %v2233
    %v2303 = vpop.f32.mrf.mxu0
    %v2304 = vadd.f32 %v2193, %v2303
    %v2305 = vpop.f32.mrf.mxu0
    %2306 = vmatprep.mubr.f32.mxu0 0.0
    %2307 = vmatmul.mubr.f32.gmra.mxu0 %v2235
    %v2308 = vpop.f32.mrf.mxu0
    %v2309 = vadd.f32 %v2193, %v2308
    %v2310 = vpop.f32.mrf.mxu0
    %2311 = vdwg.mxu0
    %v2312 = vld [vmem:[%s12] sm:$0xff]
    %v2313 = vld [vmem:[%s12 + $0x8] sm:$0xff]
    %v2314 = vld [vmem:[%s12 + $0x10] sm:$0xff]
    %v2315 = vld [vmem:[%s12 + $0x18] sm:$0xff]
    %v2316 = vld [vmem:[%s13] sm:$0x1]
    %v2318 = vlaneseq
    %v2319 = vshrl.u32 %v2318, 7
    %v2320 = vsub.s32 0, %v2319
    %v2321 = vrot.slane %v2316, %v2320
    %2323 = vmatprep.subr.mxu0 0.0
    %2324 = vmatpush1.msra.mxu0 0.0
    %2325 = vmatprep.subr.mxu0 0.0
    %2326 = vmatpush1.msra.mxu0 0.0
    %2327 = vmatprep.subr.mxu0 0.0
    %2328 = vmatpush1.msra.mxu0 0.0
    %2329 = vmatprep.subr.mxu0 0.0
    %2330 = vmatpush1.msra.mxu0 0.0
    %2331 = vmatprep.subr.mxu0 0.0
    %2332 = vmatpush1.msra.mxu0 0.0
    %2333 = vmatprep.subr.mxu0 0.0
    %2334 = vmatpush1.msra.mxu0 0.0
    %2335 = vmatprep.subr.mxu0 0.0
    %2336 = vmatpush1.msra.mxu0 0.0
    %2337 = vmatprep.subr.mxu0 0.0
    %2338 = vmatpush1.msra.mxu0 0.0
    %2339 = vmatprep.subr.mxu0 0.0
    %2340 = vmatpush1.msra.mxu0 0.0
    %2341 = vmatprep.subr.mxu0 0.0
    %2342 = vmatpush1.msra.mxu0 0.0
    %2343 = vmatprep.subr.mxu0 0.0
    %2344 = vmatpush1.msra.mxu0 0.0
    %2345 = vmatprep.subr.mxu0 0.0
    %2346 = vmatpush1.msra.mxu0 0.0
    %2347 = vmatprep.subr.mxu0 0.0
    %2348 = vmatpush1.msra.mxu0 %v2315
    %2349 = vmatprep.subr.mxu0 0.0
    %2350 = vmatpush1.msra.mxu0 %v2314
    %2351 = vmatprep.subr.mxu0 0.0
    %2352 = vmatpush1.msra.mxu0 %v2313
    %2353 = vmatprep.subr.mxu0 0.0
    %2354 = vmatpush1.msra.mxu0 %v2312
    %2355 = vmatprep.subr.mxu0 0.0
    %2356 = vmatpush2.msra.mxu0 0.0
    %2357 = vmatprep.subr.mxu0 0.0
    %2358 = vmatpush2.msra.mxu0 0.0
    %2359 = vmatprep.subr.mxu0 0.0
    %2360 = vmatpush2.msra.mxu0 0.0
    %2361 = vmatprep.subr.mxu0 0.0
    %2362 = vmatpush2.msra.mxu0 0.0
    %2363 = vmatprep.subr.mxu0 0.0
    %2364 = vmatpush2.msra.mxu0 0.0
    %2365 = vmatprep.subr.mxu0 0.0
    %2366 = vmatpush2.msra.mxu0 0.0
    %2367 = vmatprep.subr.mxu0 0.0
    %2368 = vmatpush2.msra.mxu0 0.0
    %2369 = vmatprep.subr.mxu0 0.0
    %2370 = vmatpush2.msra.mxu0 0.0
    %2371 = vmatprep.subr.mxu0 0.0
    %2372 = vmatpush2.msra.mxu0 0.0
    %2373 = vmatprep.subr.mxu0 0.0
    %2374 = vmatpush2.msra.mxu0 0.0
    %2375 = vmatprep.subr.mxu0 0.0
    %2376 = vmatpush2.msra.mxu0 0.0
    %2377 = vmatprep.subr.mxu0 0.0
    %2378 = vmatpush2.msra.mxu0 0.0
    %2379 = vmatprep.subr.mxu0 0.0
    %2380 = vmatpush2.msra.mxu0 0.0
    %2381 = vmatprep.subr.mxu0 0.0
    %2382 = vmatpush2.msra.mxu0 0.0
    %2383 = vmatprep.subr.mxu0 0.0
    %2384 = vmatpush2.msra.mxu0 0.0
    %2385 = vmatprep.subr.mxu0 0.0
    %2386 = vmatpush2.msra.mxu0 0.0
    %2387 = vmatprep.mubr.f32.mxu0 0.0
    %2388 = vmatmul.mubr.f32.gmra.mxu0 %v2233
    %v2389 = vpop.f32.mrf.mxu0
    %v2390 = vadd.f32 %v2321, %v2389
    %v2391 = vpop.f32.mrf.mxu0
    %2392 = vmatprep.mubr.f32.mxu0 0.0
    %2393 = vmatmul.mubr.f32.gmra.mxu0 %v2235
    %v2394 = vpop.f32.mrf.mxu0
    %v2395 = vadd.f32 %v2321, %v2394
    %v2396 = vpop.f32.mrf.mxu0
    %2397 = vdwg.mxu0
    %v2398 = vld [vmem:[%s14] sm:$0xff]
    %v2399 = vld [vmem:[%s14 + $0x8] sm:$0xff]
    %v2400 = vld [vmem:[%s14 + $0x10] sm:$0xff]
    %v2401 = vld [vmem:[%s14 + $0x18] sm:$0xff]
    %v2402 = vld [vmem:[%s15] sm:$0x1]
    %v2404 = vlaneseq
    %v2405 = vshrl.u32 %v2404, 7
    %v2406 = vsub.s32 0, %v2405
    %v2407 = vrot.slane %v2402, %v2406
    %2409 = vmatprep.subr.mxu0 0.0
    %2410 = vmatpush1.msra.mxu0 0.0
    %2411 = vmatprep.subr.mxu0 0.0
    %2412 = vmatpush1.msra.mxu0 0.0
    %2413 = vmatprep.subr.mxu0 0.0
    %2414 = vmatpush1.msra.mxu0 0.0
    %2415 = vmatprep.subr.mxu0 0.0
    %2416 = vmatpush1.msra.mxu0 0.0
    %2417 = vmatprep.subr.mxu0 0.0
    %2418 = vmatpush1.msra.mxu0 0.0
    %2419 = vmatprep.subr.mxu0 0.0
    %2420 = vmatpush1.msra.mxu0 0.0
    %2421 = vmatprep.subr.mxu0 0.0
    %2422 = vmatpush1.msra.mxu0 0.0
    %2423 = vmatprep.subr.mxu0 0.0
    %2424 = vmatpush1.msra.mxu0 0.0
    %2425 = vmatprep.subr.mxu0 0.0
    %2426 = vmatpush1.msra.mxu0 0.0
    %2427 = vmatprep.subr.mxu0 0.0
    %2428 = vmatpush1.msra.mxu0 0.0
    %2429 = vmatprep.subr.mxu0 0.0
    %2430 = vmatpush1.msra.mxu0 0.0
    %2431 = vmatprep.subr.mxu0 0.0
    %2432 = vmatpush1.msra.mxu0 0.0
    %2433 = vmatprep.subr.mxu0 0.0
    %2434 = vmatpush1.msra.mxu0 %v2401
    %2435 = vmatprep.subr.mxu0 0.0
    %2436 = vmatpush1.msra.mxu0 %v2400
    %2437 = vmatprep.subr.mxu0 0.0
    %2438 = vmatpush1.msra.mxu0 %v2399
    %2439 = vmatprep.subr.mxu0 0.0
    %2440 = vmatpush1.msra.mxu0 %v2398
    %2441 = vmatprep.subr.mxu0 0.0
    %2442 = vmatpush2.msra.mxu0 0.0
    %2443 = vmatprep.subr.mxu0 0.0
    %2444 = vmatpush2.msra.mxu0 0.0
    %2445 = vmatprep.subr.mxu0 0.0
    %2446 = vmatpush2.msra.mxu0 0.0
    %2447 = vmatprep.subr.mxu0 0.0
    %2448 = vmatpush2.msra.mxu0 0.0
    %2449 = vmatprep.subr.mxu0 0.0
    %2450 = vmatpush2.msra.mxu0 0.0
    %2451 = vmatprep.subr.mxu0 0.0
    %2452 = vmatpush2.msra.mxu0 0.0
    %2453 = vmatprep.subr.mxu0 0.0
    %2454 = vmatpush2.msra.mxu0 0.0
    %2455 = vmatprep.subr.mxu0 0.0
    %2456 = vmatpush2.msra.mxu0 0.0
    %2457 = vmatprep.subr.mxu0 0.0
    %2458 = vmatpush2.msra.mxu0 0.0
    %2459 = vmatprep.subr.mxu0 0.0
    %2460 = vmatpush2.msra.mxu0 0.0
    %2461 = vmatprep.subr.mxu0 0.0
    %2462 = vmatpush2.msra.mxu0 0.0
    %2463 = vmatprep.subr.mxu0 0.0
    %2464 = vmatpush2.msra.mxu0 0.0
    %2465 = vmatprep.subr.mxu0 0.0
    %2466 = vmatpush2.msra.mxu0 0.0
    %2467 = vmatprep.subr.mxu0 0.0
    %2468 = vmatpush2.msra.mxu0 0.0
    %2469 = vmatprep.subr.mxu0 0.0
    %2470 = vmatpush2.msra.mxu0 0.0
    %2471 = vmatprep.subr.mxu0 0.0
    %2472 = vmatpush2.msra.mxu0 0.0
    %2473 = vmatprep.mubr.f32.mxu0 0.0
    %2474 = vmatmul.mubr.f32.gmra.mxu0 %v2233
    %v2475 = vpop.f32.mrf.mxu0
    %v2476 = vadd.f32 %v2407, %v2475
    %v2477 = vpop.f32.mrf.mxu0
    %2478 = vmatprep.mubr.f32.mxu0 0.0
    %2479 = vmatmul.mubr.f32.gmra.mxu0 %v2235
    %v2480 = vpop.f32.mrf.mxu0
    %v2481 = vadd.f32 %v2407, %v2480
    %v2482 = vpop.f32.mrf.mxu0
    %2483 = vdwg.mxu0
    %v2484 = vlaneseq
    %v2485 = vand.u32 %v2484, 127
    %vm2486 = vcmp.ge.s32.totalorder %v2485, 0
    %vm2487 = vcmp.lt.s32.totalorder %v2485, 8
    %vm2488 = vmand %vm2486, %vm2487
    %v2489 = vsel %vm2488, 1, 0
    %v2490 = vcvt.s32.f32 %v2489
    %v2491 = vmul.f32 %v2304, %v2490
    %v2492 = vmul.f32 %v2309, %v2490
    %v2494 = vsel %vm2232, %v2491, 0
    %v2497 = vsel %vm2232, %v2390, 0
    %2499 = vmatprep.subr.mxu0 0.0
    %2500 = vmatpush1.xpose.msra.mxu0 0.0
    %2501 = vmatprep.subr.mxu0 0.0
    %2502 = vmatpush1.xpose.msra.mxu0 0.0
    %2503 = vmatprep.subr.mxu0 0.0
    %2504 = vmatpush1.xpose.msra.mxu0 0.0
    %2505 = vmatprep.subr.mxu0 0.0
    %2506 = vmatpush1.xpose.msra.mxu0 0.0
    %2507 = vmatprep.subr.mxu0 0.0
    %2508 = vmatpush1.xpose.msra.mxu0 0.0
    %2509 = vmatprep.subr.mxu0 0.0
    %2510 = vmatpush1.xpose.msra.mxu0 0.0
    %2511 = vmatprep.subr.mxu0 0.0
    %2512 = vmatpush1.xpose.msra.mxu0 0.0
    %2513 = vmatprep.subr.mxu0 0.0
    %2514 = vmatpush1.xpose.msra.mxu0 0.0
    %2515 = vmatprep.subr.mxu0 0.0
    %2516 = vmatpush1.xpose.msra.mxu0 0.0
    %2517 = vmatprep.subr.mxu0 0.0
    %2518 = vmatpush1.xpose.msra.mxu0 0.0
    %2519 = vmatprep.subr.mxu0 0.0
    %2520 = vmatpush1.xpose.msra.mxu0 0.0
    %2521 = vmatprep.subr.mxu0 0.0
    %2522 = vmatpush1.xpose.msra.mxu0 0.0
    %2523 = vmatprep.subr.mxu0 0.0
    %2524 = vmatpush1.xpose.msra.mxu0 0.0
    %2525 = vmatprep.subr.mxu0 0.0
    %2526 = vmatpush1.xpose.msra.mxu0 0.0
    %2527 = vmatprep.subr.mxu0 0.0
    %2528 = vmatpush1.xpose.msra.mxu0 0.0
    %2529 = vmatprep.subr.mxu0 0.0
    %2530 = vmatpush1.xpose.msra.mxu0 %v2497
    %2531 = vmatprep.subr.mxu0 0.0
    %2532 = vmatpush2.xpose.msra.mxu0 0.0
    %2533 = vmatprep.subr.mxu0 0.0
    %2534 = vmatpush2.xpose.msra.mxu0 0.0
    %2535 = vmatprep.subr.mxu0 0.0
    %2536 = vmatpush2.xpose.msra.mxu0 0.0
    %2537 = vmatprep.subr.mxu0 0.0
    %2538 = vmatpush2.xpose.msra.mxu0 0.0
    %2539 = vmatprep.subr.mxu0 0.0
    %2540 = vmatpush2.xpose.msra.mxu0 0.0
    %2541 = vmatprep.subr.mxu0 0.0
    %2542 = vmatpush2.xpose.msra.mxu0 0.0
    %2543 = vmatprep.subr.mxu0 0.0
    %2544 = vmatpush2.xpose.msra.mxu0 0.0
    %2545 = vmatprep.subr.mxu0 0.0
    %2546 = vmatpush2.xpose.msra.mxu0 0.0
    %2547 = vmatprep.subr.mxu0 0.0
    %2548 = vmatpush2.xpose.msra.mxu0 0.0
    %2549 = vmatprep.subr.mxu0 0.0
    %2550 = vmatpush2.xpose.msra.mxu0 0.0
    %2551 = vmatprep.subr.mxu0 0.0
    %2552 = vmatpush2.xpose.msra.mxu0 0.0
    %2553 = vmatprep.subr.mxu0 0.0
    %2554 = vmatpush2.xpose.msra.mxu0 0.0
    %2555 = vmatprep.subr.mxu0 0.0
    %2556 = vmatpush2.xpose.msra.mxu0 0.0
    %2557 = vmatprep.subr.mxu0 0.0
    %2558 = vmatpush2.xpose.msra.mxu0 0.0
    %2559 = vmatprep.subr.mxu0 0.0
    %2560 = vmatpush2.xpose.msra.mxu0 0.0
    %2561 = vmatprep.subr.mxu0 0.0
    %2562 = vmatpush2.xpose.msra.mxu0 0.0
    %2563 = vmatprep.mubr.f32.mxu0 0.0
    %2564 = vmatmul.mubr.f32.gmra.mxu0 %v2494
    %v2565 = vpop.f32.mrf.mxu0
    %v2566 = vadd.f32 0.0, %v2565
    %v2567 = vpop.f32.mrf.mxu0
    %2568 = vdwg.mxu0
    %v2570 = vsel %vm2232, %v2492, 0
    %v2573 = vsel %vm2232, %v2395, 0
    %2575 = vmatprep.subr.mxu0 0.0
    %2576 = vmatpush1.xpose.msra.mxu0 0.0
    %2577 = vmatprep.subr.mxu0 0.0
    %2578 = vmatpush1.xpose.msra.mxu0 0.0
    %2579 = vmatprep.subr.mxu0 0.0
    %2580 = vmatpush1.xpose.msra.mxu0 0.0
    %2581 = vmatprep.subr.mxu0 0.0
    %2582 = vmatpush1.xpose.msra.mxu0 0.0
    %2583 = vmatprep.subr.mxu0 0.0
    %2584 = vmatpush1.xpose.msra.mxu0 0.0
    %2585 = vmatprep.subr.mxu0 0.0
    %2586 = vmatpush1.xpose.msra.mxu0 0.0
    %2587 = vmatprep.subr.mxu0 0.0
    %2588 = vmatpush1.xpose.msra.mxu0 0.0
    %2589 = vmatprep.subr.mxu0 0.0
    %2590 = vmatpush1.xpose.msra.mxu0 0.0
    %2591 = vmatprep.subr.mxu0 0.0
    %2592 = vmatpush1.xpose.msra.mxu0 0.0
    %2593 = vmatprep.subr.mxu0 0.0
    %2594 = vmatpush1.xpose.msra.mxu0 0.0
    %2595 = vmatprep.subr.mxu0 0.0
    %2596 = vmatpush1.xpose.msra.mxu0 0.0
    %2597 = vmatprep.subr.mxu0 0.0
    %2598 = vmatpush1.xpose.msra.mxu0 0.0
    %2599 = vmatprep.subr.mxu0 0.0
    %2600 = vmatpush1.xpose.msra.mxu0 0.0
    %2601 = vmatprep.subr.mxu0 0.0
    %2602 = vmatpush1.xpose.msra.mxu0 0.0
    %2603 = vmatprep.subr.mxu0 0.0
    %2604 = vmatpush1.xpose.msra.mxu0 0.0
    %2605 = vmatprep.subr.mxu0 0.0
    %2606 = vmatpush1.xpose.msra.mxu0 %v2573
    %2607 = vmatprep.subr.mxu0 0.0
    %2608 = vmatpush2.xpose.msra.mxu0 0.0
    %2609 = vmatprep.subr.mxu0 0.0
    %2610 = vmatpush2.xpose.msra.mxu0 0.0
    %2611 = vmatprep.subr.mxu0 0.0
    %2612 = vmatpush2.xpose.msra.mxu0 0.0
    %2613 = vmatprep.subr.mxu0 0.0
    %2614 = vmatpush2.xpose.msra.mxu0 0.0
    %2615 = vmatprep.subr.mxu0 0.0
    %2616 = vmatpush2.xpose.msra.mxu0 0.0
    %2617 = vmatprep.subr.mxu0 0.0
    %2618 = vmatpush2.xpose.msra.mxu0 0.0
    %2619 = vmatprep.subr.mxu0 0.0
    %2620 = vmatpush2.xpose.msra.mxu0 0.0
    %2621 = vmatprep.subr.mxu0 0.0
    %2622 = vmatpush2.xpose.msra.mxu0 0.0
    %2623 = vmatprep.subr.mxu0 0.0
    %2624 = vmatpush2.xpose.msra.mxu0 0.0
    %2625 = vmatprep.subr.mxu0 0.0
    %2626 = vmatpush2.xpose.msra.mxu0 0.0
    %2627 = vmatprep.subr.mxu0 0.0
    %2628 = vmatpush2.xpose.msra.mxu0 0.0
    %2629 = vmatprep.subr.mxu0 0.0
    %2630 = vmatpush2.xpose.msra.mxu0 0.0
    %2631 = vmatprep.subr.mxu0 0.0
    %2632 = vmatpush2.xpose.msra.mxu0 0.0
    %2633 = vmatprep.subr.mxu0 0.0
    %2634 = vmatpush2.xpose.msra.mxu0 0.0
    %2635 = vmatprep.subr.mxu0 0.0
    %2636 = vmatpush2.xpose.msra.mxu0 0.0
    %2637 = vmatprep.subr.mxu0 0.0
    %2638 = vmatpush2.xpose.msra.mxu0 0.0
    %2639 = vmatprep.mubr.f32.mxu0 0.0
    %2640 = vmatmul.mubr.f32.gmra.mxu0 %v2570
    %v2641 = vpop.f32.mrf.mxu0
    %v2642 = vadd.f32 0.0, %v2641
    %v2643 = vpop.f32.mrf.mxu0
    %2644 = vdwg.mxu0
    %v2645 = vmul.f32 %v2566, 0.35355338
    %v2646 = vmul.f32 %v2642, 0.35355338
    %v2647 = vsel %vm199, %v2645, -inf
    %2648 = vmax.xlane.f32.xlu0 %v2647
    %v2649 = vpop.xlane.xlu0 %2648
    %v2650 = vsel %vm199, %v2646, -inf
    %2651 = vmax.xlane.f32.xlu0 %v2650
    %v2652 = vpop.xlane.xlu0 %2651
    %v2653 = vsub.f32 %v2645, %v2649
    %v2654 = vsub.f32 %v2646, %v2652
    %v2655 = vmul.f32 %v2653, 1.442695
    %v2656 = vpow.pop %v2655
    %v2657 = vmul.f32 %v2654, 1.442695
    %v2658 = vpow.pop %v2657
    %v2659 = vsel %vm199, %v2656, 0.0
    %2660 = vadd.xlane.f32.xlu0 %v2659
    %v2661 = vpop.xlane.xlu0 %2660
    %v2662 = vsel %vm199, %v2658, 0.0
    %2663 = vadd.xlane.f32.xlu0 %v2662
    %v2664 = vpop.xlane.xlu0 %2663
    %v2665 = vrcp.pop %v2661
    %v2666 = vmul.f32 %v2656, %v2665
    %v2667 = vrcp.pop %v2664
    %v2668 = vmul.f32 %v2658, %v2667
    %v2669 = vmul.f32 %v2476, %v2490
    %v2670 = vmul.f32 %v2481, %v2490
    %vm2671 = vcmp.ge.s32.totalorder %v2485, 8
    %vm2672 = vcmp.lt.s32.totalorder %v2485, 16
    %vm2673 = vmand %vm2671, %vm2672
    %v2674 = vsel %vm2673, 1, 0
    %v2675 = vcvt.s32.f32 %v2674
    %v2676 = vmul.f32 %v2304, %v2675
    %v2677 = vmul.f32 %v2309, %v2675
    %v2679 = vsel %vm2232, %v2676, 0
    %2681 = vmatprep.subr.mxu0 0.0
    %2682 = vmatpush1.xpose.msra.mxu0 0.0
    %2683 = vmatprep.subr.mxu0 0.0
    %2684 = vmatpush1.xpose.msra.mxu0 0.0
    %2685 = vmatprep.subr.mxu0 0.0
    %2686 = vmatpush1.xpose.msra.mxu0 0.0
    %2687 = vmatprep.subr.mxu0 0.0
    %2688 = vmatpush1.xpose.msra.mxu0 0.0
    %2689 = vmatprep.subr.mxu0 0.0
    %2690 = vmatpush1.xpose.msra.mxu0 0.0
    %2691 = vmatprep.subr.mxu0 0.0
    %2692 = vmatpush1.xpose.msra.mxu0 0.0
    %2693 = vmatprep.subr.mxu0 0.0
    %2694 = vmatpush1.xpose.msra.mxu0 0.0
    %2695 = vmatprep.subr.mxu0 0.0
    %2696 = vmatpush1.xpose.msra.mxu0 0.0
    %2697 = vmatprep.subr.mxu0 0.0
    %2698 = vmatpush1.xpose.msra.mxu0 0.0
    %2699 = vmatprep.subr.mxu0 0.0
    %2700 = vmatpush1.xpose.msra.mxu0 0.0
    %2701 = vmatprep.subr.mxu0 0.0
    %2702 = vmatpush1.xpose.msra.mxu0 0.0
    %2703 = vmatprep.subr.mxu0 0.0
    %2704 = vmatpush1.xpose.msra.mxu0 0.0
    %2705 = vmatprep.subr.mxu0 0.0
    %2706 = vmatpush1.xpose.msra.mxu0 0.0
    %2707 = vmatprep.subr.mxu0 0.0
    %2708 = vmatpush1.xpose.msra.mxu0 0.0
    %2709 = vmatprep.subr.mxu0 0.0
    %2710 = vmatpush1.xpose.msra.mxu0 0.0
    %2711 = vmatprep.subr.mxu0 0.0
    %2712 = vmatpush1.xpose.msra.mxu0 %v2497
    %2713 = vmatprep.subr.mxu0 0.0
    %2714 = vmatpush2.xpose.msra.mxu0 0.0
    %2715 = vmatprep.subr.mxu0 0.0
    %2716 = vmatpush2.xpose.msra.mxu0 0.0
    %2717 = vmatprep.subr.mxu0 0.0
    %2718 = vmatpush2.xpose.msra.mxu0 0.0
    %2719 = vmatprep.subr.mxu0 0.0
    %2720 = vmatpush2.xpose.msra.mxu0 0.0
    %2721 = vmatprep.subr.mxu0 0.0
    %2722 = vmatpush2.xpose.msra.mxu0 0.0
    %2723 = vmatprep.subr.mxu0 0.0
    %2724 = vmatpush2.xpose.msra.mxu0 0.0
    %2725 = vmatprep.subr.mxu0 0.0
    %2726 = vmatpush2.xpose.msra.mxu0 0.0
    %2727 = vmatprep.subr.mxu0 0.0
    %2728 = vmatpush2.xpose.msra.mxu0 0.0
    %2729 = vmatprep.subr.mxu0 0.0
    %2730 = vmatpush2.xpose.msra.mxu0 0.0
    %2731 = vmatprep.subr.mxu0 0.0
    %2732 = vmatpush2.xpose.msra.mxu0 0.0
    %2733 = vmatprep.subr.mxu0 0.0
    %2734 = vmatpush2.xpose.msra.mxu0 0.0
    %2735 = vmatprep.subr.mxu0 0.0
    %2736 = vmatpush2.xpose.msra.mxu0 0.0
    %2737 = vmatprep.subr.mxu0 0.0
    %2738 = vmatpush2.xpose.msra.mxu0 0.0
    %2739 = vmatprep.subr.mxu0 0.0
    %2740 = vmatpush2.xpose.msra.mxu0 0.0
    %2741 = vmatprep.subr.mxu0 0.0
    %2742 = vmatpush2.xpose.msra.mxu0 0.0
    %2743 = vmatprep.subr.mxu0 0.0
    %2744 = vmatpush2.xpose.msra.mxu0 0.0
    %2745 = vmatprep.mubr.f32.mxu0 0.0
    %2746 = vmatmul.mubr.f32.gmra.mxu0 %v2679
    %v2747 = vpop.f32.mrf.mxu0
    %v2748 = vadd.f32 0.0, %v2747
    %v2749 = vpop.f32.mrf.mxu0
    %2750 = vdwg.mxu0
    %v2752 = vsel %vm2232, %v2677, 0
    %2754 = vmatprep.subr.mxu0 0.0
    %2755 = vmatpush1.xpose.msra.mxu0 0.0
    %2756 = vmatprep.subr.mxu0 0.0
    %2757 = vmatpush1.xpose.msra.mxu0 0.0
    %2758 = vmatprep.subr.mxu0 0.0
    %2759 = vmatpush1.xpose.msra.mxu0 0.0
    %2760 = vmatprep.subr.mxu0 0.0
    %2761 = vmatpush1.xpose.msra.mxu0 0.0
    %2762 = vmatprep.subr.mxu0 0.0
    %2763 = vmatpush1.xpose.msra.mxu0 0.0
    %2764 = vmatprep.subr.mxu0 0.0
    %2765 = vmatpush1.xpose.msra.mxu0 0.0
    %2766 = vmatprep.subr.mxu0 0.0
    %2767 = vmatpush1.xpose.msra.mxu0 0.0
    %2768 = vmatprep.subr.mxu0 0.0
    %2769 = vmatpush1.xpose.msra.mxu0 0.0
    %2770 = vmatprep.subr.mxu0 0.0
    %2771 = vmatpush1.xpose.msra.mxu0 0.0
    %2772 = vmatprep.subr.mxu0 0.0
    %2773 = vmatpush1.xpose.msra.mxu0 0.0
    %2774 = vmatprep.subr.mxu0 0.0
    %2775 = vmatpush1.xpose.msra.mxu0 0.0
    %2776 = vmatprep.subr.mxu0 0.0
    %2777 = vmatpush1.xpose.msra.mxu0 0.0
    %2778 = vmatprep.subr.mxu0 0.0
    %2779 = vmatpush1.xpose.msra.mxu0 0.0
    %2780 = vmatprep.subr.mxu0 0.0
    %2781 = vmatpush1.xpose.msra.mxu0 0.0
    %2782 = vmatprep.subr.mxu0 0.0
    %2783 = vmatpush1.xpose.msra.mxu0 0.0
    %2784 = vmatprep.subr.mxu0 0.0
    %2785 = vmatpush1.xpose.msra.mxu0 %v2573
    %2786 = vmatprep.subr.mxu0 0.0
    %2787 = vmatpush2.xpose.msra.mxu0 0.0
    %2788 = vmatprep.subr.mxu0 0.0
    %2789 = vmatpush2.xpose.msra.mxu0 0.0
    %2790 = vmatprep.subr.mxu0 0.0
    %2791 = vmatpush2.xpose.msra.mxu0 0.0
    %2792 = vmatprep.subr.mxu0 0.0
    %2793 = vmatpush2.xpose.msra.mxu0 0.0
    %2794 = vmatprep.subr.mxu0 0.0
    %2795 = vmatpush2.xpose.msra.mxu0 0.0
    %2796 = vmatprep.subr.mxu0 0.0
    %2797 = vmatpush2.xpose.msra.mxu0 0.0
    %2798 = vmatprep.subr.mxu0 0.0
    %2799 = vmatpush2.xpose.msra.mxu0 0.0
    %2800 = vmatprep.subr.mxu0 0.0
    %2801 = vmatpush2.xpose.msra.mxu0 0.0
    %2802 = vmatprep.subr.mxu0 0.0
    %2803 = vmatpush2.xpose.msra.mxu0 0.0
    %2804 = vmatprep.subr.mxu0 0.0
    %2805 = vmatpush2.xpose.msra.mxu0 0.0
    %2806 = vmatprep.subr.mxu0 0.0
    %2807 = vmatpush2.xpose.msra.mxu0 0.0
    %2808 = vmatprep.subr.mxu0 0.0
    %2809 = vmatpush2.xpose.msra.mxu0 0.0
    %2810 = vmatprep.subr.mxu0 0.0
    %2811 = vmatpush2.xpose.msra.mxu0 0.0
    %2812 = vmatprep.subr.mxu0 0.0
    %2813 = vmatpush2.xpose.msra.mxu0 0.0
    %2814 = vmatprep.subr.mxu0 0.0
    %2815 = vmatpush2.xpose.msra.mxu0 0.0
    %2816 = vmatprep.subr.mxu0 0.0
    %2817 = vmatpush2.xpose.msra.mxu0 0.0
    %2818 = vmatprep.mubr.f32.mxu0 0.0
    %2819 = vmatmul.mubr.f32.gmra.mxu0 %v2752
    %v2820 = vpop.f32.mrf.mxu0
    %v2821 = vadd.f32 0.0, %v2820
    %v2822 = vpop.f32.mrf.mxu0
    %2823 = vdwg.mxu0
    %v2824 = vmul.f32 %v2748, 0.35355338
    %v2825 = vmul.f32 %v2821, 0.35355338
    %v2826 = vsel %vm199, %v2824, -inf
    %2827 = vmax.xlane.f32.xlu0 %v2826
    %v2828 = vpop.xlane.xlu0 %2827
    %v2829 = vsel %vm199, %v2825, -inf
    %2830 = vmax.xlane.f32.xlu0 %v2829
    %v2831 = vpop.xlane.xlu0 %2830
    %v2832 = vsub.f32 %v2824, %v2828
    %v2833 = vsub.f32 %v2825, %v2831
    %v2834 = vmul.f32 %v2832, 1.442695
    %v2835 = vpow.pop %v2834
    %v2836 = vmul.f32 %v2833, 1.442695
    %v2837 = vpow.pop %v2836
    %v2838 = vsel %vm199, %v2835, 0.0
    %2839 = vadd.xlane.f32.xlu0 %v2838
    %v2840 = vpop.xlane.xlu0 %2839
    %v2841 = vsel %vm199, %v2837, 0.0
    %2842 = vadd.xlane.f32.xlu0 %v2841
    %v2843 = vpop.xlane.xlu0 %2842
    %v2844 = vrcp.pop %v2840
    %v2845 = vmul.f32 %v2835, %v2844
    %v2846 = vrcp.pop %v2843
    %v2847 = vmul.f32 %v2837, %v2846
    %v2848 = vmul.f32 %v2476, %v2675
    %v2849 = vmul.f32 %v2481, %v2675
    %v2851 = vsel %vm199, %v2845, 0
    %2853 = vmatprep.subr.mxu0 0.0
    %2854 = vmatpush1.msra.mxu0 0.0
    %2855 = vmatprep.subr.mxu0 0.0
    %2856 = vmatpush1.msra.mxu0 0.0
    %2857 = vmatprep.subr.mxu0 0.0
    %2858 = vmatpush1.msra.mxu0 0.0
    %2859 = vmatprep.subr.mxu0 0.0
    %2860 = vmatpush1.msra.mxu0 0.0
    %2861 = vmatprep.subr.mxu0 0.0
    %2862 = vmatpush1.msra.mxu0 0.0
    %2863 = vmatprep.subr.mxu0 0.0
    %2864 = vmatpush1.msra.mxu0 0.0
    %2865 = vmatprep.subr.mxu0 0.0
    %2866 = vmatpush1.msra.mxu0 0.0
    %2867 = vmatprep.subr.mxu0 0.0
    %2868 = vmatpush1.msra.mxu0 0.0
    %2869 = vmatprep.subr.mxu0 0.0
    %2870 = vmatpush1.msra.mxu0 0.0
    %2871 = vmatprep.subr.mxu0 0.0
    %2872 = vmatpush1.msra.mxu0 0.0
    %2873 = vmatprep.subr.mxu0 0.0
    %2874 = vmatpush1.msra.mxu0 0.0
    %2875 = vmatprep.subr.mxu0 0.0
    %2876 = vmatpush1.msra.mxu0 0.0
    %2877 = vmatprep.subr.mxu0 0.0
    %2878 = vmatpush1.msra.mxu0 0.0
    %2879 = vmatprep.subr.mxu0 0.0
    %2880 = vmatpush1.msra.mxu0 0.0
    %2881 = vmatprep.subr.mxu0 0.0
    %2882 = vmatpush1.msra.mxu0 0.0
    %2883 = vmatprep.subr.mxu0 0.0
    %2884 = vmatpush1.msra.mxu0 %v2848
    %2885 = vmatprep.subr.mxu0 0.0
    %2886 = vmatpush2.msra.mxu0 0.0
    %2887 = vmatprep.subr.mxu0 0.0
    %2888 = vmatpush2.msra.mxu0 0.0
    %2889 = vmatprep.subr.mxu0 0.0
    %2890 = vmatpush2.msra.mxu0 0.0
    %2891 = vmatprep.subr.mxu0 0.0
    %2892 = vmatpush2.msra.mxu0 0.0
    %2893 = vmatprep.subr.mxu0 0.0
    %2894 = vmatpush2.msra.mxu0 0.0
    %2895 = vmatprep.subr.mxu0 0.0
    %2896 = vmatpush2.msra.mxu0 0.0
    %2897 = vmatprep.subr.mxu0 0.0
    %2898 = vmatpush2.msra.mxu0 0.0
    %2899 = vmatprep.subr.mxu0 0.0
    %2900 = vmatpush2.msra.mxu0 0.0
    %2901 = vmatprep.subr.mxu0 0.0
    %2902 = vmatpush2.msra.mxu0 0.0
    %2903 = vmatprep.subr.mxu0 0.0
    %2904 = vmatpush2.msra.mxu0 0.0
    %2905 = vmatprep.subr.mxu0 0.0
    %2906 = vmatpush2.msra.mxu0 0.0
    %2907 = vmatprep.subr.mxu0 0.0
    %2908 = vmatpush2.msra.mxu0 0.0
    %2909 = vmatprep.subr.mxu0 0.0
    %2910 = vmatpush2.msra.mxu0 0.0
    %2911 = vmatprep.subr.mxu0 0.0
    %2912 = vmatpush2.msra.mxu0 0.0
    %2913 = vmatprep.subr.mxu0 0.0
    %2914 = vmatpush2.msra.mxu0 0.0
    %2915 = vmatprep.subr.mxu0 0.0
    %2916 = vmatpush2.msra.mxu0 0.0
    %2917 = vmatprep.mubr.f32.mxu0 0.0
    %2918 = vmatmul.mubr.f32.gmra.mxu0 %v2851
    %v2919 = vpop.f32.mrf.mxu0
    %v2920 = vadd.f32 0.0, %v2919
    %v2921 = vpop.f32.mrf.mxu0
    %2922 = vdwg.mxu0
    %v2924 = vsel %vm199, %v2847, 0
    %2926 = vmatprep.subr.mxu0 0.0
    %2927 = vmatpush1.msra.mxu0 0.0
    %2928 = vmatprep.subr.mxu0 0.0
    %2929 = vmatpush1.msra.mxu0 0.0
    %2930 = vmatprep.subr.mxu0 0.0
    %2931 = vmatpush1.msra.mxu0 0.0
    %2932 = vmatprep.subr.mxu0 0.0
    %2933 = vmatpush1.msra.mxu0 0.0
    %2934 = vmatprep.subr.mxu0 0.0
    %2935 = vmatpush1.msra.mxu0 0.0
    %2936 = vmatprep.subr.mxu0 0.0
    %2937 = vmatpush1.msra.mxu0 0.0
    %2938 = vmatprep.subr.mxu0 0.0
    %2939 = vmatpush1.msra.mxu0 0.0
    %2940 = vmatprep.subr.mxu0 0.0
    %2941 = vmatpush1.msra.mxu0 0.0
    %2942 = vmatprep.subr.mxu0 0.0
    %2943 = vmatpush1.msra.mxu0 0.0
    %2944 = vmatprep.subr.mxu0 0.0
    %2945 = vmatpush1.msra.mxu0 0.0
    %2946 = vmatprep.subr.mxu0 0.0
    %2947 = vmatpush1.msra.mxu0 0.0
    %2948 = vmatprep.subr.mxu0 0.0
    %2949 = vmatpush1.msra.mxu0 0.0
    %2950 = vmatprep.subr.mxu0 0.0
    %2951 = vmatpush1.msra.mxu0 0.0
    %2952 = vmatprep.subr.mxu0 0.0
    %2953 = vmatpush1.msra.mxu0 0.0
    %2954 = vmatprep.subr.mxu0 0.0
    %2955 = vmatpush1.msra.mxu0 0.0
    %2956 = vmatprep.subr.mxu0 0.0
    %2957 = vmatpush1.msra.mxu0 %v2849
    %2958 = vmatprep.subr.mxu0 0.0
    %2959 = vmatpush2.msra.mxu0 0.0
    %2960 = vmatprep.subr.mxu0 0.0
    %2961 = vmatpush2.msra.mxu0 0.0
    %2962 = vmatprep.subr.mxu0 0.0
    %2963 = vmatpush2.msra.mxu0 0.0
    %2964 = vmatprep.subr.mxu0 0.0
    %2965 = vmatpush2.msra.mxu0 0.0
    %2966 = vmatprep.subr.mxu0 0.0
    %2967 = vmatpush2.msra.mxu0 0.0
    %2968 = vmatprep.subr.mxu0 0.0
    %2969 = vmatpush2.msra.mxu0 0.0
    %2970 = vmatprep.subr.mxu0 0.0
    %2971 = vmatpush2.msra.mxu0 0.0
    %2972 = vmatprep.subr.mxu0 0.0
    %2973 = vmatpush2.msra.mxu0 0.0
    %2974 = vmatprep.subr.mxu0 0.0
    %2975 = vmatpush2.msra.mxu0 0.0
    %2976 = vmatprep.subr.mxu0 0.0
    %2977 = vmatpush2.msra.mxu0 0.0
    %2978 = vmatprep.subr.mxu0 0.0
    %2979 = vmatpush2.msra.mxu0 0.0
    %2980 = vmatprep.subr.mxu0 0.0
    %2981 = vmatpush2.msra.mxu0 0.0
    %2982 = vmatprep.subr.mxu0 0.0
    %2983 = vmatpush2.msra.mxu0 0.0
    %2984 = vmatprep.subr.mxu0 0.0
    %2985 = vmatpush2.msra.mxu0 0.0
    %2986 = vmatprep.subr.mxu0 0.0
    %2987 = vmatpush2.msra.mxu0 0.0
    %2988 = vmatprep.subr.mxu0 0.0
    %2989 = vmatpush2.msra.mxu0 0.0
    %2990 = vmatprep.mubr.f32.mxu0 0.0
    %2991 = vmatmul.mubr.f32.gmra.mxu0 %v2924
    %v2992 = vpop.f32.mrf.mxu0
    %v2993 = vadd.f32 0.0, %v2992
    %v2994 = vpop.f32.mrf.mxu0
    %2995 = vdwg.mxu0
    %v2997 = vsel %vm199, %v2666, 0
    %2999 = vmatprep.subr.mxu0 0.0
    %3000 = vmatpush1.msra.mxu0 0.0
    %3001 = vmatprep.subr.mxu0 0.0
    %3002 = vmatpush1.msra.mxu0 0.0
    %3003 = vmatprep.subr.mxu0 0.0
    %3004 = vmatpush1.msra.mxu0 0.0
    %3005 = vmatprep.subr.mxu0 0.0
    %3006 = vmatpush1.msra.mxu0 0.0
    %3007 = vmatprep.subr.mxu0 0.0
    %3008 = vmatpush1.msra.mxu0 0.0
    %3009 = vmatprep.subr.mxu0 0.0
    %3010 = vmatpush1.msra.mxu0 0.0
    %3011 = vmatprep.subr.mxu0 0.0
    %3012 = vmatpush1.msra.mxu0 0.0
    %3013 = vmatprep.subr.mxu0 0.0
    %3014 = vmatpush1.msra.mxu0 0.0
    %3015 = vmatprep.subr.mxu0 0.0
    %3016 = vmatpush1.msra.mxu0 0.0
    %3017 = vmatprep.subr.mxu0 0.0
    %3018 = vmatpush1.msra.mxu0 0.0
    %3019 = vmatprep.subr.mxu0 0.0
    %3020 = vmatpush1.msra.mxu0 0.0
    %3021 = vmatprep.subr.mxu0 0.0
    %3022 = vmatpush1.msra.mxu0 0.0
    %3023 = vmatprep.subr.mxu0 0.0
    %3024 = vmatpush1.msra.mxu0 0.0
    %3025 = vmatprep.subr.mxu0 0.0
    %3026 = vmatpush1.msra.mxu0 0.0
    %3027 = vmatprep.subr.mxu0 0.0
    %3028 = vmatpush1.msra.mxu0 0.0
    %3029 = vmatprep.subr.mxu0 0.0
    %3030 = vmatpush1.msra.mxu0 %v2669
    %3031 = vmatprep.subr.mxu0 0.0
    %3032 = vmatpush2.msra.mxu0 0.0
    %3033 = vmatprep.subr.mxu0 0.0
    %3034 = vmatpush2.msra.mxu0 0.0
    %3035 = vmatprep.subr.mxu0 0.0
    %3036 = vmatpush2.msra.mxu0 0.0
    %3037 = vmatprep.subr.mxu0 0.0
    %3038 = vmatpush2.msra.mxu0 0.0
    %3039 = vmatprep.subr.mxu0 0.0
    %3040 = vmatpush2.msra.mxu0 0.0
    %3041 = vmatprep.subr.mxu0 0.0
    %3042 = vmatpush2.msra.mxu0 0.0
    %3043 = vmatprep.subr.mxu0 0.0
    %3044 = vmatpush2.msra.mxu0 0.0
    %3045 = vmatprep.subr.mxu0 0.0
    %3046 = vmatpush2.msra.mxu0 0.0
    %3047 = vmatprep.subr.mxu0 0.0
    %3048 = vmatpush2.msra.mxu0 0.0
    %3049 = vmatprep.subr.mxu0 0.0
    %3050 = vmatpush2.msra.mxu0 0.0
    %3051 = vmatprep.subr.mxu0 0.0
    %3052 = vmatpush2.msra.mxu0 0.0
    %3053 = vmatprep.subr.mxu0 0.0
    %3054 = vmatpush2.msra.mxu0 0.0
    %3055 = vmatprep.subr.mxu0 0.0
    %3056 = vmatpush2.msra.mxu0 0.0
    %3057 = vmatprep.subr.mxu0 0.0
    %3058 = vmatpush2.msra.mxu0 0.0
    %3059 = vmatprep.subr.mxu0 0.0
    %3060 = vmatpush2.msra.mxu0 0.0
    %3061 = vmatprep.subr.mxu0 0.0
    %3062 = vmatpush2.msra.mxu0 0.0
    %3063 = vmatprep.mubr.f32.mxu0 0.0
    %3064 = vmatmul.mubr.f32.gmra.mxu0 %v2997
    %v3065 = vpop.f32.mrf.mxu0
    %v3066 = vadd.f32 %v2920, %v3065
    %v3067 = vpop.f32.mrf.mxu0
    %3068 = vdwg.mxu0
    %v3070 = vsel %vm199, %v2668, 0
    %3072 = vmatprep.subr.mxu0 0.0
    %3073 = vmatpush1.msra.mxu0 0.0
    %3074 = vmatprep.subr.mxu0 0.0
    %3075 = vmatpush1.msra.mxu0 0.0
    %3076 = vmatprep.subr.mxu0 0.0
    %3077 = vmatpush1.msra.mxu0 0.0
    %3078 = vmatprep.subr.mxu0 0.0
    %3079 = vmatpush1.msra.mxu0 0.0
    %3080 = vmatprep.subr.mxu0 0.0
    %3081 = vmatpush1.msra.mxu0 0.0
    %3082 = vmatprep.subr.mxu0 0.0
    %3083 = vmatpush1.msra.mxu0 0.0
    %3084 = vmatprep.subr.mxu0 0.0
    %3085 = vmatpush1.msra.mxu0 0.0
    %3086 = vmatprep.subr.mxu0 0.0
    %3087 = vmatpush1.msra.mxu0 0.0
    %3088 = vmatprep.subr.mxu0 0.0
    %3089 = vmatpush1.msra.mxu0 0.0
    %3090 = vmatprep.subr.mxu0 0.0
    %3091 = vmatpush1.msra.mxu0 0.0
    %3092 = vmatprep.subr.mxu0 0.0
    %3093 = vmatpush1.msra.mxu0 0.0
    %3094 = vmatprep.subr.mxu0 0.0
    %3095 = vmatpush1.msra.mxu0 0.0
    %3096 = vmatprep.subr.mxu0 0.0
    %3097 = vmatpush1.msra.mxu0 0.0
    %3098 = vmatprep.subr.mxu0 0.0
    %3099 = vmatpush1.msra.mxu0 0.0
    %3100 = vmatprep.subr.mxu0 0.0
    %3101 = vmatpush1.msra.mxu0 0.0
    %3102 = vmatprep.subr.mxu0 0.0
    %3103 = vmatpush1.msra.mxu0 %v2670
    %3104 = vmatprep.subr.mxu0 0.0
    %3105 = vmatpush2.msra.mxu0 0.0
    %3106 = vmatprep.subr.mxu0 0.0
    %3107 = vmatpush2.msra.mxu0 0.0
    %3108 = vmatprep.subr.mxu0 0.0
    %3109 = vmatpush2.msra.mxu0 0.0
    %3110 = vmatprep.subr.mxu0 0.0
    %3111 = vmatpush2.msra.mxu0 0.0
    %3112 = vmatprep.subr.mxu0 0.0
    %3113 = vmatpush2.msra.mxu0 0.0
    %3114 = vmatprep.subr.mxu0 0.0
    %3115 = vmatpush2.msra.mxu0 0.0
    %3116 = vmatprep.subr.mxu0 0.0
    %3117 = vmatpush2.msra.mxu0 0.0
    %3118 = vmatprep.subr.mxu0 0.0
    %3119 = vmatpush2.msra.mxu0 0.0
    %3120 = vmatprep.subr.mxu0 0.0
    %3121 = vmatpush2.msra.mxu0 0.0
    %3122 = vmatprep.subr.mxu0 0.0
    %3123 = vmatpush2.msra.mxu0 0.0
    %3124 = vmatprep.subr.mxu0 0.0
    %3125 = vmatpush2.msra.mxu0 0.0
    %3126 = vmatprep.subr.mxu0 0.0
    %3127 = vmatpush2.msra.mxu0 0.0
    %3128 = vmatprep.subr.mxu0 0.0
    %3129 = vmatpush2.msra.mxu0 0.0
    %3130 = vmatprep.subr.mxu0 0.0
    %3131 = vmatpush2.msra.mxu0 0.0
    %3132 = vmatprep.subr.mxu0 0.0
    %3133 = vmatpush2.msra.mxu0 0.0
    %3134 = vmatprep.subr.mxu0 0.0
    %3135 = vmatpush2.msra.mxu0 0.0
    %3136 = vmatprep.mubr.f32.mxu0 0.0
    %3137 = vmatmul.mubr.f32.gmra.mxu0 %v3070
    %v3138 = vpop.f32.mrf.mxu0
    %v3139 = vadd.f32 %v2993, %v3138
    %v3140 = vpop.f32.mrf.mxu0
    %3141 = vdwg.mxu0
    %vm3142 = vcmp.ge.s32.totalorder %v2485, 16
    %vm3143 = vcmp.lt.s32.totalorder %v2485, 24
    %vm3144 = vmand %vm3142, %vm3143
    %v3145 = vsel %vm3144, 1, 0
    %v3146 = vcvt.s32.f32 %v3145
    %v3147 = vmul.f32 %v2304, %v3146
    %v3148 = vmul.f32 %v2309, %v3146
    %v3150 = vsel %vm2232, %v3147, 0
    %3152 = vmatprep.subr.mxu0 0.0
    %3153 = vmatpush1.xpose.msra.mxu0 0.0
    %3154 = vmatprep.subr.mxu0 0.0
    %3155 = vmatpush1.xpose.msra.mxu0 0.0
    %3156 = vmatprep.subr.mxu0 0.0
    %3157 = vmatpush1.xpose.msra.mxu0 0.0
    %3158 = vmatprep.subr.mxu0 0.0
    %3159 = vmatpush1.xpose.msra.mxu0 0.0
    %3160 = vmatprep.subr.mxu0 0.0
    %3161 = vmatpush1.xpose.msra.mxu0 0.0
    %3162 = vmatprep.subr.mxu0 0.0
    %3163 = vmatpush1.xpose.msra.mxu0 0.0
    %3164 = vmatprep.subr.mxu0 0.0
    %3165 = vmatpush1.xpose.msra.mxu0 0.0
    %3166 = vmatprep.subr.mxu0 0.0
    %3167 = vmatpush1.xpose.msra.mxu0 0.0
    %3168 = vmatprep.subr.mxu0 0.0
    %3169 = vmatpush1.xpose.msra.mxu0 0.0
    %3170 = vmatprep.subr.mxu0 0.0
    %3171 = vmatpush1.xpose.msra.mxu0 0.0
    %3172 = vmatprep.subr.mxu0 0.0
    %3173 = vmatpush1.xpose.msra.mxu0 0.0
    %3174 = vmatprep.subr.mxu0 0.0
    %3175 = vmatpush1.xpose.msra.mxu0 0.0
    %3176 = vmatprep.subr.mxu0 0.0
    %3177 = vmatpush1.xpose.msra.mxu0 0.0
    %3178 = vmatprep.subr.mxu0 0.0
    %3179 = vmatpush1.xpose.msra.mxu0 0.0
    %3180 = vmatprep.subr.mxu0 0.0
    %3181 = vmatpush1.xpose.msra.mxu0 0.0
    %3182 = vmatprep.subr.mxu0 0.0
    %3183 = vmatpush1.xpose.msra.mxu0 %v2497
    %3184 = vmatprep.subr.mxu0 0.0
    %3185 = vmatpush2.xpose.msra.mxu0 0.0
    %3186 = vmatprep.subr.mxu0 0.0
    %3187 = vmatpush2.xpose.msra.mxu0 0.0
    %3188 = vmatprep.subr.mxu0 0.0
    %3189 = vmatpush2.xpose.msra.mxu0 0.0
    %3190 = vmatprep.subr.mxu0 0.0
    %3191 = vmatpush2.xpose.msra.mxu0 0.0
    %3192 = vmatprep.subr.mxu0 0.0
    %3193 = vmatpush2.xpose.msra.mxu0 0.0
    %3194 = vmatprep.subr.mxu0 0.0
    %3195 = vmatpush2.xpose.msra.mxu0 0.0
    %3196 = vmatprep.subr.mxu0 0.0
    %3197 = vmatpush2.xpose.msra.mxu0 0.0
    %3198 = vmatprep.subr.mxu0 0.0
    %3199 = vmatpush2.xpose.msra.mxu0 0.0
    %3200 = vmatprep.subr.mxu0 0.0
    %3201 = vmatpush2.xpose.msra.mxu0 0.0
    %3202 = vmatprep.subr.mxu0 0.0
    %3203 = vmatpush2.xpose.msra.mxu0 0.0
    %3204 = vmatprep.subr.mxu0 0.0
    %3205 = vmatpush2.xpose.msra.mxu0 0.0
    %3206 = vmatprep.subr.mxu0 0.0
    %3207 = vmatpush2.xpose.msra.mxu0 0.0
    %3208 = vmatprep.subr.mxu0 0.0
    %3209 = vmatpush2.xpose.msra.mxu0 0.0
    %3210 = vmatprep.subr.mxu0 0.0
    %3211 = vmatpush2.xpose.msra.mxu0 0.0
    %3212 = vmatprep.subr.mxu0 0.0
    %3213 = vmatpush2.xpose.msra.mxu0 0.0
    %3214 = vmatprep.subr.mxu0 0.0
    %3215 = vmatpush2.xpose.msra.mxu0 0.0
    %3216 = vmatprep.mubr.f32.mxu0 0.0
    %3217 = vmatmul.mubr.f32.gmra.mxu0 %v3150
    %v3218 = vpop.f32.mrf.mxu0
    %v3219 = vadd.f32 0.0, %v3218
    %v3220 = vpop.f32.mrf.mxu0
    %3221 = vdwg.mxu0
    %v3223 = vsel %vm2232, %v3148, 0
    %3225 = vmatprep.subr.mxu0 0.0
    %3226 = vmatpush1.xpose.msra.mxu0 0.0
    %3227 = vmatprep.subr.mxu0 0.0
    %3228 = vmatpush1.xpose.msra.mxu0 0.0
    %3229 = vmatprep.subr.mxu0 0.0
    %3230 = vmatpush1.xpose.msra.mxu0 0.0
    %3231 = vmatprep.subr.mxu0 0.0
    %3232 = vmatpush1.xpose.msra.mxu0 0.0
    %3233 = vmatprep.subr.mxu0 0.0
    %3234 = vmatpush1.xpose.msra.mxu0 0.0
    %3235 = vmatprep.subr.mxu0 0.0
    %3236 = vmatpush1.xpose.msra.mxu0 0.0
    %3237 = vmatprep.subr.mxu0 0.0
    %3238 = vmatpush1.xpose.msra.mxu0 0.0
    %3239 = vmatprep.subr.mxu0 0.0
    %3240 = vmatpush1.xpose.msra.mxu0 0.0
    %3241 = vmatprep.subr.mxu0 0.0
    %3242 = vmatpush1.xpose.msra.mxu0 0.0
    %3243 = vmatprep.subr.mxu0 0.0
    %3244 = vmatpush1.xpose.msra.mxu0 0.0
    %3245 = vmatprep.subr.mxu0 0.0
    %3246 = vmatpush1.xpose.msra.mxu0 0.0
    %3247 = vmatprep.subr.mxu0 0.0
    %3248 = vmatpush1.xpose.msra.mxu0 0.0
    %3249 = vmatprep.subr.mxu0 0.0
    %3250 = vmatpush1.xpose.msra.mxu0 0.0
    %3251 = vmatprep.subr.mxu0 0.0
    %3252 = vmatpush1.xpose.msra.mxu0 0.0
    %3253 = vmatprep.subr.mxu0 0.0
    %3254 = vmatpush1.xpose.msra.mxu0 0.0
    %3255 = vmatprep.subr.mxu0 0.0
    %3256 = vmatpush1.xpose.msra.mxu0 %v2573
    %3257 = vmatprep.subr.mxu0 0.0
    %3258 = vmatpush2.xpose.msra.mxu0 0.0
    %3259 = vmatprep.subr.mxu0 0.0
    %3260 = vmatpush2.xpose.msra.mxu0 0.0
    %3261 = vmatprep.subr.mxu0 0.0
    %3262 = vmatpush2.xpose.msra.mxu0 0.0
    %3263 = vmatprep.subr.mxu0 0.0
    %3264 = vmatpush2.xpose.msra.mxu0 0.0
    %3265 = vmatprep.subr.mxu0 0.0
    %3266 = vmatpush2.xpose.msra.mxu0 0.0
    %3267 = vmatprep.subr.mxu0 0.0
    %3268 = vmatpush2.xpose.msra.mxu0 0.0
    %3269 = vmatprep.subr.mxu0 0.0
    %3270 = vmatpush2.xpose.msra.mxu0 0.0
    %3271 = vmatprep.subr.mxu0 0.0
    %3272 = vmatpush2.xpose.msra.mxu0 0.0
    %3273 = vmatprep.subr.mxu0 0.0
    %3274 = vmatpush2.xpose.msra.mxu0 0.0
    %3275 = vmatprep.subr.mxu0 0.0
    %3276 = vmatpush2.xpose.msra.mxu0 0.0
    %3277 = vmatprep.subr.mxu0 0.0
    %3278 = vmatpush2.xpose.msra.mxu0 0.0
    %3279 = vmatprep.subr.mxu0 0.0
    %3280 = vmatpush2.xpose.msra.mxu0 0.0
    %3281 = vmatprep.subr.mxu0 0.0
    %3282 = vmatpush2.xpose.msra.mxu0 0.0
    %3283 = vmatprep.subr.mxu0 0.0
    %3284 = vmatpush2.xpose.msra.mxu0 0.0
    %3285 = vmatprep.subr.mxu0 0.0
    %3286 = vmatpush2.xpose.msra.mxu0 0.0
    %3287 = vmatprep.subr.mxu0 0.0
    %3288 = vmatpush2.xpose.msra.mxu0 0.0
    %3289 = vmatprep.mubr.f32.mxu0 0.0
    %3290 = vmatmul.mubr.f32.gmra.mxu0 %v3223
    %v3291 = vpop.f32.mrf.mxu0
    %v3292 = vadd.f32 0.0, %v3291
    %v3293 = vpop.f32.mrf.mxu0
    %3294 = vdwg.mxu0
    %v3295 = vmul.f32 %v3219, 0.35355338
    %v3296 = vmul.f32 %v3292, 0.35355338
    %v3297 = vsel %vm199, %v3295, -inf
    %3298 = vmax.xlane.f32.xlu0 %v3297
    %v3299 = vpop.xlane.xlu0 %3298
    %v3300 = vsel %vm199, %v3296, -inf
    %3301 = vmax.xlane.f32.xlu0 %v3300
    %v3302 = vpop.xlane.xlu0 %3301
    %v3303 = vsub.f32 %v3295, %v3299
    %v3304 = vsub.f32 %v3296, %v3302
    %v3305 = vmul.f32 %v3303, 1.442695
    %v3306 = vpow.pop %v3305
    %v3307 = vmul.f32 %v3304, 1.442695
    %v3308 = vpow.pop %v3307
    %v3309 = vsel %vm199, %v3306, 0.0
    %3310 = vadd.xlane.f32.xlu0 %v3309
    %v3311 = vpop.xlane.xlu0 %3310
    %v3312 = vsel %vm199, %v3308, 0.0
    %3313 = vadd.xlane.f32.xlu0 %v3312
    %v3314 = vpop.xlane.xlu0 %3313
    %v3315 = vrcp.pop %v3311
    %v3316 = vmul.f32 %v3306, %v3315
    %v3317 = vrcp.pop %v3314
    %v3318 = vmul.f32 %v3308, %v3317
    %v3319 = vmul.f32 %v2476, %v3146
    %v3320 = vmul.f32 %v2481, %v3146
    %v3322 = vsel %vm199, %v3316, 0
    %3324 = vmatprep.subr.mxu0 0.0
    %3325 = vmatpush1.msra.mxu0 0.0
    %3326 = vmatprep.subr.mxu0 0.0
    %3327 = vmatpush1.msra.mxu0 0.0
    %3328 = vmatprep.subr.mxu0 0.0
    %3329 = vmatpush1.msra.mxu0 0.0
    %3330 = vmatprep.subr.mxu0 0.0
    %3331 = vmatpush1.msra.mxu0 0.0
    %3332 = vmatprep.subr.mxu0 0.0
    %3333 = vmatpush1.msra.mxu0 0.0
    %3334 = vmatprep.subr.mxu0 0.0
    %3335 = vmatpush1.msra.mxu0 0.0
    %3336 = vmatprep.subr.mxu0 0.0
    %3337 = vmatpush1.msra.mxu0 0.0
    %3338 = vmatprep.subr.mxu0 0.0
    %3339 = vmatpush1.msra.mxu0 0.0
    %3340 = vmatprep.subr.mxu0 0.0
    %3341 = vmatpush1.msra.mxu0 0.0
    %3342 = vmatprep.subr.mxu0 0.0
    %3343 = vmatpush1.msra.mxu0 0.0
    %3344 = vmatprep.subr.mxu0 0.0
    %3345 = vmatpush1.msra.mxu0 0.0
    %3346 = vmatprep.subr.mxu0 0.0
    %3347 = vmatpush1.msra.mxu0 0.0
    %3348 = vmatprep.subr.mxu0 0.0
    %3349 = vmatpush1.msra.mxu0 0.0
    %3350 = vmatprep.subr.mxu0 0.0
    %3351 = vmatpush1.msra.mxu0 0.0
    %3352 = vmatprep.subr.mxu0 0.0
    %3353 = vmatpush1.msra.mxu0 0.0
    %3354 = vmatprep.subr.mxu0 0.0
    %3355 = vmatpush1.msra.mxu0 %v3319
    %3356 = vmatprep.subr.mxu0 0.0
    %3357 = vmatpush2.msra.mxu0 0.0
    %3358 = vmatprep.subr.mxu0 0.0
    %3359 = vmatpush2.msra.mxu0 0.0
    %3360 = vmatprep.subr.mxu0 0.0
    %3361 = vmatpush2.msra.mxu0 0.0
    %3362 = vmatprep.subr.mxu0 0.0
    %3363 = vmatpush2.msra.mxu0 0.0
    %3364 = vmatprep.subr.mxu0 0.0
    %3365 = vmatpush2.msra.mxu0 0.0
    %3366 = vmatprep.subr.mxu0 0.0
    %3367 = vmatpush2.msra.mxu0 0.0
    %3368 = vmatprep.subr.mxu0 0.0
    %3369 = vmatpush2.msra.mxu0 0.0
    %3370 = vmatprep.subr.mxu0 0.0
    %3371 = vmatpush2.msra.mxu0 0.0
    %3372 = vmatprep.subr.mxu0 0.0
    %3373 = vmatpush2.msra.mxu0 0.0
    %3374 = vmatprep.subr.mxu0 0.0
    %3375 = vmatpush2.msra.mxu0 0.0
    %3376 = vmatprep.subr.mxu0 0.0
    %3377 = vmatpush2.msra.mxu0 0.0
    %3378 = vmatprep.subr.mxu0 0.0
    %3379 = vmatpush2.msra.mxu0 0.0
    %3380 = vmatprep.subr.mxu0 0.0
    %3381 = vmatpush2.msra.mxu0 0.0
    %3382 = vmatprep.subr.mxu0 0.0
    %3383 = vmatpush2.msra.mxu0 0.0
    %3384 = vmatprep.subr.mxu0 0.0
    %3385 = vmatpush2.msra.mxu0 0.0
    %3386 = vmatprep.subr.mxu0 0.0
    %3387 = vmatpush2.msra.mxu0 0.0
    %3388 = vmatprep.mubr.f32.mxu0 0.0
    %3389 = vmatmul.mubr.f32.gmra.mxu0 %v3322
    %v3390 = vpop.f32.mrf.mxu0
    %v3391 = vadd.f32 0.0, %v3390
    %v3392 = vpop.f32.mrf.mxu0
    %3393 = vdwg.mxu0
    %v3395 = vsel %vm199, %v3318, 0
    %3397 = vmatprep.subr.mxu0 0.0
    %3398 = vmatpush1.msra.mxu0 0.0
    %3399 = vmatprep.subr.mxu0 0.0
    %3400 = vmatpush1.msra.mxu0 0.0
    %3401 = vmatprep.subr.mxu0 0.0
    %3402 = vmatpush1.msra.mxu0 0.0
    %3403 = vmatprep.subr.mxu0 0.0
    %3404 = vmatpush1.msra.mxu0 0.0
    %3405 = vmatprep.subr.mxu0 0.0
    %3406 = vmatpush1.msra.mxu0 0.0
    %3407 = vmatprep.subr.mxu0 0.0
    %3408 = vmatpush1.msra.mxu0 0.0
    %3409 = vmatprep.subr.mxu0 0.0
    %3410 = vmatpush1.msra.mxu0 0.0
    %3411 = vmatprep.subr.mxu0 0.0
    %3412 = vmatpush1.msra.mxu0 0.0
    %3413 = vmatprep.subr.mxu0 0.0
    %3414 = vmatpush1.msra.mxu0 0.0
    %3415 = vmatprep.subr.mxu0 0.0
    %3416 = vmatpush1.msra.mxu0 0.0
    %3417 = vmatprep.subr.mxu0 0.0
    %3418 = vmatpush1.msra.mxu0 0.0
    %3419 = vmatprep.subr.mxu0 0.0
    %3420 = vmatpush1.msra.mxu0 0.0
    %3421 = vmatprep.subr.mxu0 0.0
    %3422 = vmatpush1.msra.mxu0 0.0
    %3423 = vmatprep.subr.mxu0 0.0
    %3424 = vmatpush1.msra.mxu0 0.0
    %3425 = vmatprep.subr.mxu0 0.0
    %3426 = vmatpush1.msra.mxu0 0.0
    %3427 = vmatprep.subr.mxu0 0.0
    %3428 = vmatpush1.msra.mxu0 %v3320
    %3429 = vmatprep.subr.mxu0 0.0
    %3430 = vmatpush2.msra.mxu0 0.0
    %3431 = vmatprep.subr.mxu0 0.0
    %3432 = vmatpush2.msra.mxu0 0.0
    %3433 = vmatprep.subr.mxu0 0.0
    %3434 = vmatpush2.msra.mxu0 0.0
    %3435 = vmatprep.subr.mxu0 0.0
    %3436 = vmatpush2.msra.mxu0 0.0
    %3437 = vmatprep.subr.mxu0 0.0
    %3438 = vmatpush2.msra.mxu0 0.0
    %3439 = vmatprep.subr.mxu0 0.0
    %3440 = vmatpush2.msra.mxu0 0.0
    %3441 = vmatprep.subr.mxu0 0.0
    %3442 = vmatpush2.msra.mxu0 0.0
    %3443 = vmatprep.subr.mxu0 0.0
    %3444 = vmatpush2.msra.mxu0 0.0
    %3445 = vmatprep.subr.mxu0 0.0
    %3446 = vmatpush2.msra.mxu0 0.0
    %3447 = vmatprep.subr.mxu0 0.0
    %3448 = vmatpush2.msra.mxu0 0.0
    %3449 = vmatprep.subr.mxu0 0.0
    %3450 = vmatpush2.msra.mxu0 0.0
    %3451 = vmatprep.subr.mxu0 0.0
    %3452 = vmatpush2.msra.mxu0 0.0
    %3453 = vmatprep.subr.mxu0 0.0
    %3454 = vmatpush2.msra.mxu0 0.0
    %3455 = vmatprep.subr.mxu0 0.0
    %3456 = vmatpush2.msra.mxu0 0.0
    %3457 = vmatprep.subr.mxu0 0.0
    %3458 = vmatpush2.msra.mxu0 0.0
    %3459 = vmatprep.subr.mxu0 0.0
    %3460 = vmatpush2.msra.mxu0 0.0
    %3461 = vmatprep.mubr.f32.mxu0 0.0
    %3462 = vmatmul.mubr.f32.gmra.mxu0 %v3395
    %v3463 = vpop.f32.mrf.mxu0
    %v3464 = vadd.f32 0.0, %v3463
    %v3465 = vpop.f32.mrf.mxu0
    %3466 = vdwg.mxu0
    %v3467 = vadd.f32 %v3066, %v3391
    %v3468 = vadd.f32 %v3139, %v3464
    %vm3469 = vcmp.ge.s32.totalorder %v2485, 24
    %vm3470 = vcmp.lt.s32.totalorder %v2485, 32
    %vm3471 = vmand %vm3469, %vm3470
    %v3472 = vsel %vm3471, 1, 0
    %v3473 = vcvt.s32.f32 %v3472
    %v3474 = vmul.f32 %v2304, %v3473
    %v3475 = vmul.f32 %v2309, %v3473
    %v3477 = vsel %vm2232, %v3474, 0
    %3479 = vmatprep.subr.mxu0 0.0
    %3480 = vmatpush1.xpose.msra.mxu0 0.0
    %3481 = vmatprep.subr.mxu0 0.0
    %3482 = vmatpush1.xpose.msra.mxu0 0.0
    %3483 = vmatprep.subr.mxu0 0.0
    %3484 = vmatpush1.xpose.msra.mxu0 0.0
    %3485 = vmatprep.subr.mxu0 0.0
    %3486 = vmatpush1.xpose.msra.mxu0 0.0
    %3487 = vmatprep.subr.mxu0 0.0
    %3488 = vmatpush1.xpose.msra.mxu0 0.0
    %3489 = vmatprep.subr.mxu0 0.0
    %3490 = vmatpush1.xpose.msra.mxu0 0.0
    %3491 = vmatprep.subr.mxu0 0.0
    %3492 = vmatpush1.xpose.msra.mxu0 0.0
    %3493 = vmatprep.subr.mxu0 0.0
    %3494 = vmatpush1.xpose.msra.mxu0 0.0
    %3495 = vmatprep.subr.mxu0 0.0
    %3496 = vmatpush1.xpose.msra.mxu0 0.0
    %3497 = vmatprep.subr.mxu0 0.0
    %3498 = vmatpush1.xpose.msra.mxu0 0.0
    %3499 = vmatprep.subr.mxu0 0.0
    %3500 = vmatpush1.xpose.msra.mxu0 0.0
    %3501 = vmatprep.subr.mxu0 0.0
    %3502 = vmatpush1.xpose.msra.mxu0 0.0
    %3503 = vmatprep.subr.mxu0 0.0
    %3504 = vmatpush1.xpose.msra.mxu0 0.0
    %3505 = vmatprep.subr.mxu0 0.0
    %3506 = vmatpush1.xpose.msra.mxu0 0.0
    %3507 = vmatprep.subr.mxu0 0.0
    %3508 = vmatpush1.xpose.msra.mxu0 0.0
    %3509 = vmatprep.subr.mxu0 0.0
    %3510 = vmatpush1.xpose.msra.mxu0 %v2497
    %3511 = vmatprep.subr.mxu0 0.0
    %3512 = vmatpush2.xpose.msra.mxu0 0.0
    %3513 = vmatprep.subr.mxu0 0.0
    %3514 = vmatpush2.xpose.msra.mxu0 0.0
    %3515 = vmatprep.subr.mxu0 0.0
    %3516 = vmatpush2.xpose.msra.mxu0 0.0
    %3517 = vmatprep.subr.mxu0 0.0
    %3518 = vmatpush2.xpose.msra.mxu0 0.0
    %3519 = vmatprep.subr.mxu0 0.0
    %3520 = vmatpush2.xpose.msra.mxu0 0.0
    %3521 = vmatprep.subr.mxu0 0.0
    %3522 = vmatpush2.xpose.msra.mxu0 0.0
    %3523 = vmatprep.subr.mxu0 0.0
    %3524 = vmatpush2.xpose.msra.mxu0 0.0
    %3525 = vmatprep.subr.mxu0 0.0
    %3526 = vmatpush2.xpose.msra.mxu0 0.0
    %3527 = vmatprep.subr.mxu0 0.0
    %3528 = vmatpush2.xpose.msra.mxu0 0.0
    %3529 = vmatprep.subr.mxu0 0.0
    %3530 = vmatpush2.xpose.msra.mxu0 0.0
    %3531 = vmatprep.subr.mxu0 0.0
    %3532 = vmatpush2.xpose.msra.mxu0 0.0
    %3533 = vmatprep.subr.mxu0 0.0
    %3534 = vmatpush2.xpose.msra.mxu0 0.0
    %3535 = vmatprep.subr.mxu0 0.0
    %3536 = vmatpush2.xpose.msra.mxu0 0.0
    %3537 = vmatprep.subr.mxu0 0.0
    %3538 = vmatpush2.xpose.msra.mxu0 0.0
    %3539 = vmatprep.subr.mxu0 0.0
    %3540 = vmatpush2.xpose.msra.mxu0 0.0
    %3541 = vmatprep.subr.mxu0 0.0
    %3542 = vmatpush2.xpose.msra.mxu0 0.0
    %3543 = vmatprep.mubr.f32.mxu0 0.0
    %3544 = vmatmul.mubr.f32.gmra.mxu0 %v3477
    %v3545 = vpop.f32.mrf.mxu0
    %v3546 = vadd.f32 0.0, %v3545
    %v3547 = vpop.f32.mrf.mxu0
    %3548 = vdwg.mxu0
    %v3550 = vsel %vm2232, %v3475, 0
    %3552 = vmatprep.subr.mxu0 0.0
    %3553 = vmatpush1.xpose.msra.mxu0 0.0
    %3554 = vmatprep.subr.mxu0 0.0
    %3555 = vmatpush1.xpose.msra.mxu0 0.0
    %3556 = vmatprep.subr.mxu0 0.0
    %3557 = vmatpush1.xpose.msra.mxu0 0.0
    %3558 = vmatprep.subr.mxu0 0.0
    %3559 = vmatpush1.xpose.msra.mxu0 0.0
    %3560 = vmatprep.subr.mxu0 0.0
    %3561 = vmatpush1.xpose.msra.mxu0 0.0
    %3562 = vmatprep.subr.mxu0 0.0
    %3563 = vmatpush1.xpose.msra.mxu0 0.0
    %3564 = vmatprep.subr.mxu0 0.0
    %3565 = vmatpush1.xpose.msra.mxu0 0.0
    %3566 = vmatprep.subr.mxu0 0.0
    %3567 = vmatpush1.xpose.msra.mxu0 0.0
    %3568 = vmatprep.subr.mxu0 0.0
    %3569 = vmatpush1.xpose.msra.mxu0 0.0
    %3570 = vmatprep.subr.mxu0 0.0
    %3571 = vmatpush1.xpose.msra.mxu0 0.0
    %3572 = vmatprep.subr.mxu0 0.0
    %3573 = vmatpush1.xpose.msra.mxu0 0.0
    %3574 = vmatprep.subr.mxu0 0.0
    %3575 = vmatpush1.xpose.msra.mxu0 0.0
    %3576 = vmatprep.subr.mxu0 0.0
    %3577 = vmatpush1.xpose.msra.mxu0 0.0
    %3578 = vmatprep.subr.mxu0 0.0
    %3579 = vmatpush1.xpose.msra.mxu0 0.0
    %3580 = vmatprep.subr.mxu0 0.0
    %3581 = vmatpush1.xpose.msra.mxu0 0.0
    %3582 = vmatprep.subr.mxu0 0.0
    %3583 = vmatpush1.xpose.msra.mxu0 %v2573
    %3584 = vmatprep.subr.mxu0 0.0
    %3585 = vmatpush2.xpose.msra.mxu0 0.0
    %3586 = vmatprep.subr.mxu0 0.0
    %3587 = vmatpush2.xpose.msra.mxu0 0.0
    %3588 = vmatprep.subr.mxu0 0.0
    %3589 = vmatpush2.xpose.msra.mxu0 0.0
    %3590 = vmatprep.subr.mxu0 0.0
    %3591 = vmatpush2.xpose.msra.mxu0 0.0
    %3592 = vmatprep.subr.mxu0 0.0
    %3593 = vmatpush2.xpose.msra.mxu0 0.0
    %3594 = vmatprep.subr.mxu0 0.0
    %3595 = vmatpush2.xpose.msra.mxu0 0.0
    %3596 = vmatprep.subr.mxu0 0.0
    %3597 = vmatpush2.xpose.msra.mxu0 0.0
    %3598 = vmatprep.subr.mxu0 0.0
    %3599 = vmatpush2.xpose.msra.mxu0 0.0
    %3600 = vmatprep.subr.mxu0 0.0
    %3601 = vmatpush2.xpose.msra.mxu0 0.0
    %3602 = vmatprep.subr.mxu0 0.0
    %3603 = vmatpush2.xpose.msra.mxu0 0.0
    %3604 = vmatprep.subr.mxu0 0.0
    %3605 = vmatpush2.xpose.msra.mxu0 0.0
    %3606 = vmatprep.subr.mxu0 0.0
    %3607 = vmatpush2.xpose.msra.mxu0 0.0
    %3608 = vmatprep.subr.mxu0 0.0
    %3609 = vmatpush2.xpose.msra.mxu0 0.0
    %3610 = vmatprep.subr.mxu0 0.0
    %3611 = vmatpush2.xpose.msra.mxu0 0.0
    %3612 = vmatprep.subr.mxu0 0.0
    %3613 = vmatpush2.xpose.msra.mxu0 0.0
    %3614 = vmatprep.subr.mxu0 0.0
    %3615 = vmatpush2.xpose.msra.mxu0 0.0
    %3616 = vmatprep.mubr.f32.mxu0 0.0
    %3617 = vmatmul.mubr.f32.gmra.mxu0 %v3550
    %v3618 = vpop.f32.mrf.mxu0
    %v3619 = vadd.f32 0.0, %v3618
    %v3620 = vpop.f32.mrf.mxu0
    %3621 = vdwg.mxu0
    %v3622 = vmul.f32 %v3546, 0.35355338
    %v3623 = vmul.f32 %v3619, 0.35355338
    %v3624 = vsel %vm199, %v3622, -inf
    %3625 = vmax.xlane.f32.xlu0 %v3624
    %v3626 = vpop.xlane.xlu0 %3625
    %v3627 = vsel %vm199, %v3623, -inf
    %3628 = vmax.xlane.f32.xlu0 %v3627
    %v3629 = vpop.xlane.xlu0 %3628
    %v3630 = vsub.f32 %v3622, %v3626
    %v3631 = vsub.f32 %v3623, %v3629
    %v3632 = vmul.f32 %v3630, 1.442695
    %v3633 = vpow.pop %v3632
    %v3634 = vmul.f32 %v3631, 1.442695
    %v3635 = vpow.pop %v3634
    %v3636 = vsel %vm199, %v3633, 0.0
    %3637 = vadd.xlane.f32.xlu0 %v3636
    %v3638 = vpop.xlane.xlu0 %3637
    %v3639 = vsel %vm199, %v3635, 0.0
    %3640 = vadd.xlane.f32.xlu0 %v3639
    %v3641 = vpop.xlane.xlu0 %3640
    %v3642 = vrcp.pop %v3638
    %v3643 = vmul.f32 %v3633, %v3642
    %v3644 = vrcp.pop %v3641
    %v3645 = vmul.f32 %v3635, %v3644
    %v3646 = vmul.f32 %v2476, %v3473
    %v3647 = vmul.f32 %v2481, %v3473
    %v3649 = vsel %vm199, %v3643, 0
    %3651 = vmatprep.subr.mxu0 0.0
    %3652 = vmatpush1.msra.mxu0 0.0
    %3653 = vmatprep.subr.mxu0 0.0
    %3654 = vmatpush1.msra.mxu0 0.0
    %3655 = vmatprep.subr.mxu0 0.0
    %3656 = vmatpush1.msra.mxu0 0.0
    %3657 = vmatprep.subr.mxu0 0.0
    %3658 = vmatpush1.msra.mxu0 0.0
    %3659 = vmatprep.subr.mxu0 0.0
    %3660 = vmatpush1.msra.mxu0 0.0
    %3661 = vmatprep.subr.mxu0 0.0
    %3662 = vmatpush1.msra.mxu0 0.0
    %3663 = vmatprep.subr.mxu0 0.0
    %3664 = vmatpush1.msra.mxu0 0.0
    %3665 = vmatprep.subr.mxu0 0.0
    %3666 = vmatpush1.msra.mxu0 0.0
    %3667 = vmatprep.subr.mxu0 0.0
    %3668 = vmatpush1.msra.mxu0 0.0
    %3669 = vmatprep.subr.mxu0 0.0
    %3670 = vmatpush1.msra.mxu0 0.0
    %3671 = vmatprep.subr.mxu0 0.0
    %3672 = vmatpush1.msra.mxu0 0.0
    %3673 = vmatprep.subr.mxu0 0.0
    %3674 = vmatpush1.msra.mxu0 0.0
    %3675 = vmatprep.subr.mxu0 0.0
    %3676 = vmatpush1.msra.mxu0 0.0
    %3677 = vmatprep.subr.mxu0 0.0
    %3678 = vmatpush1.msra.mxu0 0.0
    %3679 = vmatprep.subr.mxu0 0.0
    %3680 = vmatpush1.msra.mxu0 0.0
    %3681 = vmatprep.subr.mxu0 0.0
    %3682 = vmatpush1.msra.mxu0 %v3646
    %3683 = vmatprep.subr.mxu0 0.0
    %3684 = vmatpush2.msra.mxu0 0.0
    %3685 = vmatprep.subr.mxu0 0.0
    %3686 = vmatpush2.msra.mxu0 0.0
    %3687 = vmatprep.subr.mxu0 0.0
    %3688 = vmatpush2.msra.mxu0 0.0
    %3689 = vmatprep.subr.mxu0 0.0
    %3690 = vmatpush2.msra.mxu0 0.0
    %3691 = vmatprep.subr.mxu0 0.0
    %3692 = vmatpush2.msra.mxu0 0.0
    %3693 = vmatprep.subr.mxu0 0.0
    %3694 = vmatpush2.msra.mxu0 0.0
    %3695 = vmatprep.subr.mxu0 0.0
    %3696 = vmatpush2.msra.mxu0 0.0
    %3697 = vmatprep.subr.mxu0 0.0
    %3698 = vmatpush2.msra.mxu0 0.0
    %3699 = vmatprep.subr.mxu0 0.0
    %3700 = vmatpush2.msra.mxu0 0.0
    %3701 = vmatprep.subr.mxu0 0.0
    %3702 = vmatpush2.msra.mxu0 0.0
    %3703 = vmatprep.subr.mxu0 0.0
    %3704 = vmatpush2.msra.mxu0 0.0
    %3705 = vmatprep.subr.mxu0 0.0
    %3706 = vmatpush2.msra.mxu0 0.0
    %3707 = vmatprep.subr.mxu0 0.0
    %3708 = vmatpush2.msra.mxu0 0.0
    %3709 = vmatprep.subr.mxu0 0.0
    %3710 = vmatpush2.msra.mxu0 0.0
    %3711 = vmatprep.subr.mxu0 0.0
    %3712 = vmatpush2.msra.mxu0 0.0
    %3713 = vmatprep.subr.mxu0 0.0
    %3714 = vmatpush2.msra.mxu0 0.0
    %3715 = vmatprep.mubr.f32.mxu0 0.0
    %3716 = vmatmul.mubr.f32.gmra.mxu0 %v3649
    %v3717 = vpop.f32.mrf.mxu0
    %v3718 = vadd.f32 0.0, %v3717
    %v3719 = vpop.f32.mrf.mxu0
    %3720 = vdwg.mxu0
    %v3722 = vsel %vm199, %v3645, 0
    %3724 = vmatprep.subr.mxu0 0.0
    %3725 = vmatpush1.msra.mxu0 0.0
    %3726 = vmatprep.subr.mxu0 0.0
    %3727 = vmatpush1.msra.mxu0 0.0
    %3728 = vmatprep.subr.mxu0 0.0
    %3729 = vmatpush1.msra.mxu0 0.0
    %3730 = vmatprep.subr.mxu0 0.0
    %3731 = vmatpush1.msra.mxu0 0.0
    %3732 = vmatprep.subr.mxu0 0.0
    %3733 = vmatpush1.msra.mxu0 0.0
    %3734 = vmatprep.subr.mxu0 0.0
    %3735 = vmatpush1.msra.mxu0 0.0
    %3736 = vmatprep.subr.mxu0 0.0
    %3737 = vmatpush1.msra.mxu0 0.0
    %3738 = vmatprep.subr.mxu0 0.0
    %3739 = vmatpush1.msra.mxu0 0.0
    %3740 = vmatprep.subr.mxu0 0.0
    %3741 = vmatpush1.msra.mxu0 0.0
    %3742 = vmatprep.subr.mxu0 0.0
    %3743 = vmatpush1.msra.mxu0 0.0
    %3744 = vmatprep.subr.mxu0 0.0
    %3745 = vmatpush1.msra.mxu0 0.0
    %3746 = vmatprep.subr.mxu0 0.0
    %3747 = vmatpush1.msra.mxu0 0.0
    %3748 = vmatprep.subr.mxu0 0.0
    %3749 = vmatpush1.msra.mxu0 0.0
    %3750 = vmatprep.subr.mxu0 0.0
    %3751 = vmatpush1.msra.mxu0 0.0
    %3752 = vmatprep.subr.mxu0 0.0
    %3753 = vmatpush1.msra.mxu0 0.0
    %3754 = vmatprep.subr.mxu0 0.0
    %3755 = vmatpush1.msra.mxu0 %v3647
    %3756 = vmatprep.subr.mxu0 0.0
    %3757 = vmatpush2.msra.mxu0 0.0
    %3758 = vmatprep.subr.mxu0 0.0
    %3759 = vmatpush2.msra.mxu0 0.0
    %3760 = vmatprep.subr.mxu0 0.0
    %3761 = vmatpush2.msra.mxu0 0.0
    %3762 = vmatprep.subr.mxu0 0.0
    %3763 = vmatpush2.msra.mxu0 0.0
    %3764 = vmatprep.subr.mxu0 0.0
    %3765 = vmatpush2.msra.mxu0 0.0
    %3766 = vmatprep.subr.mxu0 0.0
    %3767 = vmatpush2.msra.mxu0 0.0
    %3768 = vmatprep.subr.mxu0 0.0
    %3769 = vmatpush2.msra.mxu0 0.0
    %3770 = vmatprep.subr.mxu0 0.0
    %3771 = vmatpush2.msra.mxu0 0.0
    %3772 = vmatprep.subr.mxu0 0.0
    %3773 = vmatpush2.msra.mxu0 0.0
    %3774 = vmatprep.subr.mxu0 0.0
    %3775 = vmatpush2.msra.mxu0 0.0
    %3776 = vmatprep.subr.mxu0 0.0
    %3777 = vmatpush2.msra.mxu0 0.0
    %3778 = vmatprep.subr.mxu0 0.0
    %3779 = vmatpush2.msra.mxu0 0.0
    %3780 = vmatprep.subr.mxu0 0.0
    %3781 = vmatpush2.msra.mxu0 0.0
    %3782 = vmatprep.subr.mxu0 0.0
    %3783 = vmatpush2.msra.mxu0 0.0
    %3784 = vmatprep.subr.mxu0 0.0
    %3785 = vmatpush2.msra.mxu0 0.0
    %3786 = vmatprep.subr.mxu0 0.0
    %3787 = vmatpush2.msra.mxu0 0.0
    %3788 = vmatprep.mubr.f32.mxu0 0.0
    %3789 = vmatmul.mubr.f32.gmra.mxu0 %v3722
    %v3790 = vpop.f32.mrf.mxu0
    %v3791 = vadd.f32 0.0, %v3790
    %v3792 = vpop.f32.mrf.mxu0
    %3793 = vdwg.mxu0
    %v3794 = vadd.f32 %v3467, %v3718
    %v3795 = vadd.f32 %v3468, %v3791
    %v3796 = vld [vmem:[%s16] sm:$0xff]
    %v3797 = vld [vmem:[%s16 + $0x8] sm:$0xff]
    %v3798 = vld [vmem:[%s16 + $0x10] sm:$0xff]
    %v3799 = vld [vmem:[%s16 + $0x18] sm:$0xff]
    %v3800 = vld [vmem:[%s17] sm:$0x1]
    %v3802 = vlaneseq
    %v3803 = vshrl.u32 %v3802, 7
    %v3804 = vsub.s32 0, %v3803
    %v3805 = vrot.slane %v3800, %v3804
    %v3808 = vsel %vm2232, %v3794, 0
    %v3811 = vsel %vm2232, %v3795, 0
    %3813 = vmatprep.subr.mxu0 0.0
    %3814 = vmatpush1.msra.mxu0 0.0
    %3815 = vmatprep.subr.mxu0 0.0
    %3816 = vmatpush1.msra.mxu0 0.0
    %3817 = vmatprep.subr.mxu0 0.0
    %3818 = vmatpush1.msra.mxu0 0.0
    %3819 = vmatprep.subr.mxu0 0.0
    %3820 = vmatpush1.msra.mxu0 0.0
    %3821 = vmatprep.subr.mxu0 0.0
    %3822 = vmatpush1.msra.mxu0 0.0
    %3823 = vmatprep.subr.mxu0 0.0
    %3824 = vmatpush1.msra.mxu0 0.0
    %3825 = vmatprep.subr.mxu0 0.0
    %3826 = vmatpush1.msra.mxu0 0.0
    %3827 = vmatprep.subr.mxu0 0.0
    %3828 = vmatpush1.msra.mxu0 0.0
    %3829 = vmatprep.subr.mxu0 0.0
    %3830 = vmatpush1.msra.mxu0 0.0
    %3831 = vmatprep.subr.mxu0 0.0
    %3832 = vmatpush1.msra.mxu0 0.0
    %3833 = vmatprep.subr.mxu0 0.0
    %3834 = vmatpush1.msra.mxu0 0.0
    %3835 = vmatprep.subr.mxu0 0.0
    %3836 = vmatpush1.msra.mxu0 0.0
    %3837 = vmatprep.subr.mxu0 0.0
    %3838 = vmatpush1.msra.mxu0 %v3799
    %3839 = vmatprep.subr.mxu0 0.0
    %3840 = vmatpush1.msra.mxu0 %v3798
    %3841 = vmatprep.subr.mxu0 0.0
    %3842 = vmatpush1.msra.mxu0 %v3797
    %3843 = vmatprep.subr.mxu0 0.0
    %3844 = vmatpush1.msra.mxu0 %v3796
    %3845 = vmatprep.subr.mxu0 0.0
    %3846 = vmatpush2.msra.mxu0 0.0
    %3847 = vmatprep.subr.mxu0 0.0
    %3848 = vmatpush2.msra.mxu0 0.0
    %3849 = vmatprep.subr.mxu0 0.0
    %3850 = vmatpush2.msra.mxu0 0.0
    %3851 = vmatprep.subr.mxu0 0.0
    %3852 = vmatpush2.msra.mxu0 0.0
    %3853 = vmatprep.subr.mxu0 0.0
    %3854 = vmatpush2.msra.mxu0 0.0
    %3855 = vmatprep.subr.mxu0 0.0
    %3856 = vmatpush2.msra.mxu0 0.0
    %3857 = vmatprep.subr.mxu0 0.0
    %3858 = vmatpush2.msra.mxu0 0.0
    %3859 = vmatprep.subr.mxu0 0.0
    %3860 = vmatpush2.msra.mxu0 0.0
    %3861 = vmatprep.subr.mxu0 0.0
    %3862 = vmatpush2.msra.mxu0 0.0
    %3863 = vmatprep.subr.mxu0 0.0
    %3864 = vmatpush2.msra.mxu0 0.0
    %3865 = vmatprep.subr.mxu0 0.0
    %3866 = vmatpush2.msra.mxu0 0.0
    %3867 = vmatprep.subr.mxu0 0.0
    %3868 = vmatpush2.msra.mxu0 0.0
    %3869 = vmatprep.subr.mxu0 0.0
    %3870 = vmatpush2.msra.mxu0 0.0
    %3871 = vmatprep.subr.mxu0 0.0
    %3872 = vmatpush2.msra.mxu0 0.0
    %3873 = vmatprep.subr.mxu0 0.0
    %3874 = vmatpush2.msra.mxu0 0.0
    %3875 = vmatprep.subr.mxu0 0.0
    %3876 = vmatpush2.msra.mxu0 0.0
    %3877 = vmatprep.mubr.f32.mxu0 0.0
    %3878 = vmatmul.mubr.f32.gmra.mxu0 %v3808
    %v3879 = vpop.f32.mrf.mxu0
    %v3880 = vadd.f32 %v3805, %v3879
    %v3881 = vpop.f32.mrf.mxu0
    %3882 = vmatprep.mubr.f32.mxu0 0.0
    %3883 = vmatmul.mubr.f32.gmra.mxu0 %v3811
    %v3884 = vpop.f32.mrf.mxu0
    %v3885 = vadd.f32 %v3805, %v3884
    %v3886 = vpop.f32.mrf.mxu0
    %3887 = vdwg.mxu0
    %v3890 = vrot.slane %v3880, 1
    %v3891 = vrot.slane %v3880, 2
    %v3892 = vrot.slane %v3880, 3
    %v3893 = vrot.slane %v3880, 4
    %v3894 = vrot.slane %v3880, 5
    %v3895 = vrot.slane %v3880, 6
    %v3896 = vrot.slane %v3880, 7
    %v3897 = vrot.slane %v3885, 1
    %v3898 = vrot.slane %v3885, 2
    %v3899 = vrot.slane %v3885, 3
    %v3900 = vrot.slane %v3885, 4
    %v3901 = vrot.slane %v3885, 5
    %v3902 = vrot.slane %v3885, 6
    %v3903 = vrot.slane %v3885, 7
    %v3920 = vadd.f32 %v2078, %v3880
    %v3921 = vadd.f32 %v2085, %v3890
    %v3922 = vadd.f32 %v2092, %v3891
    %v3923 = vadd.f32 %v2099, %v3892
    %v3924 = vadd.f32 %v2106, %v3893
    %v3925 = vadd.f32 %v2113, %v3894
    %v3926 = vadd.f32 %v2120, %v3895
    %v3927 = vadd.f32 %v2127, %v3896
    %v3928 = vadd.f32 %v2134, %v3885
    %v3929 = vadd.f32 %v2141, %v3897
    %v3930 = vadd.f32 %v2148, %v3898
    %v3931 = vadd.f32 %v2155, %v3899
    %v3932 = vadd.f32 %v2162, %v3900
    %v3933 = vadd.f32 %v2169, %v3901
    %v3934 = vadd.f32 %v2176, %v3902
    %v3935 = vadd.f32 %v2183, %v3903
    %v3952 = vrot.slane %v3921, 7
    %v3953 = vsel %vm2211, %v3952, %v3920
    %v3954 = vrot.slane %v3922, 6
    %v3955 = vsel %vm2213, %v3954, %v3953
    %v3956 = vrot.slane %v3923, 5
    %v3957 = vsel %vm2215, %v3956, %v3955
    %v3958 = vrot.slane %v3924, 4
    %v3959 = vsel %vm2217, %v3958, %v3957
    %v3960 = vrot.slane %v3925, 3
    %v3961 = vsel %vm2219, %v3960, %v3959
    %v3962 = vrot.slane %v3926, 2
    %v3963 = vsel %vm2221, %v3962, %v3961
    %v3964 = vrot.slane %v3927, 1
    %v3965 = vsel %vm2223, %v3964, %v3963
    %v3966 = vrot.slane %v3929, 7
    %v3967 = vsel %vm2211, %v3966, %v3928
    %v3968 = vrot.slane %v3930, 6
    %v3969 = vsel %vm2213, %v3968, %v3967
    %v3970 = vrot.slane %v3931, 5
    %v3971 = vsel %vm2215, %v3970, %v3969
    %v3972 = vrot.slane %v3932, 4
    %v3973 = vsel %vm2217, %v3972, %v3971
    %v3974 = vrot.slane %v3933, 3
    %v3975 = vsel %vm2219, %v3974, %v3973
    %v3976 = vrot.slane %v3934, 2
    %v3977 = vsel %vm2221, %v3976, %v3975
    %v3978 = vrot.slane %v3935, 1
    %v3979 = vsel %vm2223, %v3978, %v3977
    %v3982 = vsel %vm2232, %v3965, 0.0
    %3983 = vadd.xlane.f32.xlu0 %v3982
    %v3984 = vpop.xlane.xlu0 %3983
    %v3985 = vsel %vm2232, %v3979, 0.0
    %3986 = vadd.xlane.f32.xlu0 %v3985
    %v3987 = vpop.xlane.xlu0 %3986
    %v3988 = vrcp.pop 32.0
    %v3989 = vmul.f32 %v3984, %v3988
    %v3990 = vmul.f32 %v3987, %v3988
    %v3993 = vrot.slane %v3989, 1
    %v3994 = vrot.slane %v3989, 2
    %v3995 = vrot.slane %v3989, 3
    %v3996 = vrot.slane %v3989, 4
    %v3997 = vrot.slane %v3989, 5
    %v3998 = vrot.slane %v3989, 6
    %v3999 = vrot.slane %v3989, 7
    %v4000 = vrot.slane %v3990, 1
    %v4001 = vrot.slane %v3990, 2
    %v4002 = vrot.slane %v3990, 3
    %v4003 = vrot.slane %v3990, 4
    %v4004 = vrot.slane %v3990, 5
    %v4005 = vrot.slane %v3990, 6
    %v4006 = vrot.slane %v3990, 7
    %v4023 = vsub.f32 %v3920, %v3989
    %v4024 = vsub.f32 %v3921, %v3993
    %v4025 = vsub.f32 %v3922, %v3994
    %v4026 = vsub.f32 %v3923, %v3995
    %v4027 = vsub.f32 %v3924, %v3996
    %v4028 = vsub.f32 %v3925, %v3997
    %v4029 = vsub.f32 %v3926, %v3998
    %v4030 = vsub.f32 %v3927, %v3999
    %v4031 = vsub.f32 %v3928, %v3990
    %v4032 = vsub.f32 %v3929, %v4000
    %v4033 = vsub.f32 %v3930, %v4001
    %v4034 = vsub.f32 %v3931, %v4002
    %v4035 = vsub.f32 %v3932, %v4003
    %v4036 = vsub.f32 %v3933, %v4004
    %v4037 = vsub.f32 %v3934, %v4005
    %v4038 = vsub.f32 %v3935, %v4006
    %v4039 = vmul.f32 %v4023, %v4023
    %v4040 = vmul.f32 %v4024, %v4024
    %v4041 = vmul.f32 %v4025, %v4025
    %v4042 = vmul.f32 %v4026, %v4026
    %v4043 = vmul.f32 %v4027, %v4027
    %v4044 = vmul.f32 %v4028, %v4028
    %v4045 = vmul.f32 %v4029, %v4029
    %v4046 = vmul.f32 %v4030, %v4030
    %v4047 = vmul.f32 %v4031, %v4031
    %v4048 = vmul.f32 %v4032, %v4032
    %v4049 = vmul.f32 %v4033, %v4033
    %v4050 = vmul.f32 %v4034, %v4034
    %v4051 = vmul.f32 %v4035, %v4035
    %v4052 = vmul.f32 %v4036, %v4036
    %v4053 = vmul.f32 %v4037, %v4037
    %v4054 = vmul.f32 %v4038, %v4038
    %v4071 = vrot.slane %v4040, 7
    %v4072 = vsel %vm2211, %v4071, %v4039
    %v4073 = vrot.slane %v4041, 6
    %v4074 = vsel %vm2213, %v4073, %v4072
    %v4075 = vrot.slane %v4042, 5
    %v4076 = vsel %vm2215, %v4075, %v4074
    %v4077 = vrot.slane %v4043, 4
    %v4078 = vsel %vm2217, %v4077, %v4076
    %v4079 = vrot.slane %v4044, 3
    %v4080 = vsel %vm2219, %v4079, %v4078
    %v4081 = vrot.slane %v4045, 2
    %v4082 = vsel %vm2221, %v4081, %v4080
    %v4083 = vrot.slane %v4046, 1
    %v4084 = vsel %vm2223, %v4083, %v4082
    %v4085 = vrot.slane %v4048, 7
    %v4086 = vsel %vm2211, %v4085, %v4047
    %v4087 = vrot.slane %v4049, 6
    %v4088 = vsel %vm2213, %v4087, %v4086
    %v4089 = vrot.slane %v4050, 5
    %v4090 = vsel %vm2215, %v4089, %v4088
    %v4091 = vrot.slane %v4051, 4
    %v4092 = vsel %vm2217, %v4091, %v4090
    %v4093 = vrot.slane %v4052, 3
    %v4094 = vsel %vm2219, %v4093, %v4092
    %v4095 = vrot.slane %v4053, 2
    %v4096 = vsel %vm2221, %v4095, %v4094
    %v4097 = vrot.slane %v4054, 1
    %v4098 = vsel %vm2223, %v4097, %v4096
    %v4101 = vsel %vm2232, %v4084, 0.0
    %4102 = vadd.xlane.f32.xlu0 %v4101
    %v4103 = vpop.xlane.xlu0 %4102
    %v4104 = vsel %vm2232, %v4098, 0.0
    %4105 = vadd.xlane.f32.xlu0 %v4104
    %v4106 = vpop.xlane.xlu0 %4105
    %v4107 = vmul.f32 %v4103, %v3988
    %v4108 = vmul.f32 %v4106, %v3988
    %v4109 = vadd.f32 %v4107, 1e-05
    %v4110 = vadd.f32 %v4108, 1e-05
    %v4111 = vrsqrt.pop %v4109
    %v4112 = vrsqrt.pop %v4110
    %v4115 = vrot.slane %v4111, 1
    %v4116 = vrot.slane %v4111, 2
    %v4117 = vrot.slane %v4111, 3
    %v4118 = vrot.slane %v4111, 4
    %v4119 = vrot.slane %v4111, 5
    %v4120 = vrot.slane %v4111, 6
    %v4121 = vrot.slane %v4111, 7
    %v4122 = vrot.slane %v4112, 1
    %v4123 = vrot.slane %v4112, 2
    %v4124 = vrot.slane %v4112, 3
    %v4125 = vrot.slane %v4112, 4
    %v4126 = vrot.slane %v4112, 5
    %v4127 = vrot.slane %v4112, 6
    %v4128 = vrot.slane %v4112, 7
    %v4145 = vmul.f32 %v4023, %v4111
    %v4146 = vmul.f32 %v4024, %v4115
    %v4147 = vmul.f32 %v4025, %v4116
    %v4148 = vmul.f32 %v4026, %v4117
    %v4149 = vmul.f32 %v4027, %v4118
    %v4150 = vmul.f32 %v4028, %v4119
    %v4151 = vmul.f32 %v4029, %v4120
    %v4152 = vmul.f32 %v4030, %v4121
    %v4153 = vmul.f32 %v4031, %v4112
    %v4154 = vmul.f32 %v4032, %v4122
    %v4155 = vmul.f32 %v4033, %v4123
    %v4156 = vmul.f32 %v4034, %v4124
    %v4157 = vmul.f32 %v4035, %v4125
    %v4158 = vmul.f32 %v4036, %v4126
    %v4159 = vmul.f32 %v4037, %v4127
    %v4160 = vmul.f32 %v4038, %v4128
    %v4161 = vld [vmem:[%s18] sm:$0x1]
    %v4163 = vlaneseq
    %v4164 = vshrl.u32 %v4163, 7
    %v4165 = vsub.s32 0, %v4164
    %v4166 = vrot.slane %v4161, %v4165
    %v4168 = vmul.f32 %v4145, %v4166
    %v4169 = vmul.f32 %v4146, %v4166
    %v4170 = vmul.f32 %v4147, %v4166
    %v4171 = vmul.f32 %v4148, %v4166
    %v4172 = vmul.f32 %v4149, %v4166
    %v4173 = vmul.f32 %v4150, %v4166
    %v4174 = vmul.f32 %v4151, %v4166
    %v4175 = vmul.f32 %v4152, %v4166
    %v4176 = vmul.f32 %v4153, %v4166
    %v4177 = vmul.f32 %v4154, %v4166
    %v4178 = vmul.f32 %v4155, %v4166
    %v4179 = vmul.f32 %v4156, %v4166
    %v4180 = vmul.f32 %v4157, %v4166
    %v4181 = vmul.f32 %v4158, %v4166
    %v4182 = vmul.f32 %v4159, %v4166
    %v4183 = vmul.f32 %v4160, %v4166
    %v4184 = vld [vmem:[%s19] sm:$0x1]
    %v4186 = vlaneseq
    %v4187 = vshrl.u32 %v4186, 7
    %v4188 = vsub.s32 0, %v4187
    %v4189 = vrot.slane %v4184, %v4188
    %v4191 = vadd.f32 %v4168, %v4189
    %v4192 = vadd.f32 %v4169, %v4189
    %v4193 = vadd.f32 %v4170, %v4189
    %v4194 = vadd.f32 %v4171, %v4189
    %v4195 = vadd.f32 %v4172, %v4189
    %v4196 = vadd.f32 %v4173, %v4189
    %v4197 = vadd.f32 %v4174, %v4189
    %v4198 = vadd.f32 %v4175, %v4189
    %v4199 = vadd.f32 %v4176, %v4189
    %v4200 = vadd.f32 %v4177, %v4189
    %v4201 = vadd.f32 %v4178, %v4189
    %v4202 = vadd.f32 %v4179, %v4189
    %v4203 = vadd.f32 %v4180, %v4189
    %v4204 = vadd.f32 %v4181, %v4189
    %v4205 = vadd.f32 %v4182, %v4189
    %v4206 = vadd.f32 %v4183, %v4189
    %v4223 = vrot.slane %v4192, 7
    %v4224 = vsel %vm2211, %v4223, %v4191
    %v4225 = vrot.slane %v4193, 6
    %v4226 = vsel %vm2213, %v4225, %v4224
    %v4227 = vrot.slane %v4194, 5
    %v4228 = vsel %vm2215, %v4227, %v4226
    %v4229 = vrot.slane %v4195, 4
    %v4230 = vsel %vm2217, %v4229, %v4228
    %v4231 = vrot.slane %v4196, 3
    %v4232 = vsel %vm2219, %v4231, %v4230
    %v4233 = vrot.slane %v4197, 2
    %v4234 = vsel %vm2221, %v4233, %v4232
    %v4235 = vrot.slane %v4198, 1
    %v4236 = vsel %vm2223, %v4235, %v4234
    %v4237 = vrot.slane %v4200, 7
    %v4238 = vsel %vm2211, %v4237, %v4199
    %v4239 = vrot.slane %v4201, 6
    %v4240 = vsel %vm2213, %v4239, %v4238
    %v4241 = vrot.slane %v4202, 5
    %v4242 = vsel %vm2215, %v4241, %v4240
    %v4243 = vrot.slane %v4203, 4
    %v4244 = vsel %vm2217, %v4243, %v4242
    %v4245 = vrot.slane %v4204, 3
    %v4246 = vsel %vm2219, %v4245, %v4244
    %v4247 = vrot.slane %v4205, 2
    %v4248 = vsel %vm2221, %v4247, %v4246
    %v4249 = vrot.slane %v4206, 1
    %v4250 = vsel %vm2223, %v4249, %v4248
    %v4253 = vsel %vm2232, %v4236, 0.0
    %v4254 = vsel %vm2232, %v4250, 0.0
    %4255 = vst [vmem:[#allocation2] sm:$0xff] %v4253
    %4256 = vst [vmem:[#allocation2 + $0x8] sm:$0xff] %v4254
    // Predicated region
    $region82: #{tpu_custom_call.1} parent=1 // pred_check
      _
    $region83: #{tpu_custom_call.1} parent=1 // pred_check_branch
      %4258 = sbr.rel (0) target = $region85
    $region84: #{tpu_custom_call.1} parent=1 // pred_region
      %s4260 = ssub.s32 256, 256
      %4261 = vsyncadd [#allocation3], %s4260
      %s4262 = sshll.u32 [#allocation2], 4
      %s4263 = int_to_ptr.vmem [resolvable:$true] %s4262
      %4268 = dma.vmem_to_hbm [thread:$0]  %s4263, 256, %s20, [#allocation3], 128, 128, 8
    $region85: #{tpu_custom_call.1} parent=1 // pred_fallthru
      _
    // Predicated region
    $region86: #{tpu_custom_call.1} parent=1 // pred_check
      _
    $region87: #{tpu_custom_call.1} parent=1 // pred_check_branch
      %4270 = sbr.rel (0) target = $region89
    $region88: #{tpu_custom_call.1} parent=1 // pred_region
      %4271 = dma.done [#allocation3], 256
    $region89: #{tpu_custom_call.1} parent=1 // pred_fallthru
      _
    %4272 = vsyncpa [#allocation3], 1

</llo_original>
